<compile_context>
chip_gen: v6e
topology: v6e:2x2x1
jax: 0.10.0
libtpu: 0.0.40
codegen_flags: <defaults>
</compile_context>

<pallas_src>
import jax
import jax.numpy as jnp
from jax.experimental import pallas as pl
from jax.experimental.pallas import tpu as pltpu


# (original Din, original Dout) per layer, and their lane-dense padded sizes.
_ORIG_DIMS = [(784, 500), (500, 300), (300, 100), (100, 10)]
_K_IN = 784
_PAD_IN = [896, 512, 384, 128]     # 896 = 7*128 so layer-1 K has no ragged tail
_PAD_OUT = [512, 384, 128, 128]


def _mlp3_fused_kernel(x_ref, w1_ref, b1_ref, w2_ref, b2_ref,
                       w3_ref, b3_ref, w4_ref, b4_ref, o_ref):
    # x: (Bb, 896) f32; weights (Din_pad, Dout_pad) bf16; biases (1, Dout_pad) f32.
    # bf16 operands into the MXU, f32 accumulation, bias+ReLU in f32.
    h = jnp.dot(x_ref[...].astype(jnp.bfloat16), w1_ref[...],
                preferred_element_type=jnp.float32)
    h = jnp.maximum(h + b1_ref[...], 0.0)
    h = jnp.dot(h.astype(jnp.bfloat16), w2_ref[...],
                preferred_element_type=jnp.float32)
    h = jnp.maximum(h + b2_ref[...], 0.0)
    h = jnp.dot(h.astype(jnp.bfloat16), w3_ref[...],
                preferred_element_type=jnp.float32)
    h = jnp.maximum(h + b3_ref[...], 0.0)
    h = jnp.dot(h.astype(jnp.bfloat16), w4_ref[...],
                preferred_element_type=jnp.float32)
    o_ref[...] = (h + b4_ref[...]).astype(o_ref.dtype)


def mlp3_fused_call(x_pad, prepared, block_b):
    """x_pad: (B_pad, 896) f32 with B_pad % block_b == 0; prepared: padded (w, b)."""
    B_pad = x_pad.shape[0]
    nb = B_pad // block_b
    (w1, b1), (w2, b2), (w3, b3), (w4, b4) = prepared

    flops = 2 * B_pad * sum(di * do for di, do in zip(_PAD_IN, _PAD_OUT))
    bytes_accessed = (4 * x_pad.size
                      + sum(w.size * w.dtype.itemsize + b.size * 4
                            for w, b in prepared)
                      + 4 * B_pad * _PAD_OUT[-1])

    def build(single_buffer_weights):
        def resident(shape):
            # Same block index every grid step -> VMEM resident, copied once.
            if single_buffer_weights:
                # Constant block => default double-buffering is wasted VMEM.
                return pl.BlockSpec(shape, lambda i: (0, 0),
                                    pipeline_mode=pl.Buffered(1))
            return pl.BlockSpec(shape, lambda i: (0, 0))

        return pl.pallas_call(
            _mlp3_fused_kernel,
            out_shape=jax.ShapeDtypeStruct((B_pad, _PAD_OUT[-1]), jnp.float32),
            grid_spec=pltpu.PrefetchScalarGridSpec(
                num_scalar_prefetch=0,
                grid=(nb,),
                in_specs=[
                    pl.BlockSpec((block_b, _PAD_IN[0]), lambda i: (i, 0)),
                    resident((_PAD_IN[0], _PAD_OUT[0])), resident((1, _PAD_OUT[0])),
                    resident((_PAD_IN[1], _PAD_OUT[1])), resident((1, _PAD_OUT[1])),
                    resident((_PAD_IN[2], _PAD_OUT[2])), resident((1, _PAD_OUT[2])),
                    resident((_PAD_IN[3], _PAD_OUT[3])), resident((1, _PAD_OUT[3])),
                ],
                out_specs=pl.BlockSpec((block_b, _PAD_OUT[-1]), lambda i: (i, 0)),
            ),
            compiler_params=pltpu.CompilerParams(
                dimension_semantics=("parallel",),
                vmem_limit_bytes=32 * 1024 * 1024,
            ),
            cost_estimate=pl.CostEstimate(
                flops=flops, transcendentals=0, bytes_accessed=bytes_accessed),
        )

    args = (x_pad, w1, b1, w2, b2, w3, b3, w4, b4)
    try:
        return build(True)(*args)
    except Exception:
        # Portability guard: if this jax build does not honor pipeline_mode on
        # the top-level TPU pipeline, fall back to default double buffering
        # (identical semantics, ~1.3 MiB extra VMEM).
        return build(False)(*args)


def init_params(key):
    """Deterministic init mimicking nn.Linear shapes (PyTorch (out, in) layout)."""
    params = []
    for i, (din, dout) in enumerate(_ORIG_DIMS):
        kw, kb, key = jax.random.split(jax.random.fold_in(key, i), 3)
        bound = 1.0 / jnp.sqrt(din)
        w = jax.random.uniform(kw, (dout, din), jnp.float32, -bound, bound)
        b = jax.random.uniform(kb, (dout,), jnp.float32, -bound, bound)
        params.append((w, b))
    return params


def prepare_params(params):
    """One-time transpose + zero-pad + bf16 cast of PyTorch-layout params."""
    prepared = []
    for (w, b), din_p, dout_p in zip(params, _PAD_IN, _PAD_OUT):
        dout, din = w.shape
        w_t = (jnp.zeros((din_p, dout_p), jnp.float32)
               .at[:din, :dout].set(w.T)
               .astype(jnp.bfloat16))                      # MXU-native operand dtype
        b_p = jnp.zeros((1, dout_p), jnp.float32).at[0, :dout].set(b)  # f32 bias add
        prepared.append((w_t, b_p))
    return prepared


def mlp3_forward(x, prepared):
    # x may arrive as e.g. (B, 1, 28, 28); flatten like x.view(-1, 784).
    x = x.reshape(-1, _K_IN).astype(jnp.float32)
    B = x.shape[0]
    if B <= 256:
        # Latency case: single sublane-aligned block; cost is dominated by the
        # one-shot bf16 weight DMA, so no point in more grid steps.
        block_b = max(8, -(-B // 8) * 8)
    elif B <= 1024:
        # >= 2 grid steps so the "parallel" batch axis can shard across the two
        # TensorCores on v7x; 256-row tiles keep VMEM tiny.
        block_b = 256
    else:
        # Large batch: 512-row tiles amortize per-step overhead, still well
        # inside v5e's 16 MiB default scoped VMEM (and the 32 MiB limit above).
        block_b = 512
    B_pad = -(-B // block_b) * block_b
    # Single pad op: batch rows up to a block multiple AND K 784 -> 896 (7*128)
    # so x loads are lane-aligned.  Exact: the extra w1 rows are zero.
    x = jnp.pad(x, ((0, B_pad - B), (0, _PAD_IN[0] - _K_IN)))
    out_pad = mlp3_fused_call(x, prepared, block_b)
    return out_pad[:B, :10]


def mlp3_reference(x, params):
    x = x.reshape(-1, _K_IN).astype(jnp.float32)
    (w1, b1), (w2, b2), (w3, b3), (w4, b4) = params
    h = jnp.maximum(x @ w1.T + b1, 0.0)
    h = jnp.maximum(h @ w2.T + b2, 0.0)
    h = jnp.maximum(h @ w3.T + b3, 0.0)
    return h @ w4.T + b4


if __name__ == "__main__":
    key = jax.random.PRNGKey(0)
    kx, kp = jax.random.split(key)
    params = init_params(kp)
    prepared = prepare_params(params)   # transpose + pad + bf16 cast ONCE

    # Small MNIST-like batch (B=2): single-block latency path.
    x_small = jax.random.normal(kx, (2, 1, 28, 28), jnp.float32)
    out_small = jax.block_until_ready(mlp3_forward(x_small, prepared))
    ref_small = mlp3_reference(x_small, params)
    assert out_small.shape == (2, 10), out_small.shape
    # bf16 matmul operands (f32 accumulation) => looser tolerance vs f32 reference.
    assert jnp.allclose(out_small, ref_small, atol=3e-2, rtol=3e-2), "mismatch (B=2)"

    # Slightly larger batch (B=300): exercises the multi-block "parallel" grid
    # path plus batch/K padding.
    x_med = jax.random.normal(jax.random.fold_in(kx, 1), (300, _K_IN), jnp.float32)
    out_med = jax.block_until_ready(mlp3_forward(x_med, prepared))
    ref_med = mlp3_reference(x_med, params)
    assert out_med.shape == (300, 10), out_med.shape
    assert jnp.allclose(out_med, ref_med, atol=3e-2, rtol=3e-2), "mismatch (B=300)"

    print("KERNEL_OK")
</pallas_src>

<mosaic_0001>
module attributes {stable_mosaic.version = 11 : i64} {
  func.func @_mlp3_fused_kernel(%arg0: i32, %arg1: memref<8x896xf32, #tpu.memory_space<vmem>>, %arg2: memref<896x512xbf16, #tpu.memory_space<vmem>>, %arg3: memref<1x512xf32, #tpu.memory_space<vmem>>, %arg4: memref<512x384xbf16, #tpu.memory_space<vmem>>, %arg5: memref<1x384xf32, #tpu.memory_space<vmem>>, %arg6: memref<384x128xbf16, #tpu.memory_space<vmem>>, %arg7: memref<1x128xf32, #tpu.memory_space<vmem>>, %arg8: memref<128x128xbf16, #tpu.memory_space<vmem>>, %arg9: memref<1x128xf32, #tpu.memory_space<vmem>>, %arg10: memref<8x128xf32, #tpu.memory_space<vmem>>) attributes {dimension_semantics = [#tpu.dimension_semantics<parallel>], iteration_bounds = array<i64: 1>, scalar_prefetch = 0 : i64, scratch_operands = 0 : i64, tpu.core_type = #tpu.core_type<tc>, window_params = [{transform_indices = @transform_0, window_bounds = array<i64: 8, 896>}, {pipeline_mode = #tpu.pipeline_mode<synchronous>, transform_indices = @transform_1, window_bounds = array<i64: 896, 512>}, {pipeline_mode = #tpu.pipeline_mode<synchronous>, transform_indices = @transform_2, window_bounds = array<i64: 1, 512>}, {pipeline_mode = #tpu.pipeline_mode<synchronous>, transform_indices = @transform_3, window_bounds = array<i64: 512, 384>}, {pipeline_mode = #tpu.pipeline_mode<synchronous>, transform_indices = @transform_4, window_bounds = array<i64: 1, 384>}, {pipeline_mode = #tpu.pipeline_mode<synchronous>, transform_indices = @transform_5, window_bounds = array<i64: 384, 128>}, {pipeline_mode = #tpu.pipeline_mode<synchronous>, transform_indices = @transform_6, window_bounds = array<i64: 1, 128>}, {pipeline_mode = #tpu.pipeline_mode<synchronous>, transform_indices = @transform_7, window_bounds = array<i64: 128, 128>}, {pipeline_mode = #tpu.pipeline_mode<synchronous>, transform_indices = @transform_8, window_bounds = array<i64: 1, 128>}, {transform_indices = @transform_9, window_bounds = array<i64: 8, 128>}]} {
    %c0 = arith.constant 0 : index
    %c0_0 = arith.constant 0 : index
    %0 = vector.load %arg1[%c0, %c0_0] : memref<8x896xf32, #tpu.memory_space<vmem>>, vector<8x896xf32>
    %1 = arith.truncf %0 : vector<8x896xf32> to vector<8x896xbf16>
    %c0_1 = arith.constant 0 : index
    %c0_2 = arith.constant 0 : index
    %2 = vector.load %arg2[%c0_1, %c0_2] : memref<896x512xbf16, #tpu.memory_space<vmem>>, vector<896x512xbf16>
    %cst = arith.constant dense<0.000000e+00> : vector<8x512xf32>
    %3 = tpu.matmul %1, %2, %cst {dimension_numbers = #tpu.dot_dimension_numbers<[1], [0], [0], [1], [0, 0, 1, 1], [], []>} : vector<8x896xbf16>, vector<896x512xbf16>, vector<8x512xf32> -> vector<8x512xf32>
    %c0_3 = arith.constant 0 : index
    %c0_4 = arith.constant 0 : index
    %4 = vector.load %arg3[%c0_3, %c0_4] : memref<1x512xf32, #tpu.memory_space<vmem>>, vector<1x512xf32>
    %5 = vector.broadcast %4 : vector<1x512xf32> to vector<8x512xf32>
    %6 = arith.addf %3, %5 : vector<8x512xf32>
    %cst_5 = arith.constant 0.000000e+00 : f32
    %7 = vector.broadcast %cst_5 : f32 to vector<8x512xf32>
    %8 = arith.maximumf %6, %7 : vector<8x512xf32>
    %9 = arith.truncf %8 : vector<8x512xf32> to vector<8x512xbf16>
    %c0_6 = arith.constant 0 : index
    %c0_7 = arith.constant 0 : index
    %10 = vector.load %arg4[%c0_6, %c0_7] : memref<512x384xbf16, #tpu.memory_space<vmem>>, vector<512x384xbf16>
    %cst_8 = arith.constant dense<0.000000e+00> : vector<8x384xf32>
    %11 = tpu.matmul %9, %10, %cst_8 {dimension_numbers = #tpu.dot_dimension_numbers<[1], [0], [0], [1], [0, 0, 1, 1], [], []>} : vector<8x512xbf16>, vector<512x384xbf16>, vector<8x384xf32> -> vector<8x384xf32>
    %c0_9 = arith.constant 0 : index
    %c0_10 = arith.constant 0 : index
    %12 = vector.load %arg5[%c0_9, %c0_10] : memref<1x384xf32, #tpu.memory_space<vmem>>, vector<1x384xf32>
    %13 = vector.broadcast %12 : vector<1x384xf32> to vector<8x384xf32>
    %14 = arith.addf %11, %13 : vector<8x384xf32>
    %cst_11 = arith.constant 0.000000e+00 : f32
    %15 = vector.broadcast %cst_11 : f32 to vector<8x384xf32>
    %16 = arith.maximumf %14, %15 : vector<8x384xf32>
    %17 = arith.truncf %16 : vector<8x384xf32> to vector<8x384xbf16>
    %c0_12 = arith.constant 0 : index
    %c0_13 = arith.constant 0 : index
    %18 = vector.load %arg6[%c0_12, %c0_13] : memref<384x128xbf16, #tpu.memory_space<vmem>>, vector<384x128xbf16>
    %cst_14 = arith.constant dense<0.000000e+00> : vector<8x128xf32>
    %19 = tpu.matmul %17, %18, %cst_14 {dimension_numbers = #tpu.dot_dimension_numbers<[1], [0], [0], [1], [0, 0, 1, 1], [], []>} : vector<8x384xbf16>, vector<384x128xbf16>, vector<8x128xf32> -> vector<8x128xf32>
    %c0_15 = arith.constant 0 : index
    %c0_16 = arith.constant 0 : index
    %20 = vector.load %arg7[%c0_15, %c0_16] : memref<1x128xf32, #tpu.memory_space<vmem>>, vector<1x128xf32>
    %21 = vector.broadcast %20 : vector<1x128xf32> to vector<8x128xf32>
    %22 = arith.addf %19, %21 : vector<8x128xf32>
    %cst_17 = arith.constant 0.000000e+00 : f32
    %23 = vector.broadcast %cst_17 : f32 to vector<8x128xf32>
    %24 = arith.maximumf %22, %23 : vector<8x128xf32>
    %25 = arith.truncf %24 : vector<8x128xf32> to vector<8x128xbf16>
    %c0_18 = arith.constant 0 : index
    %c0_19 = arith.constant 0 : index
    %26 = vector.load %arg8[%c0_18, %c0_19] : memref<128x128xbf16, #tpu.memory_space<vmem>>, vector<128x128xbf16>
    %cst_20 = arith.constant dense<0.000000e+00> : vector<8x128xf32>
    %27 = tpu.matmul %25, %26, %cst_20 {dimension_numbers = #tpu.dot_dimension_numbers<[1], [0], [0], [1], [0, 0, 1, 1], [], []>} : vector<8x128xbf16>, vector<128x128xbf16>, vector<8x128xf32> -> vector<8x128xf32>
    %c0_21 = arith.constant 0 : index
    %c0_22 = arith.constant 0 : index
    %28 = vector.load %arg9[%c0_21, %c0_22] : memref<1x128xf32, #tpu.memory_space<vmem>>, vector<1x128xf32>
    %29 = vector.broadcast %28 : vector<1x128xf32> to vector<8x128xf32>
    %30 = arith.addf %27, %29 : vector<8x128xf32>
    %c0_23 = arith.constant 0 : index
    %c0_24 = arith.constant 0 : index
    %31 = vector.load %arg10[%c0_23, %c0_24] : memref<8x128xf32, #tpu.memory_space<vmem>>, vector<8x128xf32>
    tpu.vector_store %arg10[%c0_23, %c0_24], %30 {strides = array<i32>} : memref<8x128xf32, #tpu.memory_space<vmem>>, vector<8x128xf32>,
    return
  }
  func.func @transform_0(%arg0: i32) -> (i32, i32) {
    %c0_i32 = arith.constant 0 : i32
    %c0_i32_0 = arith.constant 0 : i32
    return %arg0, %c0_i32 : i32, i32
  }
  func.func @transform_1(%arg0: i32) -> (i32, i32) {
    %c0_i32 = arith.constant 0 : i32
    %c0_i32_0 = arith.constant 0 : i32
    %c0_i32_1 = arith.constant 0 : i32
    return %c0_i32, %c0_i32_0 : i32, i32
  }
  func.func @transform_2(%arg0: i32) -> (i32, i32) {
    %c0_i32 = arith.constant 0 : i32
    %c0_i32_0 = arith.constant 0 : i32
    %c0_i32_1 = arith.constant 0 : i32
    return %c0_i32, %c0_i32_0 : i32, i32
  }
  func.func @transform_3(%arg0: i32) -> (i32, i32) {
    %c0_i32 = arith.constant 0 : i32
    %c0_i32_0 = arith.constant 0 : i32
    %c0_i32_1 = arith.constant 0 : i32
    return %c0_i32, %c0_i32_0 : i32, i32
  }
  func.func @transform_4(%arg0: i32) -> (i32, i32) {
    %c0_i32 = arith.constant 0 : i32
    %c0_i32_0 = arith.constant 0 : i32
    %c0_i32_1 = arith.constant 0 : i32
    return %c0_i32, %c0_i32_0 : i32, i32
  }
  func.func @transform_5(%arg0: i32) -> (i32, i32) {
    %c0_i32 = arith.constant 0 : i32
    %c0_i32_0 = arith.constant 0 : i32
    %c0_i32_1 = arith.constant 0 : i32
    return %c0_i32, %c0_i32_0 : i32, i32
  }
  func.func @transform_6(%arg0: i32) -> (i32, i32) {
    %c0_i32 = arith.constant 0 : i32
    %c0_i32_0 = arith.constant 0 : i32
    %c0_i32_1 = arith.constant 0 : i32
    return %c0_i32, %c0_i32_0 : i32, i32
  }
  func.func @transform_7(%arg0: i32) -> (i32, i32) {
    %c0_i32 = arith.constant 0 : i32
    %c0_i32_0 = arith.constant 0 : i32
    %c0_i32_1 = arith.constant 0 : i32
    return %c0_i32, %c0_i32_0 : i32, i32
  }
  func.func @transform_8(%arg0: i32) -> (i32, i32) {
    %c0_i32 = arith.constant 0 : i32
    %c0_i32_0 = arith.constant 0 : i32
    %c0_i32_1 = arith.constant 0 : i32
    return %c0_i32, %c0_i32_0 : i32, i32
  }
  func.func @transform_9(%arg0: i32) -> (i32, i32) {
    %c0_i32 = arith.constant 0 : i32
    %c0_i32_0 = arith.constant 0 : i32
    return %arg0, %c0_i32 : i32, i32
  }
}

module attributes {stable_mosaic.version = 11 : i64} {
  func.func @_mlp3_fused_kernel(%arg0: i32, %arg1: memref<8x896xf32, #tpu.memory_space<vmem>>, %arg2: memref<896x512xbf16, #tpu.memory_space<vmem>>, %arg3: memref<1x512xf32, #tpu.memory_space<vmem>>, %arg4: memref<512x384xbf16, #tpu.memory_space<vmem>>, %arg5: memref<1x384xf32, #tpu.memory_space<vmem>>, %arg6: memref<384x128xbf16, #tpu.memory_space<vmem>>, %arg7: memref<1x128xf32, #tpu.memory_space<vmem>>, %arg8: memref<128x128xbf16, #tpu.memory_space<vmem>>, %arg9: memref<1x128xf32, #tpu.memory_space<vmem>>, %arg10: memref<8x128xf32, #tpu.memory_space<vmem>>) attributes {dimension_semantics = [#tpu.dimension_semantics<parallel>], iteration_bounds = array<i64: 1>, scalar_prefetch = 0 : i64, scratch_operands = 0 : i64, tpu.core_type = #tpu.core_type<tc>, window_params = [{transform_indices = @transform_0, window_bounds = array<i64: 8, 896>}, {pipeline_mode = #tpu.pipeline_mode<synchronous>, transform_indices = @transform_1, window_bounds = array<i64: 896, 512>}, {pipeline_mode = #tpu.pipeline_mode<synchronous>, transform_indices = @transform_2, window_bounds = array<i64: 1, 512>}, {pipeline_mode = #tpu.pipeline_mode<synchronous>, transform_indices = @transform_3, window_bounds = array<i64: 512, 384>}, {pipeline_mode = #tpu.pipeline_mode<synchronous>, transform_indices = @transform_4, window_bounds = array<i64: 1, 384>}, {pipeline_mode = #tpu.pipeline_mode<synchronous>, transform_indices = @transform_5, window_bounds = array<i64: 384, 128>}, {pipeline_mode = #tpu.pipeline_mode<synchronous>, transform_indices = @transform_6, window_bounds = array<i64: 1, 128>}, {pipeline_mode = #tpu.pipeline_mode<synchronous>, transform_indices = @transform_7, window_bounds = array<i64: 128, 128>}, {pipeline_mode = #tpu.pipeline_mode<synchronous>, transform_indices = @transform_8, window_bounds = array<i64: 1, 128>}, {transform_indices = @transform_9, window_bounds = array<i64: 8, 128>}]} {
    %c0 = arith.constant 0 : index
    %c0_0 = arith.constant 0 : index
    %0 = vector.load %arg1[%c0, %c0_0] : memref<8x896xf32, #tpu.memory_space<vmem>>, vector<8x896xf32>
    %1 = arith.truncf %0 : vector<8x896xf32> to vector<8x896xbf16>
    %c0_1 = arith.constant 0 : index
    %c0_2 = arith.constant 0 : index
    %2 = vector.load %arg2[%c0_1, %c0_2] : memref<896x512xbf16, #tpu.memory_space<vmem>>, vector<896x512xbf16>
    %cst = arith.constant dense<0.000000e+00> : vector<8x512xf32>
    %3 = tpu.matmul %1, %2, %cst {dimension_numbers = #tpu.dot_dimension_numbers<[1], [0], [0], [1], [0, 0, 1, 1], [], []>} : vector<8x896xbf16>, vector<896x512xbf16>, vector<8x512xf32> -> vector<8x512xf32>
    %c0_3 = arith.constant 0 : index
    %c0_4 = arith.constant 0 : index
    %4 = vector.load %arg3[%c0_3, %c0_4] : memref<1x512xf32, #tpu.memory_space<vmem>>, vector<1x512xf32>
    %5 = vector.broadcast %4 : vector<1x512xf32> to vector<8x512xf32>
    %6 = arith.addf %3, %5 : vector<8x512xf32>
    %cst_5 = arith.constant 0.000000e+00 : f32
    %7 = vector.broadcast %cst_5 : f32 to vector<8x512xf32>
    %8 = arith.maximumf %6, %7 : vector<8x512xf32>
    %9 = arith.truncf %8 : vector<8x512xf32> to vector<8x512xbf16>
    %c0_6 = arith.constant 0 : index
    %c0_7 = arith.constant 0 : index
    %10 = vector.load %arg4[%c0_6, %c0_7] : memref<512x384xbf16, #tpu.memory_space<vmem>>, vector<512x384xbf16>
    %cst_8 = arith.constant dense<0.000000e+00> : vector<8x384xf32>
    %11 = tpu.matmul %9, %10, %cst_8 {dimension_numbers = #tpu.dot_dimension_numbers<[1], [0], [0], [1], [0, 0, 1, 1], [], []>} : vector<8x512xbf16>, vector<512x384xbf16>, vector<8x384xf32> -> vector<8x384xf32>
    %c0_9 = arith.constant 0 : index
    %c0_10 = arith.constant 0 : index
    %12 = vector.load %arg5[%c0_9, %c0_10] : memref<1x384xf32, #tpu.memory_space<vmem>>, vector<1x384xf32>
    %13 = vector.broadcast %12 : vector<1x384xf32> to vector<8x384xf32>
    %14 = arith.addf %11, %13 : vector<8x384xf32>
    %cst_11 = arith.constant 0.000000e+00 : f32
    %15 = vector.broadcast %cst_11 : f32 to vector<8x384xf32>
    %16 = arith.maximumf %14, %15 : vector<8x384xf32>
    %17 = arith.truncf %16 : vector<8x384xf32> to vector<8x384xbf16>
    %c0_12 = arith.constant 0 : index
    %c0_13 = arith.constant 0 : index
    %18 = vector.load %arg6[%c0_12, %c0_13] : memref<384x128xbf16, #tpu.memory_space<vmem>>, vector<384x128xbf16>
    %cst_14 = arith.constant dense<0.000000e+00> : vector<8x128xf32>
    %19 = tpu.matmul %17, %18, %cst_14 {dimension_numbers = #tpu.dot_dimension_numbers<[1], [0], [0], [1], [0, 0, 1, 1], [], []>} : vector<8x384xbf16>, vector<384x128xbf16>, vector<8x128xf32> -> vector<8x128xf32>
    %c0_15 = arith.constant 0 : index
    %c0_16 = arith.constant 0 : index
    %20 = vector.load %arg7[%c0_15, %c0_16] : memref<1x128xf32, #tpu.memory_space<vmem>>, vector<1x128xf32>
    %21 = vector.broadcast %20 : vector<1x128xf32> to vector<8x128xf32>
    %22 = arith.addf %19, %21 : vector<8x128xf32>
    %cst_17 = arith.constant 0.000000e+00 : f32
    %23 = vector.broadcast %cst_17 : f32 to vector<8x128xf32>
    %24 = arith.maximumf %22, %23 : vector<8x128xf32>
    %25 = arith.truncf %24 : vector<8x128xf32> to vector<8x128xbf16>
    %c0_18 = arith.constant 0 : index
    %c0_19 = arith.constant 0 : index
    %26 = vector.load %arg8[%c0_18, %c0_19] : memref<128x128xbf16, #tpu.memory_space<vmem>>, vector<128x128xbf16>
    %cst_20 = arith.constant dense<0.000000e+00> : vector<8x128xf32>
    %27 = tpu.matmul %25, %26, %cst_20 {dimension_numbers = #tpu.dot_dimension_numbers<[1], [0], [0], [1], [0, 0, 1, 1], [], []>} : vector<8x128xbf16>, vector<128x128xbf16>, vector<8x128xf32> -> vector<8x128xf32>
    %c0_21 = arith.constant 0 : index
    %c0_22 = arith.constant 0 : index
    %28 = vector.load %arg9[%c0_21, %c0_22] : memref<1x128xf32, #tpu.memory_space<vmem>>, vector<1x128xf32>
    %29 = vector.broadcast %28 : vector<1x128xf32> to vector<8x128xf32>
    %30 = arith.addf %27, %29 : vector<8x128xf32>
    %c0_23 = arith.constant 0 : index
    %c0_24 = arith.constant 0 : index
    %31 = vector.load %arg10[%c0_23, %c0_24] : memref<8x128xf32, #tpu.memory_space<vmem>>, vector<8x128xf32>
    tpu.vector_store %arg10[%c0_23, %c0_24], %30 {strides = array<i32>} : memref<8x128xf32, #tpu.memory_space<vmem>>, vector<8x128xf32>,
    return
  }
  func.func @transform_0(%arg0: i32) -> (i32, i32) {
    %c0_i32 = arith.constant 0 : i32
    %c0_i32_0 = arith.constant 0 : i32
    return %arg0, %c0_i32 : i32, i32
  }
  func.func @transform_1(%arg0: i32) -> (i32, i32) {
    %c0_i32 = arith.constant 0 : i32
    %c0_i32_0 = arith.constant 0 : i32
    %c0_i32_1 = arith.constant 0 : i32
    return %c0_i32, %c0_i32_0 : i32, i32
  }
  func.func @transform_2(%arg0: i32) -> (i32, i32) {
    %c0_i32 = arith.constant 0 : i32
    %c0_i32_0 = arith.constant 0 : i32
    %c0_i32_1 = arith.constant 0 : i32
    return %c0_i32, %c0_i32_0 : i32, i32
  }
  func.func @transform_3(%arg0: i32) -> (i32, i32) {
    %c0_i32 = arith.constant 0 : i32
    %c0_i32_0 = arith.constant 0 : i32
    %c0_i32_1 = arith.constant 0 : i32
    return %c0_i32, %c0_i32_0 : i32, i32
  }
  func.func @transform_4(%arg0: i32) -> (i32, i32) {
    %c0_i32 = arith.constant 0 : i32
    %c0_i32_0 = arith.constant 0 : i32
    %c0_i32_1 = arith.constant 0 : i32
    return %c0_i32, %c0_i32_0 : i32, i32
  }
  func.func @transform_5(%arg0: i32) -> (i32, i32) {
    %c0_i32 = arith.constant 0 : i32
    %c0_i32_0 = arith.constant 0 : i32
    %c0_i32_1 = arith.constant 0 : i32
    return %c0_i32, %c0_i32_0 : i32, i32
  }
  func.func @transform_6(%arg0: i32) -> (i32, i32) {
    %c0_i32 = arith.constant 0 : i32
    %c0_i32_0 = arith.constant 0 : i32
    %c0_i32_1 = arith.constant 0 : i32
    return %c0_i32, %c0_i32_0 : i32, i32
  }
  func.func @transform_7(%arg0: i32) -> (i32, i32) {
    %c0_i32 = arith.constant 0 : i32
    %c0_i32_0 = arith.constant 0 : i32
    %c0_i32_1 = arith.constant 0 : i32
    return %c0_i32, %c0_i32_0 : i32, i32
  }
  func.func @transform_8(%arg0: i32) -> (i32, i32) {
    %c0_i32 = arith.constant 0 : i32
    %c0_i32_0 = arith.constant 0 : i32
    %c0_i32_1 = arith.constant 0 : i32
    return %c0_i32, %c0_i32_0 : i32, i32
  }
  func.func @transform_9(%arg0: i32) -> (i32, i32) {
    %c0_i32 = arith.constant 0 : i32
    %c0_i32_0 = arith.constant 0 : i32
    return %arg0, %c0_i32 : i32, i32
  }
}

</mosaic_0001>

<llo_original>
// kernel: tpu_custom_call.1
$region0: #{tpu_custom_call.1}
  #allocation0 [shape = 'u32[]', space=smem, size = 0x4, offset = 0x4, fixed_abs, tag = 'smem constant byte address 0x4 - core index']
  #allocation1 [shape = 'u32[144,128]{1,0:T(1,128)}', space=vmem, size = 0x12000, scoped, tag = 'internal scratch']
  %s0 = inlined_call_operand.hbm [shape: f32[8,896], index: 0, kind: input, shape index: {}]
  %s1 = inlined_call_operand.hbm [shape: bf16[896,512], index: 1, kind: input, shape index: {}]
  %s2 = inlined_call_operand.hbm [shape: f32[1,512], index: 2, kind: input, shape index: {}]
  %s3 = inlined_call_operand.hbm [shape: bf16[512,384], index: 3, kind: input, shape index: {}]
  %s4 = inlined_call_operand.vmem [shape: f32[1,384], index: 4, kind: input, shape index: {}]
  %s5 = inlined_call_operand.hbm [shape: bf16[384,128], index: 5, kind: input, shape index: {}]
  %s6 = inlined_call_operand.vmem [shape: f32[1,128], index: 6, kind: input, shape index: {}]
  %s7 = inlined_call_operand.hbm [shape: bf16[128,128], index: 7, kind: input, shape index: {}]
  %s8 = inlined_call_operand.vmem [shape: f32[1,128], index: 8, kind: input, shape index: {}]
  %s9 = inlined_call_operand.hbm [shape: f32[8,128], index: 9, kind: output, shape index: {}]
  %s10 = sld [smem:[#allocation0]]
  $region70: #{tpu_custom_call.1} parent=0
    _
  %s12 = ssub.s32 1, %s10
  %s13 = scalar_select 0, %s12, %s10
  $region1: #{tpu_custom_call.1} parent=0
    #allocation2 [shape = 'u8[28672]{0}', space=vmem, size = 0x7000, scoped, tag = 'input window, operand 0, single buffered']
    #allocation3 [shape = 's32[1]{0}', space=sflag, size = 0x4, scoped, tag = 'scoped memory for tpu_custom_call.1']
    #allocation4 [shape = 's32[1]{0}', space=sflag, size = 0x4, scoped, tag = 'scoped memory for tpu_custom_call.1']
    #allocation5 [shape = 'u8[917504]{0}', space=vmem, size = 0xe0000, scoped, tag = 'input window, operand 1, single buffered']
    #allocation6 [shape = 's32[1]{0}', space=sflag, size = 0x4, scoped, tag = 'scoped memory for tpu_custom_call.1']
    #allocation7 [shape = 'u8[2048]{0}', space=vmem, size = 0x800, scoped, tag = 'input window, operand 2, single buffered']
    #allocation8 [shape = 'u8[393216]{0}', space=vmem, size = 0x60000, scoped, tag = 'input window, operand 3, single buffered']
    #allocation9 [shape = 's32[1]{0}', space=sflag, size = 0x4, scoped, tag = 'scoped memory for tpu_custom_call.1']
    #allocation10 [shape = 'u8[98304]{0}', space=vmem, size = 0x18000, scoped, tag = 'input window, operand 5, single buffered']
    #allocation11 [shape = 'u8[32768]{0}', space=vmem, size = 0x8000, scoped, tag = 'input window, operand 7, single buffered']
    #allocation12 [shape = 's32[1]{0}', space=sflag, size = 0x4, scoped, tag = 'scoped memory for tpu_custom_call.1']
    #allocation13 [shape = 'u8[4096]{0}', space=vmem, size = 0x1000, scoped, tag = 'output window, operand 0, single buffered']
    %14 = vsyncpa [#allocation3], 0
    %15 = vsyncpa [#allocation6], 0
    %16 = vsyncpa [#allocation9], 0
    %17 = vsyncpa [#allocation12], 0
    %18 = vsyncpa [#allocation4], 0
    // Predicated region
    $region2: #{tpu_custom_call.1} parent=1 // pred_check
      _
    $region3: #{tpu_custom_call.1} parent=1 // pred_check_branch
      %20 = sbr.rel (0) target = $region5
    $region4: #{tpu_custom_call.1} parent=1 // pred_region
      %s22 = ssub.s32 896, 896
      %23 = vsyncadd [#allocation3], %s22
      %s25 = sshll.u32 [#allocation2], 4
      %s26 = int_to_ptr.vmem [resolvable:$true] %s25
      %28 = dma.hbm_to_vmem [thread:$0]  %s0, 896, %s26, [#allocation3]
    $region5: #{tpu_custom_call.1} parent=1 // pred_fallthru
      _
    // Predicated region
    $region6: #{tpu_custom_call.1} parent=1 // pred_check
      _
    $region7: #{tpu_custom_call.1} parent=1 // pred_check_branch
      %30 = sbr.rel (0) target = $region9
    $region8: #{tpu_custom_call.1} parent=1 // pred_region
      %s32 = ssub.s32 28672, 28672
      %33 = vsyncadd [#allocation6], %s32
      %s34 = sshll.u32 [#allocation5], 4
      %s35 = int_to_ptr.vmem [resolvable:$true] %s34
      %40 = dma.hbm_to_vmem [thread:$0]  %s1, 28672, %s35, [#allocation6], 256, 256, 16
    $region9: #{tpu_custom_call.1} parent=1 // pred_fallthru
      _
    // Predicated region
    $region10: #{tpu_custom_call.1} parent=1 // pred_check
      _
    $region11: #{tpu_custom_call.1} parent=1 // pred_check_branch
      %42 = sbr.rel (0) target = $region13
    $region12: #{tpu_custom_call.1} parent=1 // pred_region
      %s44 = ssub.s32 64, 64
      %45 = vsyncadd [#allocation6], %s44
      %s47 = sshll.u32 [#allocation7], 4
      %s48 = int_to_ptr.vmem [resolvable:$true] %s47
      %50 = dma.hbm_to_vmem [thread:$0]  %s2, 64, %s48, [#allocation6]
    $region13: #{tpu_custom_call.1} parent=1 // pred_fallthru
      _
    // Predicated region
    $region14: #{tpu_custom_call.1} parent=1 // pred_check
      _
    $region15: #{tpu_custom_call.1} parent=1 // pred_check_branch
      %52 = sbr.rel (0) target = $region17
    $region16: #{tpu_custom_call.1} parent=1 // pred_region
      %s54 = ssub.s32 12288, 12288
      %55 = vsyncadd [#allocation9], %s54
      %s56 = sshll.u32 [#allocation8], 4
      %s57 = int_to_ptr.vmem [resolvable:$true] %s56
      %62 = dma.hbm_to_vmem [thread:$0]  %s3, 12288, %s57, [#allocation9], 192, 192, 12
    $region17: #{tpu_custom_call.1} parent=1 // pred_fallthru
      _
    // Predicated region
    $region18: #{tpu_custom_call.1} parent=1 // pred_check
      _
    $region19: #{tpu_custom_call.1} parent=1 // pred_check_branch
      %64 = sbr.rel (0) target = $region21
    $region20: #{tpu_custom_call.1} parent=1 // pred_region
      _
    $region21: #{tpu_custom_call.1} parent=1 // pred_fallthru
      _
    // Predicated region
    $region22: #{tpu_custom_call.1} parent=1 // pred_check
      _
    $region23: #{tpu_custom_call.1} parent=1 // pred_check_branch
      %66 = sbr.rel (0) target = $region25
    $region24: #{tpu_custom_call.1} parent=1 // pred_region
      %s68 = ssub.s32 3072, 3072
      %69 = vsyncadd [#allocation9], %s68
      %s70 = sshll.u32 [#allocation10], 4
      %s71 = int_to_ptr.vmem [resolvable:$true] %s70
      %76 = dma.hbm_to_vmem [thread:$0]  %s5, 3072, %s71, [#allocation9], 64, 64, 4
    $region25: #{tpu_custom_call.1} parent=1 // pred_fallthru
      _
    // Predicated region
    $region26: #{tpu_custom_call.1} parent=1 // pred_check
      _
    $region27: #{tpu_custom_call.1} parent=1 // pred_check_branch
      %78 = sbr.rel (0) target = $region29
    $region28: #{tpu_custom_call.1} parent=1 // pred_region
      _
    $region29: #{tpu_custom_call.1} parent=1 // pred_fallthru
      _
    // Predicated region
    $region30: #{tpu_custom_call.1} parent=1 // pred_check
      _
    $region31: #{tpu_custom_call.1} parent=1 // pred_check_branch
      %80 = sbr.rel (0) target = $region33
    $region32: #{tpu_custom_call.1} parent=1 // pred_region
      %s82 = ssub.s32 1024, 1024
      %83 = vsyncadd [#allocation12], %s82
      %s84 = sshll.u32 [#allocation11], 4
      %s85 = int_to_ptr.vmem [resolvable:$true] %s84
      %90 = dma.hbm_to_vmem [thread:$0]  %s7, 1024, %s85, [#allocation12], 64, 64, 4
    $region33: #{tpu_custom_call.1} parent=1 // pred_fallthru
      _
    // Predicated region
    $region34: #{tpu_custom_call.1} parent=1 // pred_check
      _
    $region35: #{tpu_custom_call.1} parent=1 // pred_check_branch
      %92 = sbr.rel (0) target = $region37
    $region36: #{tpu_custom_call.1} parent=1 // pred_region
      _
    $region37: #{tpu_custom_call.1} parent=1 // pred_fallthru
      _
    // Predicated region
    $region38: #{tpu_custom_call.1} parent=1 // pred_check
      _
    $region39: #{tpu_custom_call.1} parent=1 // pred_check_branch
      %94 = sbr.rel (0) target = $region41
    $region40: #{tpu_custom_call.1} parent=1 // pred_region
      %95 = dma.done [#allocation3], 896
    $region41: #{tpu_custom_call.1} parent=1 // pred_fallthru
      _
    // Predicated region
    $region42: #{tpu_custom_call.1} parent=1 // pred_check
      _
    $region43: #{tpu_custom_call.1} parent=1 // pred_check_branch
      %97 = sbr.rel (0) target = $region45
    $region44: #{tpu_custom_call.1} parent=1 // pred_region
      %98 = dma.done [#allocation6], 28672
    $region45: #{tpu_custom_call.1} parent=1 // pred_fallthru
      _
    // Predicated region
    $region46: #{tpu_custom_call.1} parent=1 // pred_check
      _
    $region47: #{tpu_custom_call.1} parent=1 // pred_check_branch
      %100 = sbr.rel (0) target = $region49
    $region48: #{tpu_custom_call.1} parent=1 // pred_region
      %101 = dma.done [#allocation6], 64
    $region49: #{tpu_custom_call.1} parent=1 // pred_fallthru
      _
    // Predicated region
    $region50: #{tpu_custom_call.1} parent=1 // pred_check
      _
    $region51: #{tpu_custom_call.1} parent=1 // pred_check_branch
      %103 = sbr.rel (0) target = $region53
    $region52: #{tpu_custom_call.1} parent=1 // pred_region
      %104 = dma.done [#allocation9], 12288
    $region53: #{tpu_custom_call.1} parent=1 // pred_fallthru
      _
    // Predicated region
    $region54: #{tpu_custom_call.1} parent=1 // pred_check
      _
    $region55: #{tpu_custom_call.1} parent=1 // pred_check_branch
      %106 = sbr.rel (0) target = $region57
    $region56: #{tpu_custom_call.1} parent=1 // pred_region
      %107 = dma.done [#allocation9], 3072
    $region57: #{tpu_custom_call.1} parent=1 // pred_fallthru
      _
    // Predicated region
    $region58: #{tpu_custom_call.1} parent=1 // pred_check
      _
    $region59: #{tpu_custom_call.1} parent=1 // pred_check_branch
      %109 = sbr.rel (0) target = $region61
    $region60: #{tpu_custom_call.1} parent=1 // pred_region
      %110 = dma.done [#allocation12], 1024
    $region61: #{tpu_custom_call.1} parent=1 // pred_fallthru
      _
    %v112 = vld [vmem:[#allocation2] sm:$0xff]
    %v113 = vld [vmem:[#allocation2 + $0x8] sm:$0xff]
    %v114 = vld [vmem:[#allocation2 + $0x10] sm:$0xff]
    %v115 = vld [vmem:[#allocation2 + $0x18] sm:$0xff]
    %v116 = vld [vmem:[#allocation2 + $0x20] sm:$0xff]
    %v117 = vld [vmem:[#allocation2 + $0x28] sm:$0xff]
    %v118 = vld [vmem:[#allocation2 + $0x30] sm:$0xff]
    %v119 = vpack.c.bf16 %v112, %v112
    %v120 = vpack.c.bf16 %v113, %v113
    %v121 = vpack.c.bf16 %v114, %v114
    %v122 = vpack.c.bf16 %v115, %v115
    %v123 = vpack.c.bf16 %v116, %v116
    %v124 = vpack.c.bf16 %v117, %v117
    %v125 = vpack.c.bf16 %v118, %v118
    %v126 = vld [vmem:[#allocation5] sm:$0xff]
    %v127 = vld [vmem:[#allocation5 + $0x8] sm:$0xff]
    %v128 = vld [vmem:[#allocation5 + $0x10] sm:$0xff]
    %v129 = vld [vmem:[#allocation5 + $0x18] sm:$0xff]
    %v130 = vld [vmem:[#allocation5 + $0x20] sm:$0xff]
    %v131 = vld [vmem:[#allocation5 + $0x28] sm:$0xff]
    %v132 = vld [vmem:[#allocation5 + $0x30] sm:$0xff]
    %v133 = vld [vmem:[#allocation5 + $0x38] sm:$0xff]
    %v134 = vld [vmem:[#allocation5 + $0x40] sm:$0xff]
    %v135 = vld [vmem:[#allocation5 + $0x48] sm:$0xff]
    %v136 = vld [vmem:[#allocation5 + $0x50] sm:$0xff]
    %v137 = vld [vmem:[#allocation5 + $0x58] sm:$0xff]
    %v138 = vld [vmem:[#allocation5 + $0x60] sm:$0xff]
    %v139 = vld [vmem:[#allocation5 + $0x68] sm:$0xff]
    %v140 = vld [vmem:[#allocation5 + $0x70] sm:$0xff]
    %v141 = vld [vmem:[#allocation5 + $0x78] sm:$0xff]
    %v142 = vld [vmem:[#allocation5 + $0x80] sm:$0xff]
    %v143 = vld [vmem:[#allocation5 + $0x88] sm:$0xff]
    %v144 = vld [vmem:[#allocation5 + $0x90] sm:$0xff]
    %v145 = vld [vmem:[#allocation5 + $0x98] sm:$0xff]
    %v146 = vld [vmem:[#allocation5 + $0xa0] sm:$0xff]
    %v147 = vld [vmem:[#allocation5 + $0xa8] sm:$0xff]
    %v148 = vld [vmem:[#allocation5 + $0xb0] sm:$0xff]
    %v149 = vld [vmem:[#allocation5 + $0xb8] sm:$0xff]
    %v150 = vld [vmem:[#allocation5 + $0xc0] sm:$0xff]
    %v151 = vld [vmem:[#allocation5 + $0xc8] sm:$0xff]
    %v152 = vld [vmem:[#allocation5 + $0xd0] sm:$0xff]
    %v153 = vld [vmem:[#allocation5 + $0xd8] sm:$0xff]
    %v154 = vld [vmem:[#allocation5 + $0xe0] sm:$0xff]
    %v155 = vld [vmem:[#allocation5 + $0xe8] sm:$0xff]
    %v156 = vld [vmem:[#allocation5 + $0xf0] sm:$0xff]
    %v157 = vld [vmem:[#allocation5 + $0xf8] sm:$0xff]
    %v158 = vld [vmem:[#allocation5 + $0x100] sm:$0xff]
    %v159 = vld [vmem:[#allocation5 + $0x108] sm:$0xff]
    %v160 = vld [vmem:[#allocation5 + $0x110] sm:$0xff]
    %v161 = vld [vmem:[#allocation5 + $0x118] sm:$0xff]
    %v162 = vld [vmem:[#allocation5 + $0x120] sm:$0xff]
    %v163 = vld [vmem:[#allocation5 + $0x128] sm:$0xff]
    %v164 = vld [vmem:[#allocation5 + $0x130] sm:$0xff]
    %v165 = vld [vmem:[#allocation5 + $0x138] sm:$0xff]
    %v166 = vld [vmem:[#allocation5 + $0x140] sm:$0xff]
    %v167 = vld [vmem:[#allocation5 + $0x148] sm:$0xff]
    %v168 = vld [vmem:[#allocation5 + $0x150] sm:$0xff]
    %v169 = vld [vmem:[#allocation5 + $0x158] sm:$0xff]
    %v170 = vld [vmem:[#allocation5 + $0x160] sm:$0xff]
    %v171 = vld [vmem:[#allocation5 + $0x168] sm:$0xff]
    %v172 = vld [vmem:[#allocation5 + $0x170] sm:$0xff]
    %v173 = vld [vmem:[#allocation5 + $0x178] sm:$0xff]
    %v174 = vld [vmem:[#allocation5 + $0x180] sm:$0xff]
    %v175 = vld [vmem:[#allocation5 + $0x188] sm:$0xff]
    %v176 = vld [vmem:[#allocation5 + $0x190] sm:$0xff]
    %v177 = vld [vmem:[#allocation5 + $0x198] sm:$0xff]
    %v178 = vld [vmem:[#allocation5 + $0x1a0] sm:$0xff]
    %v179 = vld [vmem:[#allocation5 + $0x1a8] sm:$0xff]
    %v180 = vld [vmem:[#allocation5 + $0x1b0] sm:$0xff]
    %v181 = vld [vmem:[#allocation5 + $0x1b8] sm:$0xff]
    %v182 = vld [vmem:[#allocation5 + $0x1c0] sm:$0xff]
    %v183 = vld [vmem:[#allocation5 + $0x1c8] sm:$0xff]
    %v184 = vld [vmem:[#allocation5 + $0x1d0] sm:$0xff]
    %v185 = vld [vmem:[#allocation5 + $0x1d8] sm:$0xff]
    %v186 = vld [vmem:[#allocation5 + $0x1e0] sm:$0xff]
    %v187 = vld [vmem:[#allocation5 + $0x1e8] sm:$0xff]
    %v188 = vld [vmem:[#allocation5 + $0x1f0] sm:$0xff]
    %v189 = vld [vmem:[#allocation5 + $0x1f8] sm:$0xff]
    %v190 = vld [vmem:[#allocation5 + $0x200] sm:$0xff]
    %v191 = vld [vmem:[#allocation5 + $0x208] sm:$0xff]
    %v192 = vld [vmem:[#allocation5 + $0x210] sm:$0xff]
    %v193 = vld [vmem:[#allocation5 + $0x218] sm:$0xff]
    %v194 = vld [vmem:[#allocation5 + $0x220] sm:$0xff]
    %v195 = vld [vmem:[#allocation5 + $0x228] sm:$0xff]
    %v196 = vld [vmem:[#allocation5 + $0x230] sm:$0xff]
    %v197 = vld [vmem:[#allocation5 + $0x238] sm:$0xff]
    %v198 = vld [vmem:[#allocation5 + $0x240] sm:$0xff]
    %v199 = vld [vmem:[#allocation5 + $0x248] sm:$0xff]
    %v200 = vld [vmem:[#allocation5 + $0x250] sm:$0xff]
    %v201 = vld [vmem:[#allocation5 + $0x258] sm:$0xff]
    %v202 = vld [vmem:[#allocation5 + $0x260] sm:$0xff]
    %v203 = vld [vmem:[#allocation5 + $0x268] sm:$0xff]
    %v204 = vld [vmem:[#allocation5 + $0x270] sm:$0xff]
    %v205 = vld [vmem:[#allocation5 + $0x278] sm:$0xff]
    %v206 = vld [vmem:[#allocation5 + $0x280] sm:$0xff]
    %v207 = vld [vmem:[#allocation5 + $0x288] sm:$0xff]
    %v208 = vld [vmem:[#allocation5 + $0x290] sm:$0xff]
    %v209 = vld [vmem:[#allocation5 + $0x298] sm:$0xff]
    %v210 = vld [vmem:[#allocation5 + $0x2a0] sm:$0xff]
    %v211 = vld [vmem:[#allocation5 + $0x2a8] sm:$0xff]
    %v212 = vld [vmem:[#allocation5 + $0x2b0] sm:$0xff]
    %v213 = vld [vmem:[#allocation5 + $0x2b8] sm:$0xff]
    %v214 = vld [vmem:[#allocation5 + $0x2c0] sm:$0xff]
    %v215 = vld [vmem:[#allocation5 + $0x2c8] sm:$0xff]
    %v216 = vld [vmem:[#allocation5 + $0x2d0] sm:$0xff]
    %v217 = vld [vmem:[#allocation5 + $0x2d8] sm:$0xff]
    %v218 = vld [vmem:[#allocation5 + $0x2e0] sm:$0xff]
    %v219 = vld [vmem:[#allocation5 + $0x2e8] sm:$0xff]
    %v220 = vld [vmem:[#allocation5 + $0x2f0] sm:$0xff]
    %v221 = vld [vmem:[#allocation5 + $0x2f8] sm:$0xff]
    %v222 = vld [vmem:[#allocation5 + $0x300] sm:$0xff]
    %v223 = vld [vmem:[#allocation5 + $0x308] sm:$0xff]
    %v224 = vld [vmem:[#allocation5 + $0x310] sm:$0xff]
    %v225 = vld [vmem:[#allocation5 + $0x318] sm:$0xff]
    %v226 = vld [vmem:[#allocation5 + $0x320] sm:$0xff]
    %v227 = vld [vmem:[#allocation5 + $0x328] sm:$0xff]
    %v228 = vld [vmem:[#allocation5 + $0x330] sm:$0xff]
    %v229 = vld [vmem:[#allocation5 + $0x338] sm:$0xff]
    %v230 = vld [vmem:[#allocation5 + $0x340] sm:$0xff]
    %v231 = vld [vmem:[#allocation5 + $0x348] sm:$0xff]
    %v232 = vld [vmem:[#allocation5 + $0x350] sm:$0xff]
    %v233 = vld [vmem:[#allocation5 + $0x358] sm:$0xff]
    %v234 = vld [vmem:[#allocation5 + $0x360] sm:$0xff]
    %v235 = vld [vmem:[#allocation5 + $0x368] sm:$0xff]
    %v236 = vld [vmem:[#allocation5 + $0x370] sm:$0xff]
    %v237 = vld [vmem:[#allocation5 + $0x378] sm:$0xff]
    %v238 = vld [vmem:[#allocation5 + $0x380] sm:$0xff]
    %v239 = vld [vmem:[#allocation5 + $0x388] sm:$0xff]
    %v240 = vld [vmem:[#allocation5 + $0x390] sm:$0xff]
    %v241 = vld [vmem:[#allocation5 + $0x398] sm:$0xff]
    %v242 = vld [vmem:[#allocation5 + $0x3a0] sm:$0xff]
    %v243 = vld [vmem:[#allocation5 + $0x3a8] sm:$0xff]
    %v244 = vld [vmem:[#allocation5 + $0x3b0] sm:$0xff]
    %v245 = vld [vmem:[#allocation5 + $0x3b8] sm:$0xff]
    %v246 = vld [vmem:[#allocation5 + $0x3c0] sm:$0xff]
    %v247 = vld [vmem:[#allocation5 + $0x3c8] sm:$0xff]
    %v248 = vld [vmem:[#allocation5 + $0x3d0] sm:$0xff]
    %v249 = vld [vmem:[#allocation5 + $0x3d8] sm:$0xff]
    %v250 = vld [vmem:[#allocation5 + $0x3e0] sm:$0xff]
    %v251 = vld [vmem:[#allocation5 + $0x3e8] sm:$0xff]
    %v252 = vld [vmem:[#allocation5 + $0x3f0] sm:$0xff]
    %v253 = vld [vmem:[#allocation5 + $0x3f8] sm:$0xff]
    %v254 = vld [vmem:[#allocation5 + $0x400] sm:$0xff]
    %v255 = vld [vmem:[#allocation5 + $0x408] sm:$0xff]
    %v256 = vld [vmem:[#allocation5 + $0x410] sm:$0xff]
    %v257 = vld [vmem:[#allocation5 + $0x418] sm:$0xff]
    %v258 = vld [vmem:[#allocation5 + $0x420] sm:$0xff]
    %v259 = vld [vmem:[#allocation5 + $0x428] sm:$0xff]
    %v260 = vld [vmem:[#allocation5 + $0x430] sm:$0xff]
    %v261 = vld [vmem:[#allocation5 + $0x438] sm:$0xff]
    %v262 = vld [vmem:[#allocation5 + $0x440] sm:$0xff]
    %v263 = vld [vmem:[#allocation5 + $0x448] sm:$0xff]
    %v264 = vld [vmem:[#allocation5 + $0x450] sm:$0xff]
    %v265 = vld [vmem:[#allocation5 + $0x458] sm:$0xff]
    %v266 = vld [vmem:[#allocation5 + $0x460] sm:$0xff]
    %v267 = vld [vmem:[#allocation5 + $0x468] sm:$0xff]
    %v268 = vld [vmem:[#allocation5 + $0x470] sm:$0xff]
    %v269 = vld [vmem:[#allocation5 + $0x478] sm:$0xff]
    %v270 = vld [vmem:[#allocation5 + $0x480] sm:$0xff]
    %v271 = vld [vmem:[#allocation5 + $0x488] sm:$0xff]
    %v272 = vld [vmem:[#allocation5 + $0x490] sm:$0xff]
    %v273 = vld [vmem:[#allocation5 + $0x498] sm:$0xff]
    %v274 = vld [vmem:[#allocation5 + $0x4a0] sm:$0xff]
    %v275 = vld [vmem:[#allocation5 + $0x4a8] sm:$0xff]
    %v276 = vld [vmem:[#allocation5 + $0x4b0] sm:$0xff]
    %v277 = vld [vmem:[#allocation5 + $0x4b8] sm:$0xff]
    %v278 = vld [vmem:[#allocation5 + $0x4c0] sm:$0xff]
    %v279 = vld [vmem:[#allocation5 + $0x4c8] sm:$0xff]
    %v280 = vld [vmem:[#allocation5 + $0x4d0] sm:$0xff]
    %v281 = vld [vmem:[#allocation5 + $0x4d8] sm:$0xff]
    %v282 = vld [vmem:[#allocation5 + $0x4e0] sm:$0xff]
    %v283 = vld [vmem:[#allocation5 + $0x4e8] sm:$0xff]
    %v284 = vld [vmem:[#allocation5 + $0x4f0] sm:$0xff]
    %v285 = vld [vmem:[#allocation5 + $0x4f8] sm:$0xff]
    %v286 = vld [vmem:[#allocation5 + $0x500] sm:$0xff]
    %v287 = vld [vmem:[#allocation5 + $0x508] sm:$0xff]
    %v288 = vld [vmem:[#allocation5 + $0x510] sm:$0xff]
    %v289 = vld [vmem:[#allocation5 + $0x518] sm:$0xff]
    %v290 = vld [vmem:[#allocation5 + $0x520] sm:$0xff]
    %v291 = vld [vmem:[#allocation5 + $0x528] sm:$0xff]
    %v292 = vld [vmem:[#allocation5 + $0x530] sm:$0xff]
    %v293 = vld [vmem:[#allocation5 + $0x538] sm:$0xff]
    %v294 = vld [vmem:[#allocation5 + $0x540] sm:$0xff]
    %v295 = vld [vmem:[#allocation5 + $0x548] sm:$0xff]
    %v296 = vld [vmem:[#allocation5 + $0x550] sm:$0xff]
    %v297 = vld [vmem:[#allocation5 + $0x558] sm:$0xff]
    %v298 = vld [vmem:[#allocation5 + $0x560] sm:$0xff]
    %v299 = vld [vmem:[#allocation5 + $0x568] sm:$0xff]
    %v300 = vld [vmem:[#allocation5 + $0x570] sm:$0xff]
    %v301 = vld [vmem:[#allocation5 + $0x578] sm:$0xff]
    %v302 = vld [vmem:[#allocation5 + $0x580] sm:$0xff]
    %v303 = vld [vmem:[#allocation5 + $0x588] sm:$0xff]
    %v304 = vld [vmem:[#allocation5 + $0x590] sm:$0xff]
    %v305 = vld [vmem:[#allocation5 + $0x598] sm:$0xff]
    %v306 = vld [vmem:[#allocation5 + $0x5a0] sm:$0xff]
    %v307 = vld [vmem:[#allocation5 + $0x5a8] sm:$0xff]
    %v308 = vld [vmem:[#allocation5 + $0x5b0] sm:$0xff]
    %v309 = vld [vmem:[#allocation5 + $0x5b8] sm:$0xff]
    %v310 = vld [vmem:[#allocation5 + $0x5c0] sm:$0xff]
    %v311 = vld [vmem:[#allocation5 + $0x5c8] sm:$0xff]
    %v312 = vld [vmem:[#allocation5 + $0x5d0] sm:$0xff]
    %v313 = vld [vmem:[#allocation5 + $0x5d8] sm:$0xff]
    %v314 = vld [vmem:[#allocation5 + $0x5e0] sm:$0xff]
    %v315 = vld [vmem:[#allocation5 + $0x5e8] sm:$0xff]
    %v316 = vld [vmem:[#allocation5 + $0x5f0] sm:$0xff]
    %v317 = vld [vmem:[#allocation5 + $0x5f8] sm:$0xff]
    %v318 = vld [vmem:[#allocation5 + $0x600] sm:$0xff]
    %v319 = vld [vmem:[#allocation5 + $0x608] sm:$0xff]
    %v320 = vld [vmem:[#allocation5 + $0x610] sm:$0xff]
    %v321 = vld [vmem:[#allocation5 + $0x618] sm:$0xff]
    %v322 = vld [vmem:[#allocation5 + $0x620] sm:$0xff]
    %v323 = vld [vmem:[#allocation5 + $0x628] sm:$0xff]
    %v324 = vld [vmem:[#allocation5 + $0x630] sm:$0xff]
    %v325 = vld [vmem:[#allocation5 + $0x638] sm:$0xff]
    %v326 = vld [vmem:[#allocation5 + $0x640] sm:$0xff]
    %v327 = vld [vmem:[#allocation5 + $0x648] sm:$0xff]
    %v328 = vld [vmem:[#allocation5 + $0x650] sm:$0xff]
    %v329 = vld [vmem:[#allocation5 + $0x658] sm:$0xff]
    %v330 = vld [vmem:[#allocation5 + $0x660] sm:$0xff]
    %v331 = vld [vmem:[#allocation5 + $0x668] sm:$0xff]
    %v332 = vld [vmem:[#allocation5 + $0x670] sm:$0xff]
    %v333 = vld [vmem:[#allocation5 + $0x678] sm:$0xff]
    %v334 = vld [vmem:[#allocation5 + $0x680] sm:$0xff]
    %v335 = vld [vmem:[#allocation5 + $0x688] sm:$0xff]
    %v336 = vld [vmem:[#allocation5 + $0x690] sm:$0xff]
    %v337 = vld [vmem:[#allocation5 + $0x698] sm:$0xff]
    %v338 = vld [vmem:[#allocation5 + $0x6a0] sm:$0xff]
    %v339 = vld [vmem:[#allocation5 + $0x6a8] sm:$0xff]
    %v340 = vld [vmem:[#allocation5 + $0x6b0] sm:$0xff]
    %v341 = vld [vmem:[#allocation5 + $0x6b8] sm:$0xff]
    %v342 = vld [vmem:[#allocation5 + $0x6c0] sm:$0xff]
    %v343 = vld [vmem:[#allocation5 + $0x6c8] sm:$0xff]
    %v344 = vld [vmem:[#allocation5 + $0x6d0] sm:$0xff]
    %v345 = vld [vmem:[#allocation5 + $0x6d8] sm:$0xff]
    %v346 = vld [vmem:[#allocation5 + $0x6e0] sm:$0xff]
    %v347 = vld [vmem:[#allocation5 + $0x6e8] sm:$0xff]
    %v348 = vld [vmem:[#allocation5 + $0x6f0] sm:$0xff]
    %v349 = vld [vmem:[#allocation5 + $0x6f8] sm:$0xff]
    %v350 = vld [vmem:[#allocation7] sm:$0xf]
    %v352 = vlaneseq
    %v353 = vshrl.u32 %v352, 7
    %v354 = vsub.s32 0, %v353
    %v355 = vrot.slane %v350, %v354
    %v356 = vlaneseq
    %v357 = vshrl.u32 %v356, 7
    %v358 = vsub.s32 1, %v357
    %v359 = vrot.slane %v350, %v358
    %v360 = vlaneseq
    %v361 = vshrl.u32 %v360, 7
    %v362 = vsub.s32 2, %v361
    %v363 = vrot.slane %v350, %v362
    %v364 = vlaneseq
    %v365 = vshrl.u32 %v364, 7
    %v366 = vsub.s32 3, %v365
    %v367 = vrot.slane %v350, %v366
    %v596 = vunpack.c.l.b16 %v126
    %v597 = vunpack.c.h.b16 %v126
    %v598 = vunpack.c.l.b16 %v127
    %v599 = vunpack.c.h.b16 %v127
    %v600 = vunpack.c.l.b16 %v128
    %v601 = vunpack.c.h.b16 %v128
    %v602 = vunpack.c.l.b16 %v129
    %v603 = vunpack.c.h.b16 %v129
    %v604 = vunpack.c.l.b16 %v130
    %v605 = vunpack.c.h.b16 %v130
    %v606 = vunpack.c.l.b16 %v131
    %v607 = vunpack.c.h.b16 %v131
    %v608 = vunpack.c.l.b16 %v132
    %v609 = vunpack.c.h.b16 %v132
    %v610 = vunpack.c.l.b16 %v133
    %v611 = vunpack.c.h.b16 %v133
    %v612 = vunpack.c.l.b16 %v134
    %v613 = vunpack.c.h.b16 %v134
    %v614 = vunpack.c.l.b16 %v135
    %v615 = vunpack.c.h.b16 %v135
    %v616 = vunpack.c.l.b16 %v136
    %v617 = vunpack.c.h.b16 %v136
    %v618 = vunpack.c.l.b16 %v137
    %v619 = vunpack.c.h.b16 %v137
    %v620 = vunpack.c.l.b16 %v138
    %v621 = vunpack.c.h.b16 %v138
    %v622 = vunpack.c.l.b16 %v139
    %v623 = vunpack.c.h.b16 %v139
    %v624 = vunpack.c.l.b16 %v140
    %v625 = vunpack.c.h.b16 %v140
    %v626 = vunpack.c.l.b16 %v141
    %v627 = vunpack.c.h.b16 %v141
    %v628 = vunpack.c.l.b16 %v142
    %v629 = vunpack.c.h.b16 %v142
    %v630 = vunpack.c.l.b16 %v143
    %v631 = vunpack.c.h.b16 %v143
    %v632 = vunpack.c.l.b16 %v144
    %v633 = vunpack.c.h.b16 %v144
    %v634 = vunpack.c.l.b16 %v145
    %v635 = vunpack.c.h.b16 %v145
    %v636 = vunpack.c.l.b16 %v146
    %v637 = vunpack.c.h.b16 %v146
    %v638 = vunpack.c.l.b16 %v147
    %v639 = vunpack.c.h.b16 %v147
    %v640 = vunpack.c.l.b16 %v148
    %v641 = vunpack.c.h.b16 %v148
    %v642 = vunpack.c.l.b16 %v149
    %v643 = vunpack.c.h.b16 %v149
    %v644 = vunpack.c.l.b16 %v150
    %v645 = vunpack.c.h.b16 %v150
    %v646 = vunpack.c.l.b16 %v151
    %v647 = vunpack.c.h.b16 %v151
    %v648 = vunpack.c.l.b16 %v152
    %v649 = vunpack.c.h.b16 %v152
    %v650 = vunpack.c.l.b16 %v153
    %v651 = vunpack.c.h.b16 %v153
    %v652 = vunpack.c.l.b16 %v154
    %v653 = vunpack.c.h.b16 %v154
    %v654 = vunpack.c.l.b16 %v155
    %v655 = vunpack.c.h.b16 %v155
    %v656 = vunpack.c.l.b16 %v156
    %v657 = vunpack.c.h.b16 %v156
    %v658 = vunpack.c.l.b16 %v157
    %v659 = vunpack.c.h.b16 %v157
    %v660 = vunpack.c.l.b16 %v158
    %v661 = vunpack.c.h.b16 %v158
    %v662 = vunpack.c.l.b16 %v159
    %v663 = vunpack.c.h.b16 %v159
    %v664 = vunpack.c.l.b16 %v160
    %v665 = vunpack.c.h.b16 %v160
    %v666 = vunpack.c.l.b16 %v161
    %v667 = vunpack.c.h.b16 %v161
    %v668 = vunpack.c.l.b16 %v162
    %v669 = vunpack.c.h.b16 %v162
    %v670 = vunpack.c.l.b16 %v163
    %v671 = vunpack.c.h.b16 %v163
    %v672 = vunpack.c.l.b16 %v164
    %v673 = vunpack.c.h.b16 %v164
    %v674 = vunpack.c.l.b16 %v165
    %v675 = vunpack.c.h.b16 %v165
    %v676 = vunpack.c.l.b16 %v166
    %v677 = vunpack.c.h.b16 %v166
    %v678 = vunpack.c.l.b16 %v167
    %v679 = vunpack.c.h.b16 %v167
    %v680 = vunpack.c.l.b16 %v168
    %v681 = vunpack.c.h.b16 %v168
    %v682 = vunpack.c.l.b16 %v169
    %v683 = vunpack.c.h.b16 %v169
    %v684 = vunpack.c.l.b16 %v170
    %v685 = vunpack.c.h.b16 %v170
    %v686 = vunpack.c.l.b16 %v171
    %v687 = vunpack.c.h.b16 %v171
    %v688 = vunpack.c.l.b16 %v172
    %v689 = vunpack.c.h.b16 %v172
    %v690 = vunpack.c.l.b16 %v173
    %v691 = vunpack.c.h.b16 %v173
    %v692 = vunpack.c.l.b16 %v174
    %v693 = vunpack.c.h.b16 %v174
    %v694 = vunpack.c.l.b16 %v175
    %v695 = vunpack.c.h.b16 %v175
    %v696 = vunpack.c.l.b16 %v176
    %v697 = vunpack.c.h.b16 %v176
    %v698 = vunpack.c.l.b16 %v177
    %v699 = vunpack.c.h.b16 %v177
    %v700 = vunpack.c.l.b16 %v178
    %v701 = vunpack.c.h.b16 %v178
    %v702 = vunpack.c.l.b16 %v179
    %v703 = vunpack.c.h.b16 %v179
    %v704 = vunpack.c.l.b16 %v180
    %v705 = vunpack.c.h.b16 %v180
    %v706 = vunpack.c.l.b16 %v181
    %v707 = vunpack.c.h.b16 %v181
    %v708 = vunpack.c.l.b16 %v182
    %v709 = vunpack.c.h.b16 %v182
    %v710 = vunpack.c.l.b16 %v183
    %v711 = vunpack.c.h.b16 %v183
    %v712 = vunpack.c.l.b16 %v184
    %v713 = vunpack.c.h.b16 %v184
    %v714 = vunpack.c.l.b16 %v185
    %v715 = vunpack.c.h.b16 %v185
    %v716 = vunpack.c.l.b16 %v186
    %v717 = vunpack.c.h.b16 %v186
    %v718 = vunpack.c.l.b16 %v187
    %v719 = vunpack.c.h.b16 %v187
    %v720 = vunpack.c.l.b16 %v188
    %v721 = vunpack.c.h.b16 %v188
    %v722 = vunpack.c.l.b16 %v189
    %v723 = vunpack.c.h.b16 %v189
    %v724 = vunpack.c.l.b16 %v190
    %v725 = vunpack.c.h.b16 %v190
    %v726 = vunpack.c.l.b16 %v191
    %v727 = vunpack.c.h.b16 %v191
    %v728 = vunpack.c.l.b16 %v192
    %v729 = vunpack.c.h.b16 %v192
    %v730 = vunpack.c.l.b16 %v193
    %v731 = vunpack.c.h.b16 %v193
    %v732 = vunpack.c.l.b16 %v194
    %v733 = vunpack.c.h.b16 %v194
    %v734 = vunpack.c.l.b16 %v195
    %v735 = vunpack.c.h.b16 %v195
    %v736 = vunpack.c.l.b16 %v196
    %v737 = vunpack.c.h.b16 %v196
    %v738 = vunpack.c.l.b16 %v197
    %v739 = vunpack.c.h.b16 %v197
    %v740 = vunpack.c.l.b16 %v198
    %v741 = vunpack.c.h.b16 %v198
    %v742 = vunpack.c.l.b16 %v199
    %v743 = vunpack.c.h.b16 %v199
    %v744 = vunpack.c.l.b16 %v200
    %v745 = vunpack.c.h.b16 %v200
    %v746 = vunpack.c.l.b16 %v201
    %v747 = vunpack.c.h.b16 %v201
    %v748 = vunpack.c.l.b16 %v202
    %v749 = vunpack.c.h.b16 %v202
    %v750 = vunpack.c.l.b16 %v203
    %v751 = vunpack.c.h.b16 %v203
    %v752 = vunpack.c.l.b16 %v204
    %v753 = vunpack.c.h.b16 %v204
    %v754 = vunpack.c.l.b16 %v205
    %v755 = vunpack.c.h.b16 %v205
    %v756 = vunpack.c.l.b16 %v206
    %v757 = vunpack.c.h.b16 %v206
    %v758 = vunpack.c.l.b16 %v207
    %v759 = vunpack.c.h.b16 %v207
    %v760 = vunpack.c.l.b16 %v208
    %v761 = vunpack.c.h.b16 %v208
    %v762 = vunpack.c.l.b16 %v209
    %v763 = vunpack.c.h.b16 %v209
    %v764 = vunpack.c.l.b16 %v210
    %v765 = vunpack.c.h.b16 %v210
    %v766 = vunpack.c.l.b16 %v211
    %v767 = vunpack.c.h.b16 %v211
    %v768 = vunpack.c.l.b16 %v212
    %v769 = vunpack.c.h.b16 %v212
    %v770 = vunpack.c.l.b16 %v213
    %v771 = vunpack.c.h.b16 %v213
    %v772 = vunpack.c.l.b16 %v214
    %v773 = vunpack.c.h.b16 %v214
    %v774 = vunpack.c.l.b16 %v215
    %v775 = vunpack.c.h.b16 %v215
    %v776 = vunpack.c.l.b16 %v216
    %v777 = vunpack.c.h.b16 %v216
    %v778 = vunpack.c.l.b16 %v217
    %v779 = vunpack.c.h.b16 %v217
    %v780 = vunpack.c.l.b16 %v218
    %v781 = vunpack.c.h.b16 %v218
    %v782 = vunpack.c.l.b16 %v219
    %v783 = vunpack.c.h.b16 %v219
    %v784 = vunpack.c.l.b16 %v220
    %v785 = vunpack.c.h.b16 %v220
    %v786 = vunpack.c.l.b16 %v221
    %v787 = vunpack.c.h.b16 %v221
    %v788 = vunpack.c.l.b16 %v222
    %v789 = vunpack.c.h.b16 %v222
    %v790 = vunpack.c.l.b16 %v223
    %v791 = vunpack.c.h.b16 %v223
    %v792 = vunpack.c.l.b16 %v224
    %v793 = vunpack.c.h.b16 %v224
    %v794 = vunpack.c.l.b16 %v225
    %v795 = vunpack.c.h.b16 %v225
    %v796 = vunpack.c.l.b16 %v226
    %v797 = vunpack.c.h.b16 %v226
    %v798 = vunpack.c.l.b16 %v227
    %v799 = vunpack.c.h.b16 %v227
    %v800 = vunpack.c.l.b16 %v228
    %v801 = vunpack.c.h.b16 %v228
    %v802 = vunpack.c.l.b16 %v229
    %v803 = vunpack.c.h.b16 %v229
    %v804 = vunpack.c.l.b16 %v230
    %v805 = vunpack.c.h.b16 %v230
    %v806 = vunpack.c.l.b16 %v231
    %v807 = vunpack.c.h.b16 %v231
    %v808 = vunpack.c.l.b16 %v232
    %v809 = vunpack.c.h.b16 %v232
    %v810 = vunpack.c.l.b16 %v233
    %v811 = vunpack.c.h.b16 %v233
    %v812 = vunpack.c.l.b16 %v234
    %v813 = vunpack.c.h.b16 %v234
    %v814 = vunpack.c.l.b16 %v235
    %v815 = vunpack.c.h.b16 %v235
    %v816 = vunpack.c.l.b16 %v236
    %v817 = vunpack.c.h.b16 %v236
    %v818 = vunpack.c.l.b16 %v237
    %v819 = vunpack.c.h.b16 %v237
    %v820 = vunpack.c.l.b16 %v238
    %v821 = vunpack.c.h.b16 %v238
    %v822 = vunpack.c.l.b16 %v239
    %v823 = vunpack.c.h.b16 %v239
    %v824 = vunpack.c.l.b16 %v240
    %v825 = vunpack.c.h.b16 %v240
    %v826 = vunpack.c.l.b16 %v241
    %v827 = vunpack.c.h.b16 %v241
    %v828 = vunpack.c.l.b16 %v242
    %v829 = vunpack.c.h.b16 %v242
    %v830 = vunpack.c.l.b16 %v243
    %v831 = vunpack.c.h.b16 %v243
    %v832 = vunpack.c.l.b16 %v244
    %v833 = vunpack.c.h.b16 %v244
    %v834 = vunpack.c.l.b16 %v245
    %v835 = vunpack.c.h.b16 %v245
    %v836 = vunpack.c.l.b16 %v246
    %v837 = vunpack.c.h.b16 %v246
    %v838 = vunpack.c.l.b16 %v247
    %v839 = vunpack.c.h.b16 %v247
    %v840 = vunpack.c.l.b16 %v248
    %v841 = vunpack.c.h.b16 %v248
    %v842 = vunpack.c.l.b16 %v249
    %v843 = vunpack.c.h.b16 %v249
    %v844 = vunpack.c.l.b16 %v250
    %v845 = vunpack.c.h.b16 %v250
    %v846 = vunpack.c.l.b16 %v251
    %v847 = vunpack.c.h.b16 %v251
    %v848 = vunpack.c.l.b16 %v252
    %v849 = vunpack.c.h.b16 %v252
    %v850 = vunpack.c.l.b16 %v253
    %v851 = vunpack.c.h.b16 %v253
    %v852 = vunpack.c.l.b16 %v254
    %v853 = vunpack.c.h.b16 %v254
    %v854 = vunpack.c.l.b16 %v255
    %v855 = vunpack.c.h.b16 %v255
    %v856 = vunpack.c.l.b16 %v256
    %v857 = vunpack.c.h.b16 %v256
    %v858 = vunpack.c.l.b16 %v257
    %v859 = vunpack.c.h.b16 %v257
    %v860 = vunpack.c.l.b16 %v258
    %v861 = vunpack.c.h.b16 %v258
    %v862 = vunpack.c.l.b16 %v259
    %v863 = vunpack.c.h.b16 %v259
    %v864 = vunpack.c.l.b16 %v260
    %v865 = vunpack.c.h.b16 %v260
    %v866 = vunpack.c.l.b16 %v261
    %v867 = vunpack.c.h.b16 %v261
    %v868 = vunpack.c.l.b16 %v262
    %v869 = vunpack.c.h.b16 %v262
    %v870 = vunpack.c.l.b16 %v263
    %v871 = vunpack.c.h.b16 %v263
    %v872 = vunpack.c.l.b16 %v264
    %v873 = vunpack.c.h.b16 %v264
    %v874 = vunpack.c.l.b16 %v265
    %v875 = vunpack.c.h.b16 %v265
    %v876 = vunpack.c.l.b16 %v266
    %v877 = vunpack.c.h.b16 %v266
    %v878 = vunpack.c.l.b16 %v267
    %v879 = vunpack.c.h.b16 %v267
    %v880 = vunpack.c.l.b16 %v268
    %v881 = vunpack.c.h.b16 %v268
    %v882 = vunpack.c.l.b16 %v269
    %v883 = vunpack.c.h.b16 %v269
    %v884 = vunpack.c.l.b16 %v270
    %v885 = vunpack.c.h.b16 %v270
    %v886 = vunpack.c.l.b16 %v271
    %v887 = vunpack.c.h.b16 %v271
    %v888 = vunpack.c.l.b16 %v272
    %v889 = vunpack.c.h.b16 %v272
    %v890 = vunpack.c.l.b16 %v273
    %v891 = vunpack.c.h.b16 %v273
    %v892 = vunpack.c.l.b16 %v274
    %v893 = vunpack.c.h.b16 %v274
    %v894 = vunpack.c.l.b16 %v275
    %v895 = vunpack.c.h.b16 %v275
    %v896 = vunpack.c.l.b16 %v276
    %v897 = vunpack.c.h.b16 %v276
    %v898 = vunpack.c.l.b16 %v277
    %v899 = vunpack.c.h.b16 %v277
    %v900 = vunpack.c.l.b16 %v278
    %v901 = vunpack.c.h.b16 %v278
    %v902 = vunpack.c.l.b16 %v279
    %v903 = vunpack.c.h.b16 %v279
    %v904 = vunpack.c.l.b16 %v280
    %v905 = vunpack.c.h.b16 %v280
    %v906 = vunpack.c.l.b16 %v281
    %v907 = vunpack.c.h.b16 %v281
    %v908 = vunpack.c.l.b16 %v282
    %v909 = vunpack.c.h.b16 %v282
    %v910 = vunpack.c.l.b16 %v283
    %v911 = vunpack.c.h.b16 %v283
    %v912 = vunpack.c.l.b16 %v284
    %v913 = vunpack.c.h.b16 %v284
    %v914 = vunpack.c.l.b16 %v285
    %v915 = vunpack.c.h.b16 %v285
    %v916 = vunpack.c.l.b16 %v286
    %v917 = vunpack.c.h.b16 %v286
    %v918 = vunpack.c.l.b16 %v287
    %v919 = vunpack.c.h.b16 %v287
    %v920 = vunpack.c.l.b16 %v288
    %v921 = vunpack.c.h.b16 %v288
    %v922 = vunpack.c.l.b16 %v289
    %v923 = vunpack.c.h.b16 %v289
    %v924 = vunpack.c.l.b16 %v290
    %v925 = vunpack.c.h.b16 %v290
    %v926 = vunpack.c.l.b16 %v291
    %v927 = vunpack.c.h.b16 %v291
    %v928 = vunpack.c.l.b16 %v292
    %v929 = vunpack.c.h.b16 %v292
    %v930 = vunpack.c.l.b16 %v293
    %v931 = vunpack.c.h.b16 %v293
    %v932 = vunpack.c.l.b16 %v294
    %v933 = vunpack.c.h.b16 %v294
    %v934 = vunpack.c.l.b16 %v295
    %v935 = vunpack.c.h.b16 %v295
    %v936 = vunpack.c.l.b16 %v296
    %v937 = vunpack.c.h.b16 %v296
    %v938 = vunpack.c.l.b16 %v297
    %v939 = vunpack.c.h.b16 %v297
    %v940 = vunpack.c.l.b16 %v298
    %v941 = vunpack.c.h.b16 %v298
    %v942 = vunpack.c.l.b16 %v299
    %v943 = vunpack.c.h.b16 %v299
    %v944 = vunpack.c.l.b16 %v300
    %v945 = vunpack.c.h.b16 %v300
    %v946 = vunpack.c.l.b16 %v301
    %v947 = vunpack.c.h.b16 %v301
    %v948 = vunpack.c.l.b16 %v302
    %v949 = vunpack.c.h.b16 %v302
    %v950 = vunpack.c.l.b16 %v303
    %v951 = vunpack.c.h.b16 %v303
    %v952 = vunpack.c.l.b16 %v304
    %v953 = vunpack.c.h.b16 %v304
    %v954 = vunpack.c.l.b16 %v305
    %v955 = vunpack.c.h.b16 %v305
    %v956 = vunpack.c.l.b16 %v306
    %v957 = vunpack.c.h.b16 %v306
    %v958 = vunpack.c.l.b16 %v307
    %v959 = vunpack.c.h.b16 %v307
    %v960 = vunpack.c.l.b16 %v308
    %v961 = vunpack.c.h.b16 %v308
    %v962 = vunpack.c.l.b16 %v309
    %v963 = vunpack.c.h.b16 %v309
    %v964 = vunpack.c.l.b16 %v310
    %v965 = vunpack.c.h.b16 %v310
    %v966 = vunpack.c.l.b16 %v311
    %v967 = vunpack.c.h.b16 %v311
    %v968 = vunpack.c.l.b16 %v312
    %v969 = vunpack.c.h.b16 %v312
    %v970 = vunpack.c.l.b16 %v313
    %v971 = vunpack.c.h.b16 %v313
    %v972 = vunpack.c.l.b16 %v314
    %v973 = vunpack.c.h.b16 %v314
    %v974 = vunpack.c.l.b16 %v315
    %v975 = vunpack.c.h.b16 %v315
    %v976 = vunpack.c.l.b16 %v316
    %v977 = vunpack.c.h.b16 %v316
    %v978 = vunpack.c.l.b16 %v317
    %v979 = vunpack.c.h.b16 %v317
    %v980 = vunpack.c.l.b16 %v318
    %v981 = vunpack.c.h.b16 %v318
    %v982 = vunpack.c.l.b16 %v319
    %v983 = vunpack.c.h.b16 %v319
    %v984 = vunpack.c.l.b16 %v320
    %v985 = vunpack.c.h.b16 %v320
    %v986 = vunpack.c.l.b16 %v321
    %v987 = vunpack.c.h.b16 %v321
    %v988 = vunpack.c.l.b16 %v322
    %v989 = vunpack.c.h.b16 %v322
    %v990 = vunpack.c.l.b16 %v323
    %v991 = vunpack.c.h.b16 %v323
    %v992 = vunpack.c.l.b16 %v324
    %v993 = vunpack.c.h.b16 %v324
    %v994 = vunpack.c.l.b16 %v325
    %v995 = vunpack.c.h.b16 %v325
    %v996 = vunpack.c.l.b16 %v326
    %v997 = vunpack.c.h.b16 %v326
    %v998 = vunpack.c.l.b16 %v327
    %v999 = vunpack.c.h.b16 %v327
    %v1000 = vunpack.c.l.b16 %v328
    %v1001 = vunpack.c.h.b16 %v328
    %v1002 = vunpack.c.l.b16 %v329
    %v1003 = vunpack.c.h.b16 %v329
    %v1004 = vunpack.c.l.b16 %v330
    %v1005 = vunpack.c.h.b16 %v330
    %v1006 = vunpack.c.l.b16 %v331
    %v1007 = vunpack.c.h.b16 %v331
    %v1008 = vunpack.c.l.b16 %v332
    %v1009 = vunpack.c.h.b16 %v332
    %v1010 = vunpack.c.l.b16 %v333
    %v1011 = vunpack.c.h.b16 %v333
    %v1012 = vunpack.c.l.b16 %v334
    %v1013 = vunpack.c.h.b16 %v334
    %v1014 = vunpack.c.l.b16 %v335
    %v1015 = vunpack.c.h.b16 %v335
    %v1016 = vunpack.c.l.b16 %v336
    %v1017 = vunpack.c.h.b16 %v336
    %v1018 = vunpack.c.l.b16 %v337
    %v1019 = vunpack.c.h.b16 %v337
    %v1020 = vunpack.c.l.b16 %v338
    %v1021 = vunpack.c.h.b16 %v338
    %v1022 = vunpack.c.l.b16 %v339
    %v1023 = vunpack.c.h.b16 %v339
    %v1024 = vunpack.c.l.b16 %v340
    %v1025 = vunpack.c.h.b16 %v340
    %v1026 = vunpack.c.l.b16 %v341
    %v1027 = vunpack.c.h.b16 %v341
    %v1028 = vunpack.c.l.b16 %v342
    %v1029 = vunpack.c.h.b16 %v342
    %v1030 = vunpack.c.l.b16 %v343
    %v1031 = vunpack.c.h.b16 %v343
    %v1032 = vunpack.c.l.b16 %v344
    %v1033 = vunpack.c.h.b16 %v344
    %v1034 = vunpack.c.l.b16 %v345
    %v1035 = vunpack.c.h.b16 %v345
    %v1036 = vunpack.c.l.b16 %v346
    %v1037 = vunpack.c.h.b16 %v346
    %v1038 = vunpack.c.l.b16 %v347
    %v1039 = vunpack.c.h.b16 %v347
    %v1040 = vunpack.c.l.b16 %v348
    %v1041 = vunpack.c.h.b16 %v348
    %v1042 = vunpack.c.l.b16 %v349
    %v1043 = vunpack.c.h.b16 %v349
    %v1044 = vpack.c.b16 %v600, %v596
    %v1045 = vpack.c.b16 %v601, %v597
    %v1046 = vpack.c.b16 %v602, %v598
    %v1047 = vpack.c.b16 %v603, %v599
    %v1048 = vpack.c.b16 %v608, %v604
    %v1049 = vpack.c.b16 %v609, %v605
    %v1050 = vpack.c.b16 %v610, %v606
    %v1051 = vpack.c.b16 %v611, %v607
    %v1052 = vpack.c.b16 %v616, %v612
    %v1053 = vpack.c.b16 %v617, %v613
    %v1054 = vpack.c.b16 %v618, %v614
    %v1055 = vpack.c.b16 %v619, %v615
    %v1056 = vpack.c.b16 %v624, %v620
    %v1057 = vpack.c.b16 %v625, %v621
    %v1058 = vpack.c.b16 %v626, %v622
    %v1059 = vpack.c.b16 %v627, %v623
    %v1060 = vpack.c.b16 %v632, %v628
    %v1061 = vpack.c.b16 %v633, %v629
    %v1062 = vpack.c.b16 %v634, %v630
    %v1063 = vpack.c.b16 %v635, %v631
    %v1064 = vpack.c.b16 %v640, %v636
    %v1065 = vpack.c.b16 %v641, %v637
    %v1066 = vpack.c.b16 %v642, %v638
    %v1067 = vpack.c.b16 %v643, %v639
    %v1068 = vpack.c.b16 %v648, %v644
    %v1069 = vpack.c.b16 %v649, %v645
    %v1070 = vpack.c.b16 %v650, %v646
    %v1071 = vpack.c.b16 %v651, %v647
    %v1072 = vpack.c.b16 %v656, %v652
    %v1073 = vpack.c.b16 %v657, %v653
    %v1074 = vpack.c.b16 %v658, %v654
    %v1075 = vpack.c.b16 %v659, %v655
    %v1076 = vpack.c.b16 %v664, %v660
    %v1077 = vpack.c.b16 %v665, %v661
    %v1078 = vpack.c.b16 %v666, %v662
    %v1079 = vpack.c.b16 %v667, %v663
    %v1080 = vpack.c.b16 %v672, %v668
    %v1081 = vpack.c.b16 %v673, %v669
    %v1082 = vpack.c.b16 %v674, %v670
    %v1083 = vpack.c.b16 %v675, %v671
    %v1084 = vpack.c.b16 %v680, %v676
    %v1085 = vpack.c.b16 %v681, %v677
    %v1086 = vpack.c.b16 %v682, %v678
    %v1087 = vpack.c.b16 %v683, %v679
    %v1088 = vpack.c.b16 %v688, %v684
    %v1089 = vpack.c.b16 %v689, %v685
    %v1090 = vpack.c.b16 %v690, %v686
    %v1091 = vpack.c.b16 %v691, %v687
    %v1092 = vpack.c.b16 %v696, %v692
    %v1093 = vpack.c.b16 %v697, %v693
    %v1094 = vpack.c.b16 %v698, %v694
    %v1095 = vpack.c.b16 %v699, %v695
    %v1096 = vpack.c.b16 %v704, %v700
    %v1097 = vpack.c.b16 %v705, %v701
    %v1098 = vpack.c.b16 %v706, %v702
    %v1099 = vpack.c.b16 %v707, %v703
    %v1100 = vpack.c.b16 %v712, %v708
    %v1101 = vpack.c.b16 %v713, %v709
    %v1102 = vpack.c.b16 %v714, %v710
    %v1103 = vpack.c.b16 %v715, %v711
    %v1104 = vpack.c.b16 %v720, %v716
    %v1105 = vpack.c.b16 %v721, %v717
    %v1106 = vpack.c.b16 %v722, %v718
    %v1107 = vpack.c.b16 %v723, %v719
    %v1108 = vpack.c.b16 %v728, %v724
    %v1109 = vpack.c.b16 %v729, %v725
    %v1110 = vpack.c.b16 %v730, %v726
    %v1111 = vpack.c.b16 %v731, %v727
    %v1112 = vpack.c.b16 %v736, %v732
    %v1113 = vpack.c.b16 %v737, %v733
    %v1114 = vpack.c.b16 %v738, %v734
    %v1115 = vpack.c.b16 %v739, %v735
    %v1116 = vpack.c.b16 %v744, %v740
    %v1117 = vpack.c.b16 %v745, %v741
    %v1118 = vpack.c.b16 %v746, %v742
    %v1119 = vpack.c.b16 %v747, %v743
    %v1120 = vpack.c.b16 %v752, %v748
    %v1121 = vpack.c.b16 %v753, %v749
    %v1122 = vpack.c.b16 %v754, %v750
    %v1123 = vpack.c.b16 %v755, %v751
    %v1124 = vpack.c.b16 %v760, %v756
    %v1125 = vpack.c.b16 %v761, %v757
    %v1126 = vpack.c.b16 %v762, %v758
    %v1127 = vpack.c.b16 %v763, %v759
    %v1128 = vpack.c.b16 %v768, %v764
    %v1129 = vpack.c.b16 %v769, %v765
    %v1130 = vpack.c.b16 %v770, %v766
    %v1131 = vpack.c.b16 %v771, %v767
    %v1132 = vpack.c.b16 %v776, %v772
    %v1133 = vpack.c.b16 %v777, %v773
    %v1134 = vpack.c.b16 %v778, %v774
    %v1135 = vpack.c.b16 %v779, %v775
    %v1136 = vpack.c.b16 %v784, %v780
    %v1137 = vpack.c.b16 %v785, %v781
    %v1138 = vpack.c.b16 %v786, %v782
    %v1139 = vpack.c.b16 %v787, %v783
    %v1140 = vpack.c.b16 %v792, %v788
    %v1141 = vpack.c.b16 %v793, %v789
    %v1142 = vpack.c.b16 %v794, %v790
    %v1143 = vpack.c.b16 %v795, %v791
    %v1144 = vpack.c.b16 %v800, %v796
    %v1145 = vpack.c.b16 %v801, %v797
    %v1146 = vpack.c.b16 %v802, %v798
    %v1147 = vpack.c.b16 %v803, %v799
    %v1148 = vpack.c.b16 %v808, %v804
    %v1149 = vpack.c.b16 %v809, %v805
    %v1150 = vpack.c.b16 %v810, %v806
    %v1151 = vpack.c.b16 %v811, %v807
    %v1152 = vpack.c.b16 %v816, %v812
    %v1153 = vpack.c.b16 %v817, %v813
    %v1154 = vpack.c.b16 %v818, %v814
    %v1155 = vpack.c.b16 %v819, %v815
    %v1156 = vpack.c.b16 %v824, %v820
    %v1157 = vpack.c.b16 %v825, %v821
    %v1158 = vpack.c.b16 %v826, %v822
    %v1159 = vpack.c.b16 %v827, %v823
    %v1160 = vpack.c.b16 %v832, %v828
    %v1161 = vpack.c.b16 %v833, %v829
    %v1162 = vpack.c.b16 %v834, %v830
    %v1163 = vpack.c.b16 %v835, %v831
    %v1164 = vpack.c.b16 %v840, %v836
    %v1165 = vpack.c.b16 %v841, %v837
    %v1166 = vpack.c.b16 %v842, %v838
    %v1167 = vpack.c.b16 %v843, %v839
    %v1168 = vpack.c.b16 %v848, %v844
    %v1169 = vpack.c.b16 %v849, %v845
    %v1170 = vpack.c.b16 %v850, %v846
    %v1171 = vpack.c.b16 %v851, %v847
    %v1172 = vpack.c.b16 %v856, %v852
    %v1173 = vpack.c.b16 %v857, %v853
    %v1174 = vpack.c.b16 %v858, %v854
    %v1175 = vpack.c.b16 %v859, %v855
    %v1176 = vpack.c.b16 %v864, %v860
    %v1177 = vpack.c.b16 %v865, %v861
    %v1178 = vpack.c.b16 %v866, %v862
    %v1179 = vpack.c.b16 %v867, %v863
    %v1180 = vpack.c.b16 %v872, %v868
    %v1181 = vpack.c.b16 %v873, %v869
    %v1182 = vpack.c.b16 %v874, %v870
    %v1183 = vpack.c.b16 %v875, %v871
    %v1184 = vpack.c.b16 %v880, %v876
    %v1185 = vpack.c.b16 %v881, %v877
    %v1186 = vpack.c.b16 %v882, %v878
    %v1187 = vpack.c.b16 %v883, %v879
    %v1188 = vpack.c.b16 %v888, %v884
    %v1189 = vpack.c.b16 %v889, %v885
    %v1190 = vpack.c.b16 %v890, %v886
    %v1191 = vpack.c.b16 %v891, %v887
    %v1192 = vpack.c.b16 %v896, %v892
    %v1193 = vpack.c.b16 %v897, %v893
    %v1194 = vpack.c.b16 %v898, %v894
    %v1195 = vpack.c.b16 %v899, %v895
    %v1196 = vpack.c.b16 %v904, %v900
    %v1197 = vpack.c.b16 %v905, %v901
    %v1198 = vpack.c.b16 %v906, %v902
    %v1199 = vpack.c.b16 %v907, %v903
    %v1200 = vpack.c.b16 %v912, %v908
    %v1201 = vpack.c.b16 %v913, %v909
    %v1202 = vpack.c.b16 %v914, %v910
    %v1203 = vpack.c.b16 %v915, %v911
    %v1204 = vpack.c.b16 %v920, %v916
    %v1205 = vpack.c.b16 %v921, %v917
    %v1206 = vpack.c.b16 %v922, %v918
    %v1207 = vpack.c.b16 %v923, %v919
    %v1208 = vpack.c.b16 %v928, %v924
    %v1209 = vpack.c.b16 %v929, %v925
    %v1210 = vpack.c.b16 %v930, %v926
    %v1211 = vpack.c.b16 %v931, %v927
    %v1212 = vpack.c.b16 %v936, %v932
    %v1213 = vpack.c.b16 %v937, %v933
    %v1214 = vpack.c.b16 %v938, %v934
    %v1215 = vpack.c.b16 %v939, %v935
    %v1216 = vpack.c.b16 %v944, %v940
    %v1217 = vpack.c.b16 %v945, %v941
    %v1218 = vpack.c.b16 %v946, %v942
    %v1219 = vpack.c.b16 %v947, %v943
    %v1220 = vpack.c.b16 %v952, %v948
    %v1221 = vpack.c.b16 %v953, %v949
    %v1222 = vpack.c.b16 %v954, %v950
    %v1223 = vpack.c.b16 %v955, %v951
    %v1224 = vpack.c.b16 %v960, %v956
    %v1225 = vpack.c.b16 %v961, %v957
    %v1226 = vpack.c.b16 %v962, %v958
    %v1227 = vpack.c.b16 %v963, %v959
    %v1228 = vpack.c.b16 %v968, %v964
    %v1229 = vpack.c.b16 %v969, %v965
    %v1230 = vpack.c.b16 %v970, %v966
    %v1231 = vpack.c.b16 %v971, %v967
    %v1232 = vpack.c.b16 %v976, %v972
    %v1233 = vpack.c.b16 %v977, %v973
    %v1234 = vpack.c.b16 %v978, %v974
    %v1235 = vpack.c.b16 %v979, %v975
    %v1236 = vpack.c.b16 %v984, %v980
    %v1237 = vpack.c.b16 %v985, %v981
    %v1238 = vpack.c.b16 %v986, %v982
    %v1239 = vpack.c.b16 %v987, %v983
    %v1240 = vpack.c.b16 %v992, %v988
    %v1241 = vpack.c.b16 %v993, %v989
    %v1242 = vpack.c.b16 %v994, %v990
    %v1243 = vpack.c.b16 %v995, %v991
    %v1244 = vpack.c.b16 %v1000, %v996
    %v1245 = vpack.c.b16 %v1001, %v997
    %v1246 = vpack.c.b16 %v1002, %v998
    %v1247 = vpack.c.b16 %v1003, %v999
    %v1248 = vpack.c.b16 %v1008, %v1004
    %v1249 = vpack.c.b16 %v1009, %v1005
    %v1250 = vpack.c.b16 %v1010, %v1006
    %v1251 = vpack.c.b16 %v1011, %v1007
    %v1252 = vpack.c.b16 %v1016, %v1012
    %v1253 = vpack.c.b16 %v1017, %v1013
    %v1254 = vpack.c.b16 %v1018, %v1014
    %v1255 = vpack.c.b16 %v1019, %v1015
    %v1256 = vpack.c.b16 %v1024, %v1020
    %v1257 = vpack.c.b16 %v1025, %v1021
    %v1258 = vpack.c.b16 %v1026, %v1022
    %v1259 = vpack.c.b16 %v1027, %v1023
    %v1260 = vpack.c.b16 %v1032, %v1028
    %v1261 = vpack.c.b16 %v1033, %v1029
    %v1262 = vpack.c.b16 %v1034, %v1030
    %v1263 = vpack.c.b16 %v1035, %v1031
    %v1264 = vpack.c.b16 %v1040, %v1036
    %v1265 = vpack.c.b16 %v1041, %v1037
    %v1266 = vpack.c.b16 %v1042, %v1038
    %v1267 = vpack.c.b16 %v1043, %v1039
    %1492 = vmatprep.subr.bf16.mxu0 %v1073
    %1493 = vmatpush1.bf16.msra.mxu0 %v1072
    %1494 = vmatprep.subr.bf16.mxu0 %v1069
    %1495 = vmatpush1.bf16.msra.mxu0 %v1068
    %1496 = vmatprep.subr.bf16.mxu0 %v1065
    %1497 = vmatpush1.bf16.msra.mxu0 %v1064
    %1498 = vmatprep.subr.bf16.mxu0 %v1061
    %1499 = vmatpush1.bf16.msra.mxu0 %v1060
    %1500 = vmatprep.subr.bf16.mxu0 %v1057
    %1501 = vmatpush1.bf16.msra.mxu0 %v1056
    %1502 = vmatprep.subr.bf16.mxu0 %v1053
    %1503 = vmatpush1.bf16.msra.mxu0 %v1052
    %1504 = vmatprep.subr.bf16.mxu0 %v1049
    %1505 = vmatpush1.bf16.msra.mxu0 %v1048
    %1506 = vmatprep.subr.bf16.mxu0 %v1045
    %1507 = vmatpush1.bf16.msra.mxu0 %v1044
    %1508 = vmatprep.subr.bf16.mxu0 %v1105
    %1509 = vmatpush2.bf16.msra.mxu0 %v1104
    %1510 = vmatprep.subr.bf16.mxu0 %v1101
    %1511 = vmatpush2.bf16.msra.mxu0 %v1100
    %1512 = vmatprep.subr.bf16.mxu0 %v1097
    %1513 = vmatpush2.bf16.msra.mxu0 %v1096
    %1514 = vmatprep.subr.bf16.mxu0 %v1093
    %1515 = vmatpush2.bf16.msra.mxu0 %v1092
    %1516 = vmatprep.subr.bf16.mxu0 %v1089
    %1517 = vmatpush2.bf16.msra.mxu0 %v1088
    %1518 = vmatprep.subr.bf16.mxu0 %v1085
    %1519 = vmatpush2.bf16.msra.mxu0 %v1084
    %1520 = vmatprep.subr.bf16.mxu0 %v1081
    %1521 = vmatpush2.bf16.msra.mxu0 %v1080
    %1522 = vmatprep.subr.bf16.mxu0 %v1077
    %1523 = vmatpush2.bf16.msra.mxu0 %v1076
    %1524 = vmatprep.mubr.bf16.mxu0 %v120
    %1525 = vmatmul.mubr.bf16.gmra.mxu0 %v119
    %v1526 = vpop.f32.mrf.mxu0
    %v1527 = vadd.f32 %v355, %v1526
    %v1528 = vpop.f32.mrf.mxu0
    %v1529 = vadd.f32 %v359, %v1528
    %v1530 = vpop.f32.mrf.mxu0
    %v1531 = vpop.f32.mrf.mxu0
    %1532 = vdwg.mxu0
    %1533 = vmatprep.subr.bf16.mxu0 %v1137
    %1534 = vmatpush1.bf16.msra.mxu0 %v1136
    %1535 = vmatprep.subr.bf16.mxu0 %v1133
    %1536 = vmatpush1.bf16.msra.mxu0 %v1132
    %1537 = vmatprep.subr.bf16.mxu0 %v1129
    %1538 = vmatpush1.bf16.msra.mxu0 %v1128
    %1539 = vmatprep.subr.bf16.mxu0 %v1125
    %1540 = vmatpush1.bf16.msra.mxu0 %v1124
    %1541 = vmatprep.subr.bf16.mxu0 %v1121
    %1542 = vmatpush1.bf16.msra.mxu0 %v1120
    %1543 = vmatprep.subr.bf16.mxu0 %v1117
    %1544 = vmatpush1.bf16.msra.mxu0 %v1116
    %1545 = vmatprep.subr.bf16.mxu0 %v1113
    %1546 = vmatpush1.bf16.msra.mxu0 %v1112
    %1547 = vmatprep.subr.bf16.mxu0 %v1109
    %1548 = vmatpush1.bf16.msra.mxu0 %v1108
    %1549 = vmatprep.subr.bf16.mxu0 %v1169
    %1550 = vmatpush2.bf16.msra.mxu0 %v1168
    %1551 = vmatprep.subr.bf16.mxu0 %v1165
    %1552 = vmatpush2.bf16.msra.mxu0 %v1164
    %1553 = vmatprep.subr.bf16.mxu0 %v1161
    %1554 = vmatpush2.bf16.msra.mxu0 %v1160
    %1555 = vmatprep.subr.bf16.mxu0 %v1157
    %1556 = vmatpush2.bf16.msra.mxu0 %v1156
    %1557 = vmatprep.subr.bf16.mxu0 %v1153
    %1558 = vmatpush2.bf16.msra.mxu0 %v1152
    %1559 = vmatprep.subr.bf16.mxu0 %v1149
    %1560 = vmatpush2.bf16.msra.mxu0 %v1148
    %1561 = vmatprep.subr.bf16.mxu0 %v1145
    %1562 = vmatpush2.bf16.msra.mxu0 %v1144
    %1563 = vmatprep.subr.bf16.mxu0 %v1141
    %1564 = vmatpush2.bf16.msra.mxu0 %v1140
    %1565 = vmatprep.mubr.bf16.mxu0 %v122
    %1566 = vmatmul.mubr.bf16.gmra.mxu0 %v121
    %v1567 = vpop.f32.mrf.mxu0
    %v1568 = vadd.f32 %v1527, %v1567
    %v1569 = vpop.f32.mrf.mxu0
    %v1570 = vadd.f32 %v1529, %v1569
    %v1571 = vpop.f32.mrf.mxu0
    %v1572 = vpop.f32.mrf.mxu0
    %1573 = vdwg.mxu0
    %1574 = vmatprep.subr.bf16.mxu0 %v1201
    %1575 = vmatpush1.bf16.msra.mxu0 %v1200
    %1576 = vmatprep.subr.bf16.mxu0 %v1197
    %1577 = vmatpush1.bf16.msra.mxu0 %v1196
    %1578 = vmatprep.subr.bf16.mxu0 %v1193
    %1579 = vmatpush1.bf16.msra.mxu0 %v1192
    %1580 = vmatprep.subr.bf16.mxu0 %v1189
    %1581 = vmatpush1.bf16.msra.mxu0 %v1188
    %1582 = vmatprep.subr.bf16.mxu0 %v1185
    %1583 = vmatpush1.bf16.msra.mxu0 %v1184
    %1584 = vmatprep.subr.bf16.mxu0 %v1181
    %1585 = vmatpush1.bf16.msra.mxu0 %v1180
    %1586 = vmatprep.subr.bf16.mxu0 %v1177
    %1587 = vmatpush1.bf16.msra.mxu0 %v1176
    %1588 = vmatprep.subr.bf16.mxu0 %v1173
    %1589 = vmatpush1.bf16.msra.mxu0 %v1172
    %1590 = vmatprep.subr.bf16.mxu0 %v1233
    %1591 = vmatpush2.bf16.msra.mxu0 %v1232
    %1592 = vmatprep.subr.bf16.mxu0 %v1229
    %1593 = vmatpush2.bf16.msra.mxu0 %v1228
    %1594 = vmatprep.subr.bf16.mxu0 %v1225
    %1595 = vmatpush2.bf16.msra.mxu0 %v1224
    %1596 = vmatprep.subr.bf16.mxu0 %v1221
    %1597 = vmatpush2.bf16.msra.mxu0 %v1220
    %1598 = vmatprep.subr.bf16.mxu0 %v1217
    %1599 = vmatpush2.bf16.msra.mxu0 %v1216
    %1600 = vmatprep.subr.bf16.mxu0 %v1213
    %1601 = vmatpush2.bf16.msra.mxu0 %v1212
    %1602 = vmatprep.subr.bf16.mxu0 %v1209
    %1603 = vmatpush2.bf16.msra.mxu0 %v1208
    %1604 = vmatprep.subr.bf16.mxu0 %v1205
    %1605 = vmatpush2.bf16.msra.mxu0 %v1204
    %1606 = vmatprep.mubr.bf16.mxu0 %v124
    %1607 = vmatmul.mubr.bf16.gmra.mxu0 %v123
    %v1608 = vpop.f32.mrf.mxu0
    %v1609 = vadd.f32 %v1568, %v1608
    %v1610 = vpop.f32.mrf.mxu0
    %v1611 = vadd.f32 %v1570, %v1610
    %v1612 = vpop.f32.mrf.mxu0
    %v1613 = vpop.f32.mrf.mxu0
    %1614 = vdwg.mxu0
    %1615 = vmatprep.subr.bf16.mxu0 %v1265
    %1616 = vmatpush1.bf16.msra.mxu0 %v1264
    %1617 = vmatprep.subr.bf16.mxu0 %v1261
    %1618 = vmatpush1.bf16.msra.mxu0 %v1260
    %1619 = vmatprep.subr.bf16.mxu0 %v1257
    %1620 = vmatpush1.bf16.msra.mxu0 %v1256
    %1621 = vmatprep.subr.bf16.mxu0 %v1253
    %1622 = vmatpush1.bf16.msra.mxu0 %v1252
    %1623 = vmatprep.subr.bf16.mxu0 %v1249
    %1624 = vmatpush1.bf16.msra.mxu0 %v1248
    %1625 = vmatprep.subr.bf16.mxu0 %v1245
    %1626 = vmatpush1.bf16.msra.mxu0 %v1244
    %1627 = vmatprep.subr.bf16.mxu0 %v1241
    %1628 = vmatpush1.bf16.msra.mxu0 %v1240
    %1629 = vmatprep.subr.bf16.mxu0 %v1237
    %1630 = vmatpush1.bf16.msra.mxu0 %v1236
    %1631 = vmatprep.subr.bf16.mxu0 0
    %1632 = vmatpush2.bf16.msra.mxu0 0
    %1633 = vmatprep.subr.bf16.mxu0 0
    %1634 = vmatpush2.bf16.msra.mxu0 0
    %1635 = vmatprep.subr.bf16.mxu0 0
    %1636 = vmatpush2.bf16.msra.mxu0 0
    %1637 = vmatprep.subr.bf16.mxu0 0
    %1638 = vmatpush2.bf16.msra.mxu0 0
    %1639 = vmatprep.subr.bf16.mxu0 0
    %1640 = vmatpush2.bf16.msra.mxu0 0
    %1641 = vmatprep.subr.bf16.mxu0 0
    %1642 = vmatpush2.bf16.msra.mxu0 0
    %1643 = vmatprep.subr.bf16.mxu0 0
    %1644 = vmatpush2.bf16.msra.mxu0 0
    %1645 = vmatprep.subr.bf16.mxu0 0
    %1646 = vmatpush2.bf16.msra.mxu0 0
    %1647 = vmatprep.mubr.bf16.mxu0 0
    %1648 = vmatmul.mubr.bf16.gmra.mxu0 %v125
    %v1649 = vpop.f32.mrf.mxu0
    %v1650 = vadd.f32 %v1609, %v1649
    %v1651 = vpop.f32.mrf.mxu0
    %v1652 = vadd.f32 %v1611, %v1651
    %v1653 = vpop.f32.mrf.mxu0
    %v1654 = vpop.f32.mrf.mxu0
    %1655 = vdwg.mxu0
    %1656 = vmatprep.subr.bf16.mxu0 %v1075
    %1657 = vmatpush1.bf16.msra.mxu0 %v1074
    %1658 = vmatprep.subr.bf16.mxu0 %v1071
    %1659 = vmatpush1.bf16.msra.mxu0 %v1070
    %1660 = vmatprep.subr.bf16.mxu0 %v1067
    %1661 = vmatpush1.bf16.msra.mxu0 %v1066
    %1662 = vmatprep.subr.bf16.mxu0 %v1063
    %1663 = vmatpush1.bf16.msra.mxu0 %v1062
    %1664 = vmatprep.subr.bf16.mxu0 %v1059
    %1665 = vmatpush1.bf16.msra.mxu0 %v1058
    %1666 = vmatprep.subr.bf16.mxu0 %v1055
    %1667 = vmatpush1.bf16.msra.mxu0 %v1054
    %1668 = vmatprep.subr.bf16.mxu0 %v1051
    %1669 = vmatpush1.bf16.msra.mxu0 %v1050
    %1670 = vmatprep.subr.bf16.mxu0 %v1047
    %1671 = vmatpush1.bf16.msra.mxu0 %v1046
    %1672 = vmatprep.subr.bf16.mxu0 %v1107
    %1673 = vmatpush2.bf16.msra.mxu0 %v1106
    %1674 = vmatprep.subr.bf16.mxu0 %v1103
    %1675 = vmatpush2.bf16.msra.mxu0 %v1102
    %1676 = vmatprep.subr.bf16.mxu0 %v1099
    %1677 = vmatpush2.bf16.msra.mxu0 %v1098
    %1678 = vmatprep.subr.bf16.mxu0 %v1095
    %1679 = vmatpush2.bf16.msra.mxu0 %v1094
    %1680 = vmatprep.subr.bf16.mxu0 %v1091
    %1681 = vmatpush2.bf16.msra.mxu0 %v1090
    %1682 = vmatprep.subr.bf16.mxu0 %v1087
    %1683 = vmatpush2.bf16.msra.mxu0 %v1086
    %1684 = vmatprep.subr.bf16.mxu0 %v1083
    %1685 = vmatpush2.bf16.msra.mxu0 %v1082
    %1686 = vmatprep.subr.bf16.mxu0 %v1079
    %1687 = vmatpush2.bf16.msra.mxu0 %v1078
    %1688 = vmatprep.mubr.bf16.mxu0 %v120
    %1689 = vmatmul.mubr.bf16.gmra.mxu0 %v119
    %v1690 = vpop.f32.mrf.mxu0
    %v1691 = vadd.f32 %v363, %v1690
    %v1692 = vpop.f32.mrf.mxu0
    %v1693 = vadd.f32 %v367, %v1692
    %v1694 = vpop.f32.mrf.mxu0
    %v1695 = vpop.f32.mrf.mxu0
    %1696 = vdwg.mxu0
    %1697 = vmatprep.subr.bf16.mxu0 %v1139
    %1698 = vmatpush1.bf16.msra.mxu0 %v1138
    %1699 = vmatprep.subr.bf16.mxu0 %v1135
    %1700 = vmatpush1.bf16.msra.mxu0 %v1134
    %1701 = vmatprep.subr.bf16.mxu0 %v1131
    %1702 = vmatpush1.bf16.msra.mxu0 %v1130
    %1703 = vmatprep.subr.bf16.mxu0 %v1127
    %1704 = vmatpush1.bf16.msra.mxu0 %v1126
    %1705 = vmatprep.subr.bf16.mxu0 %v1123
    %1706 = vmatpush1.bf16.msra.mxu0 %v1122
    %1707 = vmatprep.subr.bf16.mxu0 %v1119
    %1708 = vmatpush1.bf16.msra.mxu0 %v1118
    %1709 = vmatprep.subr.bf16.mxu0 %v1115
    %1710 = vmatpush1.bf16.msra.mxu0 %v1114
    %1711 = vmatprep.subr.bf16.mxu0 %v1111
    %1712 = vmatpush1.bf16.msra.mxu0 %v1110
    %1713 = vmatprep.subr.bf16.mxu0 %v1171
    %1714 = vmatpush2.bf16.msra.mxu0 %v1170
    %1715 = vmatprep.subr.bf16.mxu0 %v1167
    %1716 = vmatpush2.bf16.msra.mxu0 %v1166
    %1717 = vmatprep.subr.bf16.mxu0 %v1163
    %1718 = vmatpush2.bf16.msra.mxu0 %v1162
    %1719 = vmatprep.subr.bf16.mxu0 %v1159
    %1720 = vmatpush2.bf16.msra.mxu0 %v1158
    %1721 = vmatprep.subr.bf16.mxu0 %v1155
    %1722 = vmatpush2.bf16.msra.mxu0 %v1154
    %1723 = vmatprep.subr.bf16.mxu0 %v1151
    %1724 = vmatpush2.bf16.msra.mxu0 %v1150
    %1725 = vmatprep.subr.bf16.mxu0 %v1147
    %1726 = vmatpush2.bf16.msra.mxu0 %v1146
    %1727 = vmatprep.subr.bf16.mxu0 %v1143
    %1728 = vmatpush2.bf16.msra.mxu0 %v1142
    %1729 = vmatprep.mubr.bf16.mxu0 %v122
    %1730 = vmatmul.mubr.bf16.gmra.mxu0 %v121
    %v1731 = vpop.f32.mrf.mxu0
    %v1732 = vadd.f32 %v1691, %v1731
    %v1733 = vpop.f32.mrf.mxu0
    %v1734 = vadd.f32 %v1693, %v1733
    %v1735 = vpop.f32.mrf.mxu0
    %v1736 = vpop.f32.mrf.mxu0
    %1737 = vdwg.mxu0
    %1738 = vmatprep.subr.bf16.mxu0 %v1203
    %1739 = vmatpush1.bf16.msra.mxu0 %v1202
    %1740 = vmatprep.subr.bf16.mxu0 %v1199
    %1741 = vmatpush1.bf16.msra.mxu0 %v1198
    %1742 = vmatprep.subr.bf16.mxu0 %v1195
    %1743 = vmatpush1.bf16.msra.mxu0 %v1194
    %1744 = vmatprep.subr.bf16.mxu0 %v1191
    %1745 = vmatpush1.bf16.msra.mxu0 %v1190
    %1746 = vmatprep.subr.bf16.mxu0 %v1187
    %1747 = vmatpush1.bf16.msra.mxu0 %v1186
    %1748 = vmatprep.subr.bf16.mxu0 %v1183
    %1749 = vmatpush1.bf16.msra.mxu0 %v1182
    %1750 = vmatprep.subr.bf16.mxu0 %v1179
    %1751 = vmatpush1.bf16.msra.mxu0 %v1178
    %1752 = vmatprep.subr.bf16.mxu0 %v1175
    %1753 = vmatpush1.bf16.msra.mxu0 %v1174
    %1754 = vmatprep.subr.bf16.mxu0 %v1235
    %1755 = vmatpush2.bf16.msra.mxu0 %v1234
    %1756 = vmatprep.subr.bf16.mxu0 %v1231
    %1757 = vmatpush2.bf16.msra.mxu0 %v1230
    %1758 = vmatprep.subr.bf16.mxu0 %v1227
    %1759 = vmatpush2.bf16.msra.mxu0 %v1226
    %1760 = vmatprep.subr.bf16.mxu0 %v1223
    %1761 = vmatpush2.bf16.msra.mxu0 %v1222
    %1762 = vmatprep.subr.bf16.mxu0 %v1219
    %1763 = vmatpush2.bf16.msra.mxu0 %v1218
    %1764 = vmatprep.subr.bf16.mxu0 %v1215
    %1765 = vmatpush2.bf16.msra.mxu0 %v1214
    %1766 = vmatprep.subr.bf16.mxu0 %v1211
    %1767 = vmatpush2.bf16.msra.mxu0 %v1210
    %1768 = vmatprep.subr.bf16.mxu0 %v1207
    %1769 = vmatpush2.bf16.msra.mxu0 %v1206
    %1770 = vmatprep.mubr.bf16.mxu0 %v124
    %1771 = vmatmul.mubr.bf16.gmra.mxu0 %v123
    %v1772 = vpop.f32.mrf.mxu0
    %v1773 = vadd.f32 %v1732, %v1772
    %v1774 = vpop.f32.mrf.mxu0
    %v1775 = vadd.f32 %v1734, %v1774
    %v1776 = vpop.f32.mrf.mxu0
    %v1777 = vpop.f32.mrf.mxu0
    %1778 = vdwg.mxu0
    %1779 = vmatprep.subr.bf16.mxu0 %v1267
    %1780 = vmatpush1.bf16.msra.mxu0 %v1266
    %1781 = vmatprep.subr.bf16.mxu0 %v1263
    %1782 = vmatpush1.bf16.msra.mxu0 %v1262
    %1783 = vmatprep.subr.bf16.mxu0 %v1259
    %1784 = vmatpush1.bf16.msra.mxu0 %v1258
    %1785 = vmatprep.subr.bf16.mxu0 %v1255
    %1786 = vmatpush1.bf16.msra.mxu0 %v1254
    %1787 = vmatprep.subr.bf16.mxu0 %v1251
    %1788 = vmatpush1.bf16.msra.mxu0 %v1250
    %1789 = vmatprep.subr.bf16.mxu0 %v1247
    %1790 = vmatpush1.bf16.msra.mxu0 %v1246
    %1791 = vmatprep.subr.bf16.mxu0 %v1243
    %1792 = vmatpush1.bf16.msra.mxu0 %v1242
    %1793 = vmatprep.subr.bf16.mxu0 %v1239
    %1794 = vmatpush1.bf16.msra.mxu0 %v1238
    %1795 = vmatprep.subr.bf16.mxu0 0
    %1796 = vmatpush2.bf16.msra.mxu0 0
    %1797 = vmatprep.subr.bf16.mxu0 0
    %1798 = vmatpush2.bf16.msra.mxu0 0
    %1799 = vmatprep.subr.bf16.mxu0 0
    %1800 = vmatpush2.bf16.msra.mxu0 0
    %1801 = vmatprep.subr.bf16.mxu0 0
    %1802 = vmatpush2.bf16.msra.mxu0 0
    %1803 = vmatprep.subr.bf16.mxu0 0
    %1804 = vmatpush2.bf16.msra.mxu0 0
    %1805 = vmatprep.subr.bf16.mxu0 0
    %1806 = vmatpush2.bf16.msra.mxu0 0
    %1807 = vmatprep.subr.bf16.mxu0 0
    %1808 = vmatpush2.bf16.msra.mxu0 0
    %1809 = vmatprep.subr.bf16.mxu0 0
    %1810 = vmatpush2.bf16.msra.mxu0 0
    %1811 = vmatprep.mubr.bf16.mxu0 0
    %1812 = vmatmul.mubr.bf16.gmra.mxu0 %v125
    %v1813 = vpop.f32.mrf.mxu0
    %v1814 = vadd.f32 %v1773, %v1813
    %v1815 = vpop.f32.mrf.mxu0
    %v1816 = vadd.f32 %v1775, %v1815
    %v1817 = vpop.f32.mrf.mxu0
    %v1818 = vpop.f32.mrf.mxu0
    %1819 = vdwg.mxu0
    %v1820 = vmax.f32 %v1650, 0.0
    %v1821 = vmax.f32 %v1652, 0.0
    %v1822 = vmax.f32 %v1814, 0.0
    %v1823 = vmax.f32 %v1816, 0.0
    %v1824 = vpack.c.bf16 %v1820, %v1820
    %v1825 = vpack.c.bf16 %v1821, %v1821
    %v1826 = vpack.c.bf16 %v1822, %v1822
    %v1827 = vpack.c.bf16 %v1823, %v1823
    %v1828 = vld [vmem:[#allocation8] sm:$0xff]
    %v1829 = vld [vmem:[#allocation8 + $0x8] sm:$0xf]
    %v1830 = vld [vmem:[#allocation8 + $0xc] sm:$0xff]
    %v1831 = vld [vmem:[#allocation8 + $0x14] sm:$0xf]
    %v1832 = vld [vmem:[#allocation8 + $0x18] sm:$0xff]
    %v1833 = vld [vmem:[#allocation8 + $0x20] sm:$0xf]
    %v1834 = vld [vmem:[#allocation8 + $0x24] sm:$0xff]
    %v1835 = vld [vmem:[#allocation8 + $0x2c] sm:$0xf]
    %v1836 = vld [vmem:[#allocation8 + $0x30] sm:$0xff]
    %v1837 = vld [vmem:[#allocation8 + $0x38] sm:$0xf]
    %v1838 = vld [vmem:[#allocation8 + $0x3c] sm:$0xff]
    %v1839 = vld [vmem:[#allocation8 + $0x44] sm:$0xf]
    %v1840 = vld [vmem:[#allocation8 + $0x48] sm:$0xff]
    %v1841 = vld [vmem:[#allocation8 + $0x50] sm:$0xf]
    %v1842 = vld [vmem:[#allocation8 + $0x54] sm:$0xff]
    %v1843 = vld [vmem:[#allocation8 + $0x5c] sm:$0xf]
    %v1844 = vld [vmem:[#allocation8 + $0x60] sm:$0xff]
    %v1845 = vld [vmem:[#allocation8 + $0x68] sm:$0xf]
    %v1846 = vld [vmem:[#allocation8 + $0x6c] sm:$0xff]
    %v1847 = vld [vmem:[#allocation8 + $0x74] sm:$0xf]
    %v1848 = vld [vmem:[#allocation8 + $0x78] sm:$0xff]
    %v1849 = vld [vmem:[#allocation8 + $0x80] sm:$0xf]
    %v1850 = vld [vmem:[#allocation8 + $0x84] sm:$0xff]
    %v1851 = vld [vmem:[#allocation8 + $0x8c] sm:$0xf]
    %v1852 = vld [vmem:[#allocation8 + $0x90] sm:$0xff]
    %v1853 = vld [vmem:[#allocation8 + $0x98] sm:$0xf]
    %v1854 = vld [vmem:[#allocation8 + $0x9c] sm:$0xff]
    %v1855 = vld [vmem:[#allocation8 + $0xa4] sm:$0xf]
    %v1856 = vld [vmem:[#allocation8 + $0xa8] sm:$0xff]
    %v1857 = vld [vmem:[#allocation8 + $0xb0] sm:$0xf]
    %v1858 = vld [vmem:[#allocation8 + $0xb4] sm:$0xff]
    %v1859 = vld [vmem:[#allocation8 + $0xbc] sm:$0xf]
    %v1860 = vld [vmem:[#allocation8 + $0xc0] sm:$0xff]
    %v1861 = vld [vmem:[#allocation8 + $0xc8] sm:$0xf]
    %v1862 = vld [vmem:[#allocation8 + $0xcc] sm:$0xff]
    %v1863 = vld [vmem:[#allocation8 + $0xd4] sm:$0xf]
    %v1864 = vld [vmem:[#allocation8 + $0xd8] sm:$0xff]
    %v1865 = vld [vmem:[#allocation8 + $0xe0] sm:$0xf]
    %v1866 = vld [vmem:[#allocation8 + $0xe4] sm:$0xff]
    %v1867 = vld [vmem:[#allocation8 + $0xec] sm:$0xf]
    %v1868 = vld [vmem:[#allocation8 + $0xf0] sm:$0xff]
    %v1869 = vld [vmem:[#allocation8 + $0xf8] sm:$0xf]
    %v1870 = vld [vmem:[#allocation8 + $0xfc] sm:$0xff]
    %v1871 = vld [vmem:[#allocation8 + $0x104] sm:$0xf]
    %v1872 = vld [vmem:[#allocation8 + $0x108] sm:$0xff]
    %v1873 = vld [vmem:[#allocation8 + $0x110] sm:$0xf]
    %v1874 = vld [vmem:[#allocation8 + $0x114] sm:$0xff]
    %v1875 = vld [vmem:[#allocation8 + $0x11c] sm:$0xf]
    %v1876 = vld [vmem:[#allocation8 + $0x120] sm:$0xff]
    %v1877 = vld [vmem:[#allocation8 + $0x128] sm:$0xf]
    %v1878 = vld [vmem:[#allocation8 + $0x12c] sm:$0xff]
    %v1879 = vld [vmem:[#allocation8 + $0x134] sm:$0xf]
    %v1880 = vld [vmem:[#allocation8 + $0x138] sm:$0xff]
    %v1881 = vld [vmem:[#allocation8 + $0x140] sm:$0xf]
    %v1882 = vld [vmem:[#allocation8 + $0x144] sm:$0xff]
    %v1883 = vld [vmem:[#allocation8 + $0x14c] sm:$0xf]
    %v1884 = vld [vmem:[#allocation8 + $0x150] sm:$0xff]
    %v1885 = vld [vmem:[#allocation8 + $0x158] sm:$0xf]
    %v1886 = vld [vmem:[#allocation8 + $0x15c] sm:$0xff]
    %v1887 = vld [vmem:[#allocation8 + $0x164] sm:$0xf]
    %v1888 = vld [vmem:[#allocation8 + $0x168] sm:$0xff]
    %v1889 = vld [vmem:[#allocation8 + $0x170] sm:$0xf]
    %v1890 = vld [vmem:[#allocation8 + $0x174] sm:$0xff]
    %v1891 = vld [vmem:[#allocation8 + $0x17c] sm:$0xf]
    %v1892 = vld [vmem:[#allocation8 + $0x180] sm:$0xff]
    %v1893 = vld [vmem:[#allocation8 + $0x188] sm:$0xf]
    %v1894 = vld [vmem:[#allocation8 + $0x18c] sm:$0xff]
    %v1895 = vld [vmem:[#allocation8 + $0x194] sm:$0xf]
    %v1896 = vld [vmem:[#allocation8 + $0x198] sm:$0xff]
    %v1897 = vld [vmem:[#allocation8 + $0x1a0] sm:$0xf]
    %v1898 = vld [vmem:[#allocation8 + $0x1a4] sm:$0xff]
    %v1899 = vld [vmem:[#allocation8 + $0x1ac] sm:$0xf]
    %v1900 = vld [vmem:[#allocation8 + $0x1b0] sm:$0xff]
    %v1901 = vld [vmem:[#allocation8 + $0x1b8] sm:$0xf]
    %v1902 = vld [vmem:[#allocation8 + $0x1bc] sm:$0xff]
    %v1903 = vld [vmem:[#allocation8 + $0x1c4] sm:$0xf]
    %v1904 = vld [vmem:[#allocation8 + $0x1c8] sm:$0xff]
    %v1905 = vld [vmem:[#allocation8 + $0x1d0] sm:$0xf]
    %v1906 = vld [vmem:[#allocation8 + $0x1d4] sm:$0xff]
    %v1907 = vld [vmem:[#allocation8 + $0x1dc] sm:$0xf]
    %v1908 = vld [vmem:[#allocation8 + $0x1e0] sm:$0xff]
    %v1909 = vld [vmem:[#allocation8 + $0x1e8] sm:$0xf]
    %v1910 = vld [vmem:[#allocation8 + $0x1ec] sm:$0xff]
    %v1911 = vld [vmem:[#allocation8 + $0x1f4] sm:$0xf]
    %v1912 = vld [vmem:[#allocation8 + $0x1f8] sm:$0xff]
    %v1913 = vld [vmem:[#allocation8 + $0x200] sm:$0xf]
    %v1914 = vld [vmem:[#allocation8 + $0x204] sm:$0xff]
    %v1915 = vld [vmem:[#allocation8 + $0x20c] sm:$0xf]
    %v1916 = vld [vmem:[#allocation8 + $0x210] sm:$0xff]
    %v1917 = vld [vmem:[#allocation8 + $0x218] sm:$0xf]
    %v1918 = vld [vmem:[#allocation8 + $0x21c] sm:$0xff]
    %v1919 = vld [vmem:[#allocation8 + $0x224] sm:$0xf]
    %v1920 = vld [vmem:[#allocation8 + $0x228] sm:$0xff]
    %v1921 = vld [vmem:[#allocation8 + $0x230] sm:$0xf]
    %v1922 = vld [vmem:[#allocation8 + $0x234] sm:$0xff]
    %v1923 = vld [vmem:[#allocation8 + $0x23c] sm:$0xf]
    %v1924 = vld [vmem:[#allocation8 + $0x240] sm:$0xff]
    %v1925 = vld [vmem:[#allocation8 + $0x248] sm:$0xf]
    %v1926 = vld [vmem:[#allocation8 + $0x24c] sm:$0xff]
    %v1927 = vld [vmem:[#allocation8 + $0x254] sm:$0xf]
    %v1928 = vld [vmem:[#allocation8 + $0x258] sm:$0xff]
    %v1929 = vld [vmem:[#allocation8 + $0x260] sm:$0xf]
    %v1930 = vld [vmem:[#allocation8 + $0x264] sm:$0xff]
    %v1931 = vld [vmem:[#allocation8 + $0x26c] sm:$0xf]
    %v1932 = vld [vmem:[#allocation8 + $0x270] sm:$0xff]
    %v1933 = vld [vmem:[#allocation8 + $0x278] sm:$0xf]
    %v1934 = vld [vmem:[#allocation8 + $0x27c] sm:$0xff]
    %v1935 = vld [vmem:[#allocation8 + $0x284] sm:$0xf]
    %v1936 = vld [vmem:[#allocation8 + $0x288] sm:$0xff]
    %v1937 = vld [vmem:[#allocation8 + $0x290] sm:$0xf]
    %v1938 = vld [vmem:[#allocation8 + $0x294] sm:$0xff]
    %v1939 = vld [vmem:[#allocation8 + $0x29c] sm:$0xf]
    %v1940 = vld [vmem:[#allocation8 + $0x2a0] sm:$0xff]
    %v1941 = vld [vmem:[#allocation8 + $0x2a8] sm:$0xf]
    %v1942 = vld [vmem:[#allocation8 + $0x2ac] sm:$0xff]
    %v1943 = vld [vmem:[#allocation8 + $0x2b4] sm:$0xf]
    %v1944 = vld [vmem:[#allocation8 + $0x2b8] sm:$0xff]
    %v1945 = vld [vmem:[#allocation8 + $0x2c0] sm:$0xf]
    %v1946 = vld [vmem:[#allocation8 + $0x2c4] sm:$0xff]
    %v1947 = vld [vmem:[#allocation8 + $0x2cc] sm:$0xf]
    %v1948 = vld [vmem:[#allocation8 + $0x2d0] sm:$0xff]
    %v1949 = vld [vmem:[#allocation8 + $0x2d8] sm:$0xf]
    %v1950 = vld [vmem:[#allocation8 + $0x2dc] sm:$0xff]
    %v1951 = vld [vmem:[#allocation8 + $0x2e4] sm:$0xf]
    %v1952 = vld [vmem:[#allocation8 + $0x2e8] sm:$0xff]
    %v1953 = vld [vmem:[#allocation8 + $0x2f0] sm:$0xf]
    %v1954 = vld [vmem:[#allocation8 + $0x2f4] sm:$0xff]
    %v1955 = vld [vmem:[#allocation8 + $0x2fc] sm:$0xf]
    %v1956 = vld [vmem:[%s4] sm:$0x7]
    %v1958 = vlaneseq
    %v1959 = vshrl.u32 %v1958, 7
    %v1960 = vsub.s32 0, %v1959
    %v1961 = vrot.slane %v1956, %v1960
    %v1962 = vlaneseq
    %v1963 = vshrl.u32 %v1962, 7
    %v1964 = vsub.s32 1, %v1963
    %v1965 = vrot.slane %v1956, %v1964
    %v1966 = vlaneseq
    %v1967 = vshrl.u32 %v1966, 7
    %v1968 = vsub.s32 2, %v1967
    %v1969 = vrot.slane %v1956, %v1968
    %v2101 = vunpack.c.l.b16 %v1828
    %v2102 = vunpack.c.h.b16 %v1828
    %v2103 = vunpack.c.l.b16 %v1829
    %v2104 = vunpack.c.l.b16 %v1830
    %v2105 = vunpack.c.h.b16 %v1830
    %v2106 = vunpack.c.l.b16 %v1831
    %v2107 = vunpack.c.l.b16 %v1832
    %v2108 = vunpack.c.h.b16 %v1832
    %v2109 = vunpack.c.l.b16 %v1833
    %v2110 = vunpack.c.l.b16 %v1834
    %v2111 = vunpack.c.h.b16 %v1834
    %v2112 = vunpack.c.l.b16 %v1835
    %v2113 = vunpack.c.l.b16 %v1836
    %v2114 = vunpack.c.h.b16 %v1836
    %v2115 = vunpack.c.l.b16 %v1837
    %v2116 = vunpack.c.l.b16 %v1838
    %v2117 = vunpack.c.h.b16 %v1838
    %v2118 = vunpack.c.l.b16 %v1839
    %v2119 = vunpack.c.l.b16 %v1840
    %v2120 = vunpack.c.h.b16 %v1840
    %v2121 = vunpack.c.l.b16 %v1841
    %v2122 = vunpack.c.l.b16 %v1842
    %v2123 = vunpack.c.h.b16 %v1842
    %v2124 = vunpack.c.l.b16 %v1843
    %v2125 = vunpack.c.l.b16 %v1844
    %v2126 = vunpack.c.h.b16 %v1844
    %v2127 = vunpack.c.l.b16 %v1845
    %v2128 = vunpack.c.l.b16 %v1846
    %v2129 = vunpack.c.h.b16 %v1846
    %v2130 = vunpack.c.l.b16 %v1847
    %v2131 = vunpack.c.l.b16 %v1848
    %v2132 = vunpack.c.h.b16 %v1848
    %v2133 = vunpack.c.l.b16 %v1849
    %v2134 = vunpack.c.l.b16 %v1850
    %v2135 = vunpack.c.h.b16 %v1850
    %v2136 = vunpack.c.l.b16 %v1851
    %v2137 = vunpack.c.l.b16 %v1852
    %v2138 = vunpack.c.h.b16 %v1852
    %v2139 = vunpack.c.l.b16 %v1853
    %v2140 = vunpack.c.l.b16 %v1854
    %v2141 = vunpack.c.h.b16 %v1854
    %v2142 = vunpack.c.l.b16 %v1855
    %v2143 = vunpack.c.l.b16 %v1856
    %v2144 = vunpack.c.h.b16 %v1856
    %v2145 = vunpack.c.l.b16 %v1857
    %v2146 = vunpack.c.l.b16 %v1858
    %v2147 = vunpack.c.h.b16 %v1858
    %v2148 = vunpack.c.l.b16 %v1859
    %v2149 = vunpack.c.l.b16 %v1860
    %v2150 = vunpack.c.h.b16 %v1860
    %v2151 = vunpack.c.l.b16 %v1861
    %v2152 = vunpack.c.l.b16 %v1862
    %v2153 = vunpack.c.h.b16 %v1862
    %v2154 = vunpack.c.l.b16 %v1863
    %v2155 = vunpack.c.l.b16 %v1864
    %v2156 = vunpack.c.h.b16 %v1864
    %v2157 = vunpack.c.l.b16 %v1865
    %v2158 = vunpack.c.l.b16 %v1866
    %v2159 = vunpack.c.h.b16 %v1866
    %v2160 = vunpack.c.l.b16 %v1867
    %v2161 = vunpack.c.l.b16 %v1868
    %v2162 = vunpack.c.h.b16 %v1868
    %v2163 = vunpack.c.l.b16 %v1869
    %v2164 = vunpack.c.l.b16 %v1870
    %v2165 = vunpack.c.h.b16 %v1870
    %v2166 = vunpack.c.l.b16 %v1871
    %v2167 = vunpack.c.l.b16 %v1872
    %v2168 = vunpack.c.h.b16 %v1872
    %v2169 = vunpack.c.l.b16 %v1873
    %v2170 = vunpack.c.l.b16 %v1874
    %v2171 = vunpack.c.h.b16 %v1874
    %v2172 = vunpack.c.l.b16 %v1875
    %v2173 = vunpack.c.l.b16 %v1876
    %v2174 = vunpack.c.h.b16 %v1876
    %v2175 = vunpack.c.l.b16 %v1877
    %v2176 = vunpack.c.l.b16 %v1878
    %v2177 = vunpack.c.h.b16 %v1878
    %v2178 = vunpack.c.l.b16 %v1879
    %v2179 = vunpack.c.l.b16 %v1880
    %v2180 = vunpack.c.h.b16 %v1880
    %v2181 = vunpack.c.l.b16 %v1881
    %v2182 = vunpack.c.l.b16 %v1882
    %v2183 = vunpack.c.h.b16 %v1882
    %v2184 = vunpack.c.l.b16 %v1883
    %v2185 = vunpack.c.l.b16 %v1884
    %v2186 = vunpack.c.h.b16 %v1884
    %v2187 = vunpack.c.l.b16 %v1885
    %v2188 = vunpack.c.l.b16 %v1886
    %v2189 = vunpack.c.h.b16 %v1886
    %v2190 = vunpack.c.l.b16 %v1887
    %v2191 = vunpack.c.l.b16 %v1888
    %v2192 = vunpack.c.h.b16 %v1888
    %v2193 = vunpack.c.l.b16 %v1889
    %v2194 = vunpack.c.l.b16 %v1890
    %v2195 = vunpack.c.h.b16 %v1890
    %v2196 = vunpack.c.l.b16 %v1891
    %v2197 = vunpack.c.l.b16 %v1892
    %v2198 = vunpack.c.h.b16 %v1892
    %v2199 = vunpack.c.l.b16 %v1893
    %v2200 = vunpack.c.l.b16 %v1894
    %v2201 = vunpack.c.h.b16 %v1894
    %v2202 = vunpack.c.l.b16 %v1895
    %v2203 = vunpack.c.l.b16 %v1896
    %v2204 = vunpack.c.h.b16 %v1896
    %v2205 = vunpack.c.l.b16 %v1897
    %v2206 = vunpack.c.l.b16 %v1898
    %v2207 = vunpack.c.h.b16 %v1898
    %v2208 = vunpack.c.l.b16 %v1899
    %v2209 = vunpack.c.l.b16 %v1900
    %v2210 = vunpack.c.h.b16 %v1900
    %v2211 = vunpack.c.l.b16 %v1901
    %v2212 = vunpack.c.l.b16 %v1902
    %v2213 = vunpack.c.h.b16 %v1902
    %v2214 = vunpack.c.l.b16 %v1903
    %v2215 = vunpack.c.l.b16 %v1904
    %v2216 = vunpack.c.h.b16 %v1904
    %v2217 = vunpack.c.l.b16 %v1905
    %v2218 = vunpack.c.l.b16 %v1906
    %v2219 = vunpack.c.h.b16 %v1906
    %v2220 = vunpack.c.l.b16 %v1907
    %v2221 = vunpack.c.l.b16 %v1908
    %v2222 = vunpack.c.h.b16 %v1908
    %v2223 = vunpack.c.l.b16 %v1909
    %v2224 = vunpack.c.l.b16 %v1910
    %v2225 = vunpack.c.h.b16 %v1910
    %v2226 = vunpack.c.l.b16 %v1911
    %v2227 = vunpack.c.l.b16 %v1912
    %v2228 = vunpack.c.h.b16 %v1912
    %v2229 = vunpack.c.l.b16 %v1913
    %v2230 = vunpack.c.l.b16 %v1914
    %v2231 = vunpack.c.h.b16 %v1914
    %v2232 = vunpack.c.l.b16 %v1915
    %v2233 = vunpack.c.l.b16 %v1916
    %v2234 = vunpack.c.h.b16 %v1916
    %v2235 = vunpack.c.l.b16 %v1917
    %v2236 = vunpack.c.l.b16 %v1918
    %v2237 = vunpack.c.h.b16 %v1918
    %v2238 = vunpack.c.l.b16 %v1919
    %v2239 = vunpack.c.l.b16 %v1920
    %v2240 = vunpack.c.h.b16 %v1920
    %v2241 = vunpack.c.l.b16 %v1921
    %v2242 = vunpack.c.l.b16 %v1922
    %v2243 = vunpack.c.h.b16 %v1922
    %v2244 = vunpack.c.l.b16 %v1923
    %v2245 = vunpack.c.l.b16 %v1924
    %v2246 = vunpack.c.h.b16 %v1924
    %v2247 = vunpack.c.l.b16 %v1925
    %v2248 = vunpack.c.l.b16 %v1926
    %v2249 = vunpack.c.h.b16 %v1926
    %v2250 = vunpack.c.l.b16 %v1927
    %v2251 = vunpack.c.l.b16 %v1928
    %v2252 = vunpack.c.h.b16 %v1928
    %v2253 = vunpack.c.l.b16 %v1929
    %v2254 = vunpack.c.l.b16 %v1930
    %v2255 = vunpack.c.h.b16 %v1930
    %v2256 = vunpack.c.l.b16 %v1931
    %v2257 = vunpack.c.l.b16 %v1932
    %v2258 = vunpack.c.h.b16 %v1932
    %v2259 = vunpack.c.l.b16 %v1933
    %v2260 = vunpack.c.l.b16 %v1934
    %v2261 = vunpack.c.h.b16 %v1934
    %v2262 = vunpack.c.l.b16 %v1935
    %v2263 = vunpack.c.l.b16 %v1936
    %v2264 = vunpack.c.h.b16 %v1936
    %v2265 = vunpack.c.l.b16 %v1937
    %v2266 = vunpack.c.l.b16 %v1938
    %v2267 = vunpack.c.h.b16 %v1938
    %v2268 = vunpack.c.l.b16 %v1939
    %v2269 = vunpack.c.l.b16 %v1940
    %v2270 = vunpack.c.h.b16 %v1940
    %v2271 = vunpack.c.l.b16 %v1941
    %v2272 = vunpack.c.l.b16 %v1942
    %v2273 = vunpack.c.h.b16 %v1942
    %v2274 = vunpack.c.l.b16 %v1943
    %v2275 = vunpack.c.l.b16 %v1944
    %v2276 = vunpack.c.h.b16 %v1944
    %v2277 = vunpack.c.l.b16 %v1945
    %v2278 = vunpack.c.l.b16 %v1946
    %v2279 = vunpack.c.h.b16 %v1946
    %v2280 = vunpack.c.l.b16 %v1947
    %v2281 = vunpack.c.l.b16 %v1948
    %v2282 = vunpack.c.h.b16 %v1948
    %v2283 = vunpack.c.l.b16 %v1949
    %v2284 = vunpack.c.l.b16 %v1950
    %v2285 = vunpack.c.h.b16 %v1950
    %v2286 = vunpack.c.l.b16 %v1951
    %v2287 = vunpack.c.l.b16 %v1952
    %v2288 = vunpack.c.h.b16 %v1952
    %v2289 = vunpack.c.l.b16 %v1953
    %v2290 = vunpack.c.l.b16 %v1954
    %v2291 = vunpack.c.h.b16 %v1954
    %v2292 = vunpack.c.l.b16 %v1955
    %v2293 = vpack.c.b16 %v2104, %v2101
    %v2294 = vpack.c.b16 %v2105, %v2102
    %v2295 = vpack.c.b16 %v2106, %v2103
    %v2296 = vpack.c.b16 %v2110, %v2107
    %v2297 = vpack.c.b16 %v2111, %v2108
    %v2298 = vpack.c.b16 %v2112, %v2109
    %v2299 = vpack.c.b16 %v2116, %v2113
    %v2300 = vpack.c.b16 %v2117, %v2114
    %v2301 = vpack.c.b16 %v2118, %v2115
    %v2302 = vpack.c.b16 %v2122, %v2119
    %v2303 = vpack.c.b16 %v2123, %v2120
    %v2304 = vpack.c.b16 %v2124, %v2121
    %v2305 = vpack.c.b16 %v2128, %v2125
    %v2306 = vpack.c.b16 %v2129, %v2126
    %v2307 = vpack.c.b16 %v2130, %v2127
    %v2308 = vpack.c.b16 %v2134, %v2131
    %v2309 = vpack.c.b16 %v2135, %v2132
    %v2310 = vpack.c.b16 %v2136, %v2133
    %v2311 = vpack.c.b16 %v2140, %v2137
    %v2312 = vpack.c.b16 %v2141, %v2138
    %v2313 = vpack.c.b16 %v2142, %v2139
    %v2314 = vpack.c.b16 %v2146, %v2143
    %v2315 = vpack.c.b16 %v2147, %v2144
    %v2316 = vpack.c.b16 %v2148, %v2145
    %v2317 = vpack.c.b16 %v2152, %v2149
    %v2318 = vpack.c.b16 %v2153, %v2150
    %v2319 = vpack.c.b16 %v2154, %v2151
    %v2320 = vpack.c.b16 %v2158, %v2155
    %v2321 = vpack.c.b16 %v2159, %v2156
    %v2322 = vpack.c.b16 %v2160, %v2157
    %v2323 = vpack.c.b16 %v2164, %v2161
    %v2324 = vpack.c.b16 %v2165, %v2162
    %v2325 = vpack.c.b16 %v2166, %v2163
    %v2326 = vpack.c.b16 %v2170, %v2167
    %v2327 = vpack.c.b16 %v2171, %v2168
    %v2328 = vpack.c.b16 %v2172, %v2169
    %v2329 = vpack.c.b16 %v2176, %v2173
    %v2330 = vpack.c.b16 %v2177, %v2174
    %v2331 = vpack.c.b16 %v2178, %v2175
    %v2332 = vpack.c.b16 %v2182, %v2179
    %v2333 = vpack.c.b16 %v2183, %v2180
    %v2334 = vpack.c.b16 %v2184, %v2181
    %v2335 = vpack.c.b16 %v2188, %v2185
    %v2336 = vpack.c.b16 %v2189, %v2186
    %v2337 = vpack.c.b16 %v2190, %v2187
    %v2338 = vpack.c.b16 %v2194, %v2191
    %v2339 = vpack.c.b16 %v2195, %v2192
    %v2340 = vpack.c.b16 %v2196, %v2193
    %v2341 = vpack.c.b16 %v2200, %v2197
    %v2342 = vpack.c.b16 %v2201, %v2198
    %v2343 = vpack.c.b16 %v2202, %v2199
    %v2344 = vpack.c.b16 %v2206, %v2203
    %v2345 = vpack.c.b16 %v2207, %v2204
    %v2346 = vpack.c.b16 %v2208, %v2205
    %v2347 = vpack.c.b16 %v2212, %v2209
    %v2348 = vpack.c.b16 %v2213, %v2210
    %v2349 = vpack.c.b16 %v2214, %v2211
    %v2350 = vpack.c.b16 %v2218, %v2215
    %v2351 = vpack.c.b16 %v2219, %v2216
    %v2352 = vpack.c.b16 %v2220, %v2217
    %v2353 = vpack.c.b16 %v2224, %v2221
    %v2354 = vpack.c.b16 %v2225, %v2222
    %v2355 = vpack.c.b16 %v2226, %v2223
    %v2356 = vpack.c.b16 %v2230, %v2227
    %v2357 = vpack.c.b16 %v2231, %v2228
    %v2358 = vpack.c.b16 %v2232, %v2229
    %v2359 = vpack.c.b16 %v2236, %v2233
    %v2360 = vpack.c.b16 %v2237, %v2234
    %v2361 = vpack.c.b16 %v2238, %v2235
    %v2362 = vpack.c.b16 %v2242, %v2239
    %v2363 = vpack.c.b16 %v2243, %v2240
    %v2364 = vpack.c.b16 %v2244, %v2241
    %v2365 = vpack.c.b16 %v2248, %v2245
    %v2366 = vpack.c.b16 %v2249, %v2246
    %v2367 = vpack.c.b16 %v2250, %v2247
    %v2368 = vpack.c.b16 %v2254, %v2251
    %v2369 = vpack.c.b16 %v2255, %v2252
    %v2370 = vpack.c.b16 %v2256, %v2253
    %v2371 = vpack.c.b16 %v2260, %v2257
    %v2372 = vpack.c.b16 %v2261, %v2258
    %v2373 = vpack.c.b16 %v2262, %v2259
    %v2374 = vpack.c.b16 %v2266, %v2263
    %v2375 = vpack.c.b16 %v2267, %v2264
    %v2376 = vpack.c.b16 %v2268, %v2265
    %v2377 = vpack.c.b16 %v2272, %v2269
    %v2378 = vpack.c.b16 %v2273, %v2270
    %v2379 = vpack.c.b16 %v2274, %v2271
    %v2380 = vpack.c.b16 %v2278, %v2275
    %v2381 = vpack.c.b16 %v2279, %v2276
    %v2382 = vpack.c.b16 %v2280, %v2277
    %v2383 = vpack.c.b16 %v2284, %v2281
    %v2384 = vpack.c.b16 %v2285, %v2282
    %v2385 = vpack.c.b16 %v2286, %v2283
    %v2386 = vpack.c.b16 %v2290, %v2287
    %v2387 = vpack.c.b16 %v2291, %v2288
    %v2388 = vpack.c.b16 %v2292, %v2289
    %2485 = vmatprep.subr.bf16.mxu0 %v2315
    %2486 = vmatpush1.bf16.msra.mxu0 %v2314
    %2487 = vmatprep.subr.bf16.mxu0 %v2312
    %2488 = vmatpush1.bf16.msra.mxu0 %v2311
    %2489 = vmatprep.subr.bf16.mxu0 %v2309
    %2490 = vmatpush1.bf16.msra.mxu0 %v2308
    %2491 = vmatprep.subr.bf16.mxu0 %v2306
    %2492 = vmatpush1.bf16.msra.mxu0 %v2305
    %2493 = vmatprep.subr.bf16.mxu0 %v2303
    %2494 = vmatpush1.bf16.msra.mxu0 %v2302
    %2495 = vmatprep.subr.bf16.mxu0 %v2300
    %2496 = vmatpush1.bf16.msra.mxu0 %v2299
    %2497 = vmatprep.subr.bf16.mxu0 %v2297
    %2498 = vmatpush1.bf16.msra.mxu0 %v2296
    %2499 = vmatprep.subr.bf16.mxu0 %v2294
    %2500 = vmatpush1.bf16.msra.mxu0 %v2293
    %2501 = vmatprep.subr.bf16.mxu0 %v2339
    %2502 = vmatpush2.bf16.msra.mxu0 %v2338
    %2503 = vmatprep.subr.bf16.mxu0 %v2336
    %2504 = vmatpush2.bf16.msra.mxu0 %v2335
    %2505 = vmatprep.subr.bf16.mxu0 %v2333
    %2506 = vmatpush2.bf16.msra.mxu0 %v2332
    %2507 = vmatprep.subr.bf16.mxu0 %v2330
    %2508 = vmatpush2.bf16.msra.mxu0 %v2329
    %2509 = vmatprep.subr.bf16.mxu0 %v2327
    %2510 = vmatpush2.bf16.msra.mxu0 %v2326
    %2511 = vmatprep.subr.bf16.mxu0 %v2324
    %2512 = vmatpush2.bf16.msra.mxu0 %v2323
    %2513 = vmatprep.subr.bf16.mxu0 %v2321
    %2514 = vmatpush2.bf16.msra.mxu0 %v2320
    %2515 = vmatprep.subr.bf16.mxu0 %v2318
    %2516 = vmatpush2.bf16.msra.mxu0 %v2317
    %2517 = vmatprep.mubr.bf16.mxu0 %v1825
    %2518 = vmatmul.mubr.bf16.gmra.mxu0 %v1824
    %v2519 = vpop.f32.mrf.mxu0
    %v2520 = vadd.f32 %v1961, %v2519
    %v2521 = vpop.f32.mrf.mxu0
    %v2522 = vadd.f32 %v1965, %v2521
    %v2523 = vpop.f32.mrf.mxu0
    %v2524 = vpop.f32.mrf.mxu0
    %2525 = vdwg.mxu0
    %2526 = vmatprep.subr.bf16.mxu0 %v2363
    %2527 = vmatpush1.bf16.msra.mxu0 %v2362
    %2528 = vmatprep.subr.bf16.mxu0 %v2360
    %2529 = vmatpush1.bf16.msra.mxu0 %v2359
    %2530 = vmatprep.subr.bf16.mxu0 %v2357
    %2531 = vmatpush1.bf16.msra.mxu0 %v2356
    %2532 = vmatprep.subr.bf16.mxu0 %v2354
    %2533 = vmatpush1.bf16.msra.mxu0 %v2353
    %2534 = vmatprep.subr.bf16.mxu0 %v2351
    %2535 = vmatpush1.bf16.msra.mxu0 %v2350
    %2536 = vmatprep.subr.bf16.mxu0 %v2348
    %2537 = vmatpush1.bf16.msra.mxu0 %v2347
    %2538 = vmatprep.subr.bf16.mxu0 %v2345
    %2539 = vmatpush1.bf16.msra.mxu0 %v2344
    %2540 = vmatprep.subr.bf16.mxu0 %v2342
    %2541 = vmatpush1.bf16.msra.mxu0 %v2341
    %2542 = vmatprep.subr.bf16.mxu0 %v2387
    %2543 = vmatpush2.bf16.msra.mxu0 %v2386
    %2544 = vmatprep.subr.bf16.mxu0 %v2384
    %2545 = vmatpush2.bf16.msra.mxu0 %v2383
    %2546 = vmatprep.subr.bf16.mxu0 %v2381
    %2547 = vmatpush2.bf16.msra.mxu0 %v2380
    %2548 = vmatprep.subr.bf16.mxu0 %v2378
    %2549 = vmatpush2.bf16.msra.mxu0 %v2377
    %2550 = vmatprep.subr.bf16.mxu0 %v2375
    %2551 = vmatpush2.bf16.msra.mxu0 %v2374
    %2552 = vmatprep.subr.bf16.mxu0 %v2372
    %2553 = vmatpush2.bf16.msra.mxu0 %v2371
    %2554 = vmatprep.subr.bf16.mxu0 %v2369
    %2555 = vmatpush2.bf16.msra.mxu0 %v2368
    %2556 = vmatprep.subr.bf16.mxu0 %v2366
    %2557 = vmatpush2.bf16.msra.mxu0 %v2365
    %2558 = vmatprep.mubr.bf16.mxu0 %v1827
    %2559 = vmatmul.mubr.bf16.gmra.mxu0 %v1826
    %v2560 = vpop.f32.mrf.mxu0
    %v2561 = vadd.f32 %v2520, %v2560
    %v2562 = vpop.f32.mrf.mxu0
    %v2563 = vadd.f32 %v2522, %v2562
    %v2564 = vpop.f32.mrf.mxu0
    %v2565 = vpop.f32.mrf.mxu0
    %2566 = vdwg.mxu0
    %2567 = vmatprep.subr.bf16.mxu0 0
    %2568 = vmatpush1.bf16.msra.mxu0 %v2316
    %2569 = vmatprep.subr.bf16.mxu0 0
    %2570 = vmatpush1.bf16.msra.mxu0 %v2313
    %2571 = vmatprep.subr.bf16.mxu0 0
    %2572 = vmatpush1.bf16.msra.mxu0 %v2310
    %2573 = vmatprep.subr.bf16.mxu0 0
    %2574 = vmatpush1.bf16.msra.mxu0 %v2307
    %2575 = vmatprep.subr.bf16.mxu0 0
    %2576 = vmatpush1.bf16.msra.mxu0 %v2304
    %2577 = vmatprep.subr.bf16.mxu0 0
    %2578 = vmatpush1.bf16.msra.mxu0 %v2301
    %2579 = vmatprep.subr.bf16.mxu0 0
    %2580 = vmatpush1.bf16.msra.mxu0 %v2298
    %2581 = vmatprep.subr.bf16.mxu0 0
    %2582 = vmatpush1.bf16.msra.mxu0 %v2295
    %2583 = vmatprep.subr.bf16.mxu0 0
    %2584 = vmatpush2.bf16.msra.mxu0 %v2340
    %2585 = vmatprep.subr.bf16.mxu0 0
    %2586 = vmatpush2.bf16.msra.mxu0 %v2337
    %2587 = vmatprep.subr.bf16.mxu0 0
    %2588 = vmatpush2.bf16.msra.mxu0 %v2334
    %2589 = vmatprep.subr.bf16.mxu0 0
    %2590 = vmatpush2.bf16.msra.mxu0 %v2331
    %2591 = vmatprep.subr.bf16.mxu0 0
    %2592 = vmatpush2.bf16.msra.mxu0 %v2328
    %2593 = vmatprep.subr.bf16.mxu0 0
    %2594 = vmatpush2.bf16.msra.mxu0 %v2325
    %2595 = vmatprep.subr.bf16.mxu0 0
    %2596 = vmatpush2.bf16.msra.mxu0 %v2322
    %2597 = vmatprep.subr.bf16.mxu0 0
    %2598 = vmatpush2.bf16.msra.mxu0 %v2319
    %2599 = vmatprep.mubr.bf16.mxu0 %v1825
    %2600 = vmatmul.mubr.bf16.gmra.mxu0 %v1824
    %v2601 = vpop.f32.mrf.mxu0
    %v2602 = vadd.f32 %v1969, %v2601
    %v2603 = vpop.f32.mrf.mxu0
    %v2604 = vpop.f32.mrf.mxu0
    %v2605 = vpop.f32.mrf.mxu0
    %2606 = vdwg.mxu0
    %2607 = vmatprep.subr.bf16.mxu0 0
    %2608 = vmatpush1.bf16.msra.mxu0 %v2364
    %2609 = vmatprep.subr.bf16.mxu0 0
    %2610 = vmatpush1.bf16.msra.mxu0 %v2361
    %2611 = vmatprep.subr.bf16.mxu0 0
    %2612 = vmatpush1.bf16.msra.mxu0 %v2358
    %2613 = vmatprep.subr.bf16.mxu0 0
    %2614 = vmatpush1.bf16.msra.mxu0 %v2355
    %2615 = vmatprep.subr.bf16.mxu0 0
    %2616 = vmatpush1.bf16.msra.mxu0 %v2352
    %2617 = vmatprep.subr.bf16.mxu0 0
    %2618 = vmatpush1.bf16.msra.mxu0 %v2349
    %2619 = vmatprep.subr.bf16.mxu0 0
    %2620 = vmatpush1.bf16.msra.mxu0 %v2346
    %2621 = vmatprep.subr.bf16.mxu0 0
    %2622 = vmatpush1.bf16.msra.mxu0 %v2343
    %2623 = vmatprep.subr.bf16.mxu0 0
    %2624 = vmatpush2.bf16.msra.mxu0 %v2388
    %2625 = vmatprep.subr.bf16.mxu0 0
    %2626 = vmatpush2.bf16.msra.mxu0 %v2385
    %2627 = vmatprep.subr.bf16.mxu0 0
    %2628 = vmatpush2.bf16.msra.mxu0 %v2382
    %2629 = vmatprep.subr.bf16.mxu0 0
    %2630 = vmatpush2.bf16.msra.mxu0 %v2379
    %2631 = vmatprep.subr.bf16.mxu0 0
    %2632 = vmatpush2.bf16.msra.mxu0 %v2376
    %2633 = vmatprep.subr.bf16.mxu0 0
    %2634 = vmatpush2.bf16.msra.mxu0 %v2373
    %2635 = vmatprep.subr.bf16.mxu0 0
    %2636 = vmatpush2.bf16.msra.mxu0 %v2370
    %2637 = vmatprep.subr.bf16.mxu0 0
    %2638 = vmatpush2.bf16.msra.mxu0 %v2367
    %2639 = vmatprep.mubr.bf16.mxu0 %v1827
    %2640 = vmatmul.mubr.bf16.gmra.mxu0 %v1826
    %v2641 = vpop.f32.mrf.mxu0
    %v2642 = vadd.f32 %v2602, %v2641
    %v2643 = vpop.f32.mrf.mxu0
    %v2644 = vpop.f32.mrf.mxu0
    %v2645 = vpop.f32.mrf.mxu0
    %2646 = vdwg.mxu0
    %v2647 = vmax.f32 %v2561, 0.0
    %v2648 = vmax.f32 %v2563, 0.0
    %v2649 = vmax.f32 %v2642, 0.0
    %v2650 = vpack.c.bf16 %v2647, %v2647
    %v2651 = vpack.c.bf16 %v2648, %v2648
    %v2652 = vpack.c.bf16 %v2649, %v2649
    %v2653 = vld [vmem:[#allocation10] sm:$0xf]
    %v2654 = vld [vmem:[#allocation10 + $0x4] sm:$0xf]
    %v2655 = vld [vmem:[#allocation10 + $0x8] sm:$0xf]
    %v2656 = vld [vmem:[#allocation10 + $0xc] sm:$0xf]
    %v2657 = vld [vmem:[#allocation10 + $0x10] sm:$0xf]
    %v2658 = vld [vmem:[#allocation10 + $0x14] sm:$0xf]
    %v2659 = vld [vmem:[#allocation10 + $0x18] sm:$0xf]
    %v2660 = vld [vmem:[#allocation10 + $0x1c] sm:$0xf]
    %v2661 = vld [vmem:[#allocation10 + $0x20] sm:$0xf]
    %v2662 = vld [vmem:[#allocation10 + $0x24] sm:$0xf]
    %v2663 = vld [vmem:[#allocation10 + $0x28] sm:$0xf]
    %v2664 = vld [vmem:[#allocation10 + $0x2c] sm:$0xf]
    %v2665 = vld [vmem:[#allocation10 + $0x30] sm:$0xf]
    %v2666 = vld [vmem:[#allocation10 + $0x34] sm:$0xf]
    %v2667 = vld [vmem:[#allocation10 + $0x38] sm:$0xf]
    %v2668 = vld [vmem:[#allocation10 + $0x3c] sm:$0xf]
    %v2669 = vld [vmem:[#allocation10 + $0x40] sm:$0xf]
    %v2670 = vld [vmem:[#allocation10 + $0x44] sm:$0xf]
    %v2671 = vld [vmem:[#allocation10 + $0x48] sm:$0xf]
    %v2672 = vld [vmem:[#allocation10 + $0x4c] sm:$0xf]
    %v2673 = vld [vmem:[#allocation10 + $0x50] sm:$0xf]
    %v2674 = vld [vmem:[#allocation10 + $0x54] sm:$0xf]
    %v2675 = vld [vmem:[#allocation10 + $0x58] sm:$0xf]
    %v2676 = vld [vmem:[#allocation10 + $0x5c] sm:$0xf]
    %v2677 = vld [vmem:[#allocation10 + $0x60] sm:$0xf]
    %v2678 = vld [vmem:[#allocation10 + $0x64] sm:$0xf]
    %v2679 = vld [vmem:[#allocation10 + $0x68] sm:$0xf]
    %v2680 = vld [vmem:[#allocation10 + $0x6c] sm:$0xf]
    %v2681 = vld [vmem:[#allocation10 + $0x70] sm:$0xf]
    %v2682 = vld [vmem:[#allocation10 + $0x74] sm:$0xf]
    %v2683 = vld [vmem:[#allocation10 + $0x78] sm:$0xf]
    %v2684 = vld [vmem:[#allocation10 + $0x7c] sm:$0xf]
    %v2685 = vld [vmem:[#allocation10 + $0x80] sm:$0xf]
    %v2686 = vld [vmem:[#allocation10 + $0x84] sm:$0xf]
    %v2687 = vld [vmem:[#allocation10 + $0x88] sm:$0xf]
    %v2688 = vld [vmem:[#allocation10 + $0x8c] sm:$0xf]
    %v2689 = vld [vmem:[#allocation10 + $0x90] sm:$0xf]
    %v2690 = vld [vmem:[#allocation10 + $0x94] sm:$0xf]
    %v2691 = vld [vmem:[#allocation10 + $0x98] sm:$0xf]
    %v2692 = vld [vmem:[#allocation10 + $0x9c] sm:$0xf]
    %v2693 = vld [vmem:[#allocation10 + $0xa0] sm:$0xf]
    %v2694 = vld [vmem:[#allocation10 + $0xa4] sm:$0xf]
    %v2695 = vld [vmem:[#allocation10 + $0xa8] sm:$0xf]
    %v2696 = vld [vmem:[#allocation10 + $0xac] sm:$0xf]
    %v2697 = vld [vmem:[#allocation10 + $0xb0] sm:$0xf]
    %v2698 = vld [vmem:[#allocation10 + $0xb4] sm:$0xf]
    %v2699 = vld [vmem:[#allocation10 + $0xb8] sm:$0xf]
    %v2700 = vld [vmem:[#allocation10 + $0xbc] sm:$0xf]
    %v2701 = vld [vmem:[%s6] sm:$0x1]
    %v2703 = vlaneseq
    %v2704 = vshrl.u32 %v2703, 7
    %v2705 = vsub.s32 0, %v2704
    %v2706 = vrot.slane %v2701, %v2705
    %v2756 = vunpack.c.l.b16 %v2653
    %v2757 = vunpack.c.l.b16 %v2654
    %v2758 = vunpack.c.l.b16 %v2655
    %v2759 = vunpack.c.l.b16 %v2656
    %v2760 = vunpack.c.l.b16 %v2657
    %v2761 = vunpack.c.l.b16 %v2658
    %v2762 = vunpack.c.l.b16 %v2659
    %v2763 = vunpack.c.l.b16 %v2660
    %v2764 = vunpack.c.l.b16 %v2661
    %v2765 = vunpack.c.l.b16 %v2662
    %v2766 = vunpack.c.l.b16 %v2663
    %v2767 = vunpack.c.l.b16 %v2664
    %v2768 = vunpack.c.l.b16 %v2665
    %v2769 = vunpack.c.l.b16 %v2666
    %v2770 = vunpack.c.l.b16 %v2667
    %v2771 = vunpack.c.l.b16 %v2668
    %v2772 = vunpack.c.l.b16 %v2669
    %v2773 = vunpack.c.l.b16 %v2670
    %v2774 = vunpack.c.l.b16 %v2671
    %v2775 = vunpack.c.l.b16 %v2672
    %v2776 = vunpack.c.l.b16 %v2673
    %v2777 = vunpack.c.l.b16 %v2674
    %v2778 = vunpack.c.l.b16 %v2675
    %v2779 = vunpack.c.l.b16 %v2676
    %v2780 = vunpack.c.l.b16 %v2677
    %v2781 = vunpack.c.l.b16 %v2678
    %v2782 = vunpack.c.l.b16 %v2679
    %v2783 = vunpack.c.l.b16 %v2680
    %v2784 = vunpack.c.l.b16 %v2681
    %v2785 = vunpack.c.l.b16 %v2682
    %v2786 = vunpack.c.l.b16 %v2683
    %v2787 = vunpack.c.l.b16 %v2684
    %v2788 = vunpack.c.l.b16 %v2685
    %v2789 = vunpack.c.l.b16 %v2686
    %v2790 = vunpack.c.l.b16 %v2687
    %v2791 = vunpack.c.l.b16 %v2688
    %v2792 = vunpack.c.l.b16 %v2689
    %v2793 = vunpack.c.l.b16 %v2690
    %v2794 = vunpack.c.l.b16 %v2691
    %v2795 = vunpack.c.l.b16 %v2692
    %v2796 = vunpack.c.l.b16 %v2693
    %v2797 = vunpack.c.l.b16 %v2694
    %v2798 = vunpack.c.l.b16 %v2695
    %v2799 = vunpack.c.l.b16 %v2696
    %v2800 = vunpack.c.l.b16 %v2697
    %v2801 = vunpack.c.l.b16 %v2698
    %v2802 = vunpack.c.l.b16 %v2699
    %v2803 = vunpack.c.l.b16 %v2700
    %v2804 = vpack.c.b16 %v2757, %v2756
    %v2805 = vpack.c.b16 %v2759, %v2758
    %v2806 = vpack.c.b16 %v2761, %v2760
    %v2807 = vpack.c.b16 %v2763, %v2762
    %v2808 = vpack.c.b16 %v2765, %v2764
    %v2809 = vpack.c.b16 %v2767, %v2766
    %v2810 = vpack.c.b16 %v2769, %v2768
    %v2811 = vpack.c.b16 %v2771, %v2770
    %v2812 = vpack.c.b16 %v2773, %v2772
    %v2813 = vpack.c.b16 %v2775, %v2774
    %v2814 = vpack.c.b16 %v2777, %v2776
    %v2815 = vpack.c.b16 %v2779, %v2778
    %v2816 = vpack.c.b16 %v2781, %v2780
    %v2817 = vpack.c.b16 %v2783, %v2782
    %v2818 = vpack.c.b16 %v2785, %v2784
    %v2819 = vpack.c.b16 %v2787, %v2786
    %v2820 = vpack.c.b16 %v2789, %v2788
    %v2821 = vpack.c.b16 %v2791, %v2790
    %v2822 = vpack.c.b16 %v2793, %v2792
    %v2823 = vpack.c.b16 %v2795, %v2794
    %v2824 = vpack.c.b16 %v2797, %v2796
    %v2825 = vpack.c.b16 %v2799, %v2798
    %v2826 = vpack.c.b16 %v2801, %v2800
    %v2827 = vpack.c.b16 %v2803, %v2802
    %2852 = vmatprep.subr.bf16.mxu0 0
    %2853 = vmatpush1.bf16.msra.mxu0 %v2811
    %2854 = vmatprep.subr.bf16.mxu0 0
    %2855 = vmatpush1.bf16.msra.mxu0 %v2810
    %2856 = vmatprep.subr.bf16.mxu0 0
    %2857 = vmatpush1.bf16.msra.mxu0 %v2809
    %2858 = vmatprep.subr.bf16.mxu0 0
    %2859 = vmatpush1.bf16.msra.mxu0 %v2808
    %2860 = vmatprep.subr.bf16.mxu0 0
    %2861 = vmatpush1.bf16.msra.mxu0 %v2807
    %2862 = vmatprep.subr.bf16.mxu0 0
    %2863 = vmatpush1.bf16.msra.mxu0 %v2806
    %2864 = vmatprep.subr.bf16.mxu0 0
    %2865 = vmatpush1.bf16.msra.mxu0 %v2805
    %2866 = vmatprep.subr.bf16.mxu0 0
    %2867 = vmatpush1.bf16.msra.mxu0 %v2804
    %2868 = vmatprep.subr.bf16.mxu0 0
    %2869 = vmatpush2.bf16.msra.mxu0 %v2819
    %2870 = vmatprep.subr.bf16.mxu0 0
    %2871 = vmatpush2.bf16.msra.mxu0 %v2818
    %2872 = vmatprep.subr.bf16.mxu0 0
    %2873 = vmatpush2.bf16.msra.mxu0 %v2817
    %2874 = vmatprep.subr.bf16.mxu0 0
    %2875 = vmatpush2.bf16.msra.mxu0 %v2816
    %2876 = vmatprep.subr.bf16.mxu0 0
    %2877 = vmatpush2.bf16.msra.mxu0 %v2815
    %2878 = vmatprep.subr.bf16.mxu0 0
    %2879 = vmatpush2.bf16.msra.mxu0 %v2814
    %2880 = vmatprep.subr.bf16.mxu0 0
    %2881 = vmatpush2.bf16.msra.mxu0 %v2813
    %2882 = vmatprep.subr.bf16.mxu0 0
    %2883 = vmatpush2.bf16.msra.mxu0 %v2812
    %2884 = vmatprep.mubr.bf16.mxu0 %v2651
    %2885 = vmatmul.mubr.bf16.gmra.mxu0 %v2650
    %v2886 = vpop.f32.mrf.mxu0
    %v2887 = vadd.f32 %v2706, %v2886
    %v2888 = vpop.f32.mrf.mxu0
    %v2889 = vpop.f32.mrf.mxu0
    %v2890 = vpop.f32.mrf.mxu0
    %2891 = vdwg.mxu0
    %2892 = vmatprep.subr.bf16.mxu0 0
    %2893 = vmatpush1.bf16.msra.mxu0 %v2827
    %2894 = vmatprep.subr.bf16.mxu0 0
    %2895 = vmatpush1.bf16.msra.mxu0 %v2826
    %2896 = vmatprep.subr.bf16.mxu0 0
    %2897 = vmatpush1.bf16.msra.mxu0 %v2825
    %2898 = vmatprep.subr.bf16.mxu0 0
    %2899 = vmatpush1.bf16.msra.mxu0 %v2824
    %2900 = vmatprep.subr.bf16.mxu0 0
    %2901 = vmatpush1.bf16.msra.mxu0 %v2823
    %2902 = vmatprep.subr.bf16.mxu0 0
    %2903 = vmatpush1.bf16.msra.mxu0 %v2822
    %2904 = vmatprep.subr.bf16.mxu0 0
    %2905 = vmatpush1.bf16.msra.mxu0 %v2821
    %2906 = vmatprep.subr.bf16.mxu0 0
    %2907 = vmatpush1.bf16.msra.mxu0 %v2820
    %2908 = vmatprep.subr.bf16.mxu0 0
    %2909 = vmatpush2.bf16.msra.mxu0 0
    %2910 = vmatprep.subr.bf16.mxu0 0
    %2911 = vmatpush2.bf16.msra.mxu0 0
    %2912 = vmatprep.subr.bf16.mxu0 0
    %2913 = vmatpush2.bf16.msra.mxu0 0
    %2914 = vmatprep.subr.bf16.mxu0 0
    %2915 = vmatpush2.bf16.msra.mxu0 0
    %2916 = vmatprep.subr.bf16.mxu0 0
    %2917 = vmatpush2.bf16.msra.mxu0 0
    %2918 = vmatprep.subr.bf16.mxu0 0
    %2919 = vmatpush2.bf16.msra.mxu0 0
    %2920 = vmatprep.subr.bf16.mxu0 0
    %2921 = vmatpush2.bf16.msra.mxu0 0
    %2922 = vmatprep.subr.bf16.mxu0 0
    %2923 = vmatpush2.bf16.msra.mxu0 0
    %2924 = vmatprep.mubr.bf16.mxu0 0
    %2925 = vmatmul.mubr.bf16.gmra.mxu0 %v2652
    %v2926 = vpop.f32.mrf.mxu0
    %v2927 = vadd.f32 %v2887, %v2926
    %v2928 = vpop.f32.mrf.mxu0
    %v2929 = vpop.f32.mrf.mxu0
    %v2930 = vpop.f32.mrf.mxu0
    %2931 = vdwg.mxu0
    %v2932 = vmax.f32 %v2927, 0.0
    %v2933 = vpack.c.bf16 %v2932, %v2932
    %v2934 = vld [vmem:[#allocation11] sm:$0xf]
    %v2935 = vld [vmem:[#allocation11 + $0x4] sm:$0xf]
    %v2936 = vld [vmem:[#allocation11 + $0x8] sm:$0xf]
    %v2937 = vld [vmem:[#allocation11 + $0xc] sm:$0xf]
    %v2938 = vld [vmem:[#allocation11 + $0x10] sm:$0xf]
    %v2939 = vld [vmem:[#allocation11 + $0x14] sm:$0xf]
    %v2940 = vld [vmem:[#allocation11 + $0x18] sm:$0xf]
    %v2941 = vld [vmem:[#allocation11 + $0x1c] sm:$0xf]
    %v2942 = vld [vmem:[#allocation11 + $0x20] sm:$0xf]
    %v2943 = vld [vmem:[#allocation11 + $0x24] sm:$0xf]
    %v2944 = vld [vmem:[#allocation11 + $0x28] sm:$0xf]
    %v2945 = vld [vmem:[#allocation11 + $0x2c] sm:$0xf]
    %v2946 = vld [vmem:[#allocation11 + $0x30] sm:$0xf]
    %v2947 = vld [vmem:[#allocation11 + $0x34] sm:$0xf]
    %v2948 = vld [vmem:[#allocation11 + $0x38] sm:$0xf]
    %v2949 = vld [vmem:[#allocation11 + $0x3c] sm:$0xf]
    %v2950 = vld [vmem:[%s8] sm:$0x1]
    %v2952 = vlaneseq
    %v2953 = vshrl.u32 %v2952, 7
    %v2954 = vsub.s32 0, %v2953
    %v2955 = vrot.slane %v2950, %v2954
    %v2973 = vunpack.c.l.b16 %v2934
    %v2974 = vunpack.c.l.b16 %v2935
    %v2975 = vunpack.c.l.b16 %v2936
    %v2976 = vunpack.c.l.b16 %v2937
    %v2977 = vunpack.c.l.b16 %v2938
    %v2978 = vunpack.c.l.b16 %v2939
    %v2979 = vunpack.c.l.b16 %v2940
    %v2980 = vunpack.c.l.b16 %v2941
    %v2981 = vunpack.c.l.b16 %v2942
    %v2982 = vunpack.c.l.b16 %v2943
    %v2983 = vunpack.c.l.b16 %v2944
    %v2984 = vunpack.c.l.b16 %v2945
    %v2985 = vunpack.c.l.b16 %v2946
    %v2986 = vunpack.c.l.b16 %v2947
    %v2987 = vunpack.c.l.b16 %v2948
    %v2988 = vunpack.c.l.b16 %v2949
    %v2989 = vpack.c.b16 %v2974, %v2973
    %v2990 = vpack.c.b16 %v2976, %v2975
    %v2991 = vpack.c.b16 %v2978, %v2977
    %v2992 = vpack.c.b16 %v2980, %v2979
    %v2993 = vpack.c.b16 %v2982, %v2981
    %v2994 = vpack.c.b16 %v2984, %v2983
    %v2995 = vpack.c.b16 %v2986, %v2985
    %v2996 = vpack.c.b16 %v2988, %v2987
    %3005 = vmatprep.subr.bf16.mxu0 0
    %3006 = vmatpush1.bf16.msra.mxu0 %v2996
    %3007 = vmatprep.subr.bf16.mxu0 0
    %3008 = vmatpush1.bf16.msra.mxu0 %v2995
    %3009 = vmatprep.subr.bf16.mxu0 0
    %3010 = vmatpush1.bf16.msra.mxu0 %v2994
    %3011 = vmatprep.subr.bf16.mxu0 0
    %3012 = vmatpush1.bf16.msra.mxu0 %v2993
    %3013 = vmatprep.subr.bf16.mxu0 0
    %3014 = vmatpush1.bf16.msra.mxu0 %v2992
    %3015 = vmatprep.subr.bf16.mxu0 0
    %3016 = vmatpush1.bf16.msra.mxu0 %v2991
    %3017 = vmatprep.subr.bf16.mxu0 0
    %3018 = vmatpush1.bf16.msra.mxu0 %v2990
    %3019 = vmatprep.subr.bf16.mxu0 0
    %3020 = vmatpush1.bf16.msra.mxu0 %v2989
    %3021 = vmatprep.subr.bf16.mxu0 0
    %3022 = vmatpush2.bf16.msra.mxu0 0
    %3023 = vmatprep.subr.bf16.mxu0 0
    %3024 = vmatpush2.bf16.msra.mxu0 0
    %3025 = vmatprep.subr.bf16.mxu0 0
    %3026 = vmatpush2.bf16.msra.mxu0 0
    %3027 = vmatprep.subr.bf16.mxu0 0
    %3028 = vmatpush2.bf16.msra.mxu0 0
    %3029 = vmatprep.subr.bf16.mxu0 0
    %3030 = vmatpush2.bf16.msra.mxu0 0
    %3031 = vmatprep.subr.bf16.mxu0 0
    %3032 = vmatpush2.bf16.msra.mxu0 0
    %3033 = vmatprep.subr.bf16.mxu0 0
    %3034 = vmatpush2.bf16.msra.mxu0 0
    %3035 = vmatprep.subr.bf16.mxu0 0
    %3036 = vmatpush2.bf16.msra.mxu0 0
    %3037 = vmatprep.mubr.bf16.mxu0 0
    %3038 = vmatmul.mubr.bf16.gmra.mxu0 %v2933
    %v3039 = vpop.f32.mrf.mxu0
    %v3040 = vadd.f32 %v2955, %v3039
    %v3041 = vpop.f32.mrf.mxu0
    %v3042 = vpop.f32.mrf.mxu0
    %v3043 = vpop.f32.mrf.mxu0
    %3044 = vdwg.mxu0
    %3045 = vst [vmem:[#allocation13] sm:$0xff] %v3040
    // Predicated region
    $region62: #{tpu_custom_call.1} parent=1 // pred_check
      _
    $region63: #{tpu_custom_call.1} parent=1 // pred_check_branch
      %3047 = sbr.rel (0) target = $region65
    $region64: #{tpu_custom_call.1} parent=1 // pred_region
      %s3049 = ssub.s32 128, 128
      %3050 = vsyncadd [#allocation4], %s3049
      %s3052 = sshll.u32 [#allocation13], 4
      %s3053 = int_to_ptr.vmem [resolvable:$true] %s3052
      %3055 = dma.vmem_to_hbm [thread:$0]  %s3053, 128, %s9, [#allocation4]
    $region65: #{tpu_custom_call.1} parent=1 // pred_fallthru
      _
    // Predicated region
    $region66: #{tpu_custom_call.1} parent=1 // pred_check
      _
    $region67: #{tpu_custom_call.1} parent=1 // pred_check_branch
      %3057 = sbr.rel (0) target = $region69
    $region68: #{tpu_custom_call.1} parent=1 // pred_region
      %3058 = dma.done [#allocation4], 128
    $region69: #{tpu_custom_call.1} parent=1 // pred_fallthru
      _
    %3059 = vsyncpa [#allocation3], 1
    %3060 = vsyncpa [#allocation6], 1
    %3061 = vsyncpa [#allocation9], 1
    %3062 = vsyncpa [#allocation12], 1
    %3063 = vsyncpa [#allocation4], 1

// kernel: tpu_custom_call.1
$region0: #{tpu_custom_call.1}
  #allocation0 [shape = 'u32[]', space=smem, size = 0x4, offset = 0x4, fixed_abs, tag = 'smem constant byte address 0x4 - core index']
  #allocation1 [shape = 'u32[144,128]{1,0:T(1,128)}', space=vmem, size = 0x12000, scoped, tag = 'internal scratch']
  %s0 = inlined_call_operand.hbm [shape: f32[8,896], index: 0, kind: input, shape index: {}]
  %s1 = inlined_call_operand.hbm [shape: bf16[896,512], index: 1, kind: input, shape index: {}]
  %s2 = inlined_call_operand.hbm [shape: f32[1,512], index: 2, kind: input, shape index: {}]
  %s3 = inlined_call_operand.hbm [shape: bf16[512,384], index: 3, kind: input, shape index: {}]
  %s4 = inlined_call_operand.vmem [shape: f32[1,384], index: 4, kind: input, shape index: {}]
  %s5 = inlined_call_operand.hbm [shape: bf16[384,128], index: 5, kind: input, shape index: {}]
  %s6 = inlined_call_operand.vmem [shape: f32[1,128], index: 6, kind: input, shape index: {}]
  %s7 = inlined_call_operand.hbm [shape: bf16[128,128], index: 7, kind: input, shape index: {}]
  %s8 = inlined_call_operand.vmem [shape: f32[1,128], index: 8, kind: input, shape index: {}]
  %s9 = inlined_call_operand.hbm [shape: f32[8,128], index: 9, kind: output, shape index: {}]
  %s10 = sld [smem:[#allocation0]]
  $region70: #{tpu_custom_call.1} parent=0
    _
  %s12 = ssub.s32 1, %s10
  %s13 = scalar_select 0, %s12, %s10
  $region1: #{tpu_custom_call.1} parent=0
    #allocation2 [shape = 'u8[28672]{0}', space=vmem, size = 0x7000, scoped, tag = 'input window, operand 0, single buffered']
    #allocation3 [shape = 's32[1]{0}', space=sflag, size = 0x4, scoped, tag = 'scoped memory for tpu_custom_call.1']
    #allocation4 [shape = 's32[1]{0}', space=sflag, size = 0x4, scoped, tag = 'scoped memory for tpu_custom_call.1']
    #allocation5 [shape = 'u8[917504]{0}', space=vmem, size = 0xe0000, scoped, tag = 'input window, operand 1, single buffered']
    #allocation6 [shape = 's32[1]{0}', space=sflag, size = 0x4, scoped, tag = 'scoped memory for tpu_custom_call.1']
    #allocation7 [shape = 'u8[2048]{0}', space=vmem, size = 0x800, scoped, tag = 'input window, operand 2, single buffered']
    #allocation8 [shape = 'u8[393216]{0}', space=vmem, size = 0x60000, scoped, tag = 'input window, operand 3, single buffered']
    #allocation9 [shape = 's32[1]{0}', space=sflag, size = 0x4, scoped, tag = 'scoped memory for tpu_custom_call.1']
    #allocation10 [shape = 'u8[98304]{0}', space=vmem, size = 0x18000, scoped, tag = 'input window, operand 5, single buffered']
    #allocation11 [shape = 'u8[32768]{0}', space=vmem, size = 0x8000, scoped, tag = 'input window, operand 7, single buffered']
    #allocation12 [shape = 's32[1]{0}', space=sflag, size = 0x4, scoped, tag = 'scoped memory for tpu_custom_call.1']
    #allocation13 [shape = 'u8[4096]{0}', space=vmem, size = 0x1000, scoped, tag = 'output window, operand 0, single buffered']
    %14 = vsyncpa [#allocation3], 0
    %15 = vsyncpa [#allocation6], 0
    %16 = vsyncpa [#allocation9], 0
    %17 = vsyncpa [#allocation12], 0
    %18 = vsyncpa [#allocation4], 0
    // Predicated region
    $region2: #{tpu_custom_call.1} parent=1 // pred_check
      _
    $region3: #{tpu_custom_call.1} parent=1 // pred_check_branch
      %20 = sbr.rel (0) target = $region5
    $region4: #{tpu_custom_call.1} parent=1 // pred_region
      %s22 = ssub.s32 896, 896
      %23 = vsyncadd [#allocation3], %s22
      %s25 = sshll.u32 [#allocation2], 4
      %s26 = int_to_ptr.vmem [resolvable:$true] %s25
      %28 = dma.hbm_to_vmem [thread:$0]  %s0, 896, %s26, [#allocation3]
    $region5: #{tpu_custom_call.1} parent=1 // pred_fallthru
      _
    // Predicated region
    $region6: #{tpu_custom_call.1} parent=1 // pred_check
      _
    $region7: #{tpu_custom_call.1} parent=1 // pred_check_branch
      %30 = sbr.rel (0) target = $region9
    $region8: #{tpu_custom_call.1} parent=1 // pred_region
      %s32 = ssub.s32 28672, 28672
      %33 = vsyncadd [#allocation6], %s32
      %s34 = sshll.u32 [#allocation5], 4
      %s35 = int_to_ptr.vmem [resolvable:$true] %s34
      %40 = dma.hbm_to_vmem [thread:$0]  %s1, 28672, %s35, [#allocation6], 256, 256, 16
    $region9: #{tpu_custom_call.1} parent=1 // pred_fallthru
      _
    // Predicated region
    $region10: #{tpu_custom_call.1} parent=1 // pred_check
      _
    $region11: #{tpu_custom_call.1} parent=1 // pred_check_branch
      %42 = sbr.rel (0) target = $region13
    $region12: #{tpu_custom_call.1} parent=1 // pred_region
      %s44 = ssub.s32 64, 64
      %45 = vsyncadd [#allocation6], %s44
      %s47 = sshll.u32 [#allocation7], 4
      %s48 = int_to_ptr.vmem [resolvable:$true] %s47
      %50 = dma.hbm_to_vmem [thread:$0]  %s2, 64, %s48, [#allocation6]
    $region13: #{tpu_custom_call.1} parent=1 // pred_fallthru
      _
    // Predicated region
    $region14: #{tpu_custom_call.1} parent=1 // pred_check
      _
    $region15: #{tpu_custom_call.1} parent=1 // pred_check_branch
      %52 = sbr.rel (0) target = $region17
    $region16: #{tpu_custom_call.1} parent=1 // pred_region
      %s54 = ssub.s32 12288, 12288
      %55 = vsyncadd [#allocation9], %s54
      %s56 = sshll.u32 [#allocation8], 4
      %s57 = int_to_ptr.vmem [resolvable:$true] %s56
      %62 = dma.hbm_to_vmem [thread:$0]  %s3, 12288, %s57, [#allocation9], 192, 192, 12
    $region17: #{tpu_custom_call.1} parent=1 // pred_fallthru
      _
    // Predicated region
    $region18: #{tpu_custom_call.1} parent=1 // pred_check
      _
    $region19: #{tpu_custom_call.1} parent=1 // pred_check_branch
      %64 = sbr.rel (0) target = $region21
    $region20: #{tpu_custom_call.1} parent=1 // pred_region
      _
    $region21: #{tpu_custom_call.1} parent=1 // pred_fallthru
      _
    // Predicated region
    $region22: #{tpu_custom_call.1} parent=1 // pred_check
      _
    $region23: #{tpu_custom_call.1} parent=1 // pred_check_branch
      %66 = sbr.rel (0) target = $region25
    $region24: #{tpu_custom_call.1} parent=1 // pred_region
      %s68 = ssub.s32 3072, 3072
      %69 = vsyncadd [#allocation9], %s68
      %s70 = sshll.u32 [#allocation10], 4
      %s71 = int_to_ptr.vmem [resolvable:$true] %s70
      %76 = dma.hbm_to_vmem [thread:$0]  %s5, 3072, %s71, [#allocation9], 64, 64, 4
    $region25: #{tpu_custom_call.1} parent=1 // pred_fallthru
      _
    // Predicated region
    $region26: #{tpu_custom_call.1} parent=1 // pred_check
      _
    $region27: #{tpu_custom_call.1} parent=1 // pred_check_branch
      %78 = sbr.rel (0) target = $region29
    $region28: #{tpu_custom_call.1} parent=1 // pred_region
      _
    $region29: #{tpu_custom_call.1} parent=1 // pred_fallthru
      _
    // Predicated region
    $region30: #{tpu_custom_call.1} parent=1 // pred_check
      _
    $region31: #{tpu_custom_call.1} parent=1 // pred_check_branch
      %80 = sbr.rel (0) target = $region33
    $region32: #{tpu_custom_call.1} parent=1 // pred_region
      %s82 = ssub.s32 1024, 1024
      %83 = vsyncadd [#allocation12], %s82
      %s84 = sshll.u32 [#allocation11], 4
      %s85 = int_to_ptr.vmem [resolvable:$true] %s84
      %90 = dma.hbm_to_vmem [thread:$0]  %s7, 1024, %s85, [#allocation12], 64, 64, 4
    $region33: #{tpu_custom_call.1} parent=1 // pred_fallthru
      _
    // Predicated region
    $region34: #{tpu_custom_call.1} parent=1 // pred_check
      _
    $region35: #{tpu_custom_call.1} parent=1 // pred_check_branch
      %92 = sbr.rel (0) target = $region37
    $region36: #{tpu_custom_call.1} parent=1 // pred_region
      _
    $region37: #{tpu_custom_call.1} parent=1 // pred_fallthru
      _
    // Predicated region
    $region38: #{tpu_custom_call.1} parent=1 // pred_check
      _
    $region39: #{tpu_custom_call.1} parent=1 // pred_check_branch
      %94 = sbr.rel (0) target = $region41
    $region40: #{tpu_custom_call.1} parent=1 // pred_region
      %95 = dma.done [#allocation3], 896
    $region41: #{tpu_custom_call.1} parent=1 // pred_fallthru
      _
    // Predicated region
    $region42: #{tpu_custom_call.1} parent=1 // pred_check
      _
    $region43: #{tpu_custom_call.1} parent=1 // pred_check_branch
      %97 = sbr.rel (0) target = $region45
    $region44: #{tpu_custom_call.1} parent=1 // pred_region
      %98 = dma.done [#allocation6], 28672
    $region45: #{tpu_custom_call.1} parent=1 // pred_fallthru
      _
    // Predicated region
    $region46: #{tpu_custom_call.1} parent=1 // pred_check
      _
    $region47: #{tpu_custom_call.1} parent=1 // pred_check_branch
      %100 = sbr.rel (0) target = $region49
    $region48: #{tpu_custom_call.1} parent=1 // pred_region
      %101 = dma.done [#allocation6], 64
    $region49: #{tpu_custom_call.1} parent=1 // pred_fallthru
      _
    // Predicated region
    $region50: #{tpu_custom_call.1} parent=1 // pred_check
      _
    $region51: #{tpu_custom_call.1} parent=1 // pred_check_branch
      %103 = sbr.rel (0) target = $region53
    $region52: #{tpu_custom_call.1} parent=1 // pred_region
      %104 = dma.done [#allocation9], 12288
    $region53: #{tpu_custom_call.1} parent=1 // pred_fallthru
      _
    // Predicated region
    $region54: #{tpu_custom_call.1} parent=1 // pred_check
      _
    $region55: #{tpu_custom_call.1} parent=1 // pred_check_branch
      %106 = sbr.rel (0) target = $region57
    $region56: #{tpu_custom_call.1} parent=1 // pred_region
      %107 = dma.done [#allocation9], 3072
    $region57: #{tpu_custom_call.1} parent=1 // pred_fallthru
      _
    // Predicated region
    $region58: #{tpu_custom_call.1} parent=1 // pred_check
      _
    $region59: #{tpu_custom_call.1} parent=1 // pred_check_branch
      %109 = sbr.rel (0) target = $region61
    $region60: #{tpu_custom_call.1} parent=1 // pred_region
      %110 = dma.done [#allocation12], 1024
    $region61: #{tpu_custom_call.1} parent=1 // pred_fallthru
      _
    %v112 = vld [vmem:[#allocation2] sm:$0xff]
    %v113 = vld [vmem:[#allocation2 + $0x8] sm:$0xff]
    %v114 = vld [vmem:[#allocation2 + $0x10] sm:$0xff]
    %v115 = vld [vmem:[#allocation2 + $0x18] sm:$0xff]
    %v116 = vld [vmem:[#allocation2 + $0x20] sm:$0xff]
    %v117 = vld [vmem:[#allocation2 + $0x28] sm:$0xff]
    %v118 = vld [vmem:[#allocation2 + $0x30] sm:$0xff]
    %v119 = vpack.c.bf16 %v112, %v112
    %v120 = vpack.c.bf16 %v113, %v113
    %v121 = vpack.c.bf16 %v114, %v114
    %v122 = vpack.c.bf16 %v115, %v115
    %v123 = vpack.c.bf16 %v116, %v116
    %v124 = vpack.c.bf16 %v117, %v117
    %v125 = vpack.c.bf16 %v118, %v118
    %v126 = vld [vmem:[#allocation5] sm:$0xff]
    %v127 = vld [vmem:[#allocation5 + $0x8] sm:$0xff]
    %v128 = vld [vmem:[#allocation5 + $0x10] sm:$0xff]
    %v129 = vld [vmem:[#allocation5 + $0x18] sm:$0xff]
    %v130 = vld [vmem:[#allocation5 + $0x20] sm:$0xff]
    %v131 = vld [vmem:[#allocation5 + $0x28] sm:$0xff]
    %v132 = vld [vmem:[#allocation5 + $0x30] sm:$0xff]
    %v133 = vld [vmem:[#allocation5 + $0x38] sm:$0xff]
    %v134 = vld [vmem:[#allocation5 + $0x40] sm:$0xff]
    %v135 = vld [vmem:[#allocation5 + $0x48] sm:$0xff]
    %v136 = vld [vmem:[#allocation5 + $0x50] sm:$0xff]
    %v137 = vld [vmem:[#allocation5 + $0x58] sm:$0xff]
    %v138 = vld [vmem:[#allocation5 + $0x60] sm:$0xff]
    %v139 = vld [vmem:[#allocation5 + $0x68] sm:$0xff]
    %v140 = vld [vmem:[#allocation5 + $0x70] sm:$0xff]
    %v141 = vld [vmem:[#allocation5 + $0x78] sm:$0xff]
    %v142 = vld [vmem:[#allocation5 + $0x80] sm:$0xff]
    %v143 = vld [vmem:[#allocation5 + $0x88] sm:$0xff]
    %v144 = vld [vmem:[#allocation5 + $0x90] sm:$0xff]
    %v145 = vld [vmem:[#allocation5 + $0x98] sm:$0xff]
    %v146 = vld [vmem:[#allocation5 + $0xa0] sm:$0xff]
    %v147 = vld [vmem:[#allocation5 + $0xa8] sm:$0xff]
    %v148 = vld [vmem:[#allocation5 + $0xb0] sm:$0xff]
    %v149 = vld [vmem:[#allocation5 + $0xb8] sm:$0xff]
    %v150 = vld [vmem:[#allocation5 + $0xc0] sm:$0xff]
    %v151 = vld [vmem:[#allocation5 + $0xc8] sm:$0xff]
    %v152 = vld [vmem:[#allocation5 + $0xd0] sm:$0xff]
    %v153 = vld [vmem:[#allocation5 + $0xd8] sm:$0xff]
    %v154 = vld [vmem:[#allocation5 + $0xe0] sm:$0xff]
    %v155 = vld [vmem:[#allocation5 + $0xe8] sm:$0xff]
    %v156 = vld [vmem:[#allocation5 + $0xf0] sm:$0xff]
    %v157 = vld [vmem:[#allocation5 + $0xf8] sm:$0xff]
    %v158 = vld [vmem:[#allocation5 + $0x100] sm:$0xff]
    %v159 = vld [vmem:[#allocation5 + $0x108] sm:$0xff]
    %v160 = vld [vmem:[#allocation5 + $0x110] sm:$0xff]
    %v161 = vld [vmem:[#allocation5 + $0x118] sm:$0xff]
    %v162 = vld [vmem:[#allocation5 + $0x120] sm:$0xff]
    %v163 = vld [vmem:[#allocation5 + $0x128] sm:$0xff]
    %v164 = vld [vmem:[#allocation5 + $0x130] sm:$0xff]
    %v165 = vld [vmem:[#allocation5 + $0x138] sm:$0xff]
    %v166 = vld [vmem:[#allocation5 + $0x140] sm:$0xff]
    %v167 = vld [vmem:[#allocation5 + $0x148] sm:$0xff]
    %v168 = vld [vmem:[#allocation5 + $0x150] sm:$0xff]
    %v169 = vld [vmem:[#allocation5 + $0x158] sm:$0xff]
    %v170 = vld [vmem:[#allocation5 + $0x160] sm:$0xff]
    %v171 = vld [vmem:[#allocation5 + $0x168] sm:$0xff]
    %v172 = vld [vmem:[#allocation5 + $0x170] sm:$0xff]
    %v173 = vld [vmem:[#allocation5 + $0x178] sm:$0xff]
    %v174 = vld [vmem:[#allocation5 + $0x180] sm:$0xff]
    %v175 = vld [vmem:[#allocation5 + $0x188] sm:$0xff]
    %v176 = vld [vmem:[#allocation5 + $0x190] sm:$0xff]
    %v177 = vld [vmem:[#allocation5 + $0x198] sm:$0xff]
    %v178 = vld [vmem:[#allocation5 + $0x1a0] sm:$0xff]
    %v179 = vld [vmem:[#allocation5 + $0x1a8] sm:$0xff]
    %v180 = vld [vmem:[#allocation5 + $0x1b0] sm:$0xff]
    %v181 = vld [vmem:[#allocation5 + $0x1b8] sm:$0xff]
    %v182 = vld [vmem:[#allocation5 + $0x1c0] sm:$0xff]
    %v183 = vld [vmem:[#allocation5 + $0x1c8] sm:$0xff]
    %v184 = vld [vmem:[#allocation5 + $0x1d0] sm:$0xff]
    %v185 = vld [vmem:[#allocation5 + $0x1d8] sm:$0xff]
    %v186 = vld [vmem:[#allocation5 + $0x1e0] sm:$0xff]
    %v187 = vld [vmem:[#allocation5 + $0x1e8] sm:$0xff]
    %v188 = vld [vmem:[#allocation5 + $0x1f0] sm:$0xff]
    %v189 = vld [vmem:[#allocation5 + $0x1f8] sm:$0xff]
    %v190 = vld [vmem:[#allocation5 + $0x200] sm:$0xff]
    %v191 = vld [vmem:[#allocation5 + $0x208] sm:$0xff]
    %v192 = vld [vmem:[#allocation5 + $0x210] sm:$0xff]
    %v193 = vld [vmem:[#allocation5 + $0x218] sm:$0xff]
    %v194 = vld [vmem:[#allocation5 + $0x220] sm:$0xff]
    %v195 = vld [vmem:[#allocation5 + $0x228] sm:$0xff]
    %v196 = vld [vmem:[#allocation5 + $0x230] sm:$0xff]
    %v197 = vld [vmem:[#allocation5 + $0x238] sm:$0xff]
    %v198 = vld [vmem:[#allocation5 + $0x240] sm:$0xff]
    %v199 = vld [vmem:[#allocation5 + $0x248] sm:$0xff]
    %v200 = vld [vmem:[#allocation5 + $0x250] sm:$0xff]
    %v201 = vld [vmem:[#allocation5 + $0x258] sm:$0xff]
    %v202 = vld [vmem:[#allocation5 + $0x260] sm:$0xff]
    %v203 = vld [vmem:[#allocation5 + $0x268] sm:$0xff]
    %v204 = vld [vmem:[#allocation5 + $0x270] sm:$0xff]
    %v205 = vld [vmem:[#allocation5 + $0x278] sm:$0xff]
    %v206 = vld [vmem:[#allocation5 + $0x280] sm:$0xff]
    %v207 = vld [vmem:[#allocation5 + $0x288] sm:$0xff]
    %v208 = vld [vmem:[#allocation5 + $0x290] sm:$0xff]
    %v209 = vld [vmem:[#allocation5 + $0x298] sm:$0xff]
    %v210 = vld [vmem:[#allocation5 + $0x2a0] sm:$0xff]
    %v211 = vld [vmem:[#allocation5 + $0x2a8] sm:$0xff]
    %v212 = vld [vmem:[#allocation5 + $0x2b0] sm:$0xff]
    %v213 = vld [vmem:[#allocation5 + $0x2b8] sm:$0xff]
    %v214 = vld [vmem:[#allocation5 + $0x2c0] sm:$0xff]
    %v215 = vld [vmem:[#allocation5 + $0x2c8] sm:$0xff]
    %v216 = vld [vmem:[#allocation5 + $0x2d0] sm:$0xff]
    %v217 = vld [vmem:[#allocation5 + $0x2d8] sm:$0xff]
    %v218 = vld [vmem:[#allocation5 + $0x2e0] sm:$0xff]
    %v219 = vld [vmem:[#allocation5 + $0x2e8] sm:$0xff]
    %v220 = vld [vmem:[#allocation5 + $0x2f0] sm:$0xff]
    %v221 = vld [vmem:[#allocation5 + $0x2f8] sm:$0xff]
    %v222 = vld [vmem:[#allocation5 + $0x300] sm:$0xff]
    %v223 = vld [vmem:[#allocation5 + $0x308] sm:$0xff]
    %v224 = vld [vmem:[#allocation5 + $0x310] sm:$0xff]
    %v225 = vld [vmem:[#allocation5 + $0x318] sm:$0xff]
    %v226 = vld [vmem:[#allocation5 + $0x320] sm:$0xff]
    %v227 = vld [vmem:[#allocation5 + $0x328] sm:$0xff]
    %v228 = vld [vmem:[#allocation5 + $0x330] sm:$0xff]
    %v229 = vld [vmem:[#allocation5 + $0x338] sm:$0xff]
    %v230 = vld [vmem:[#allocation5 + $0x340] sm:$0xff]
    %v231 = vld [vmem:[#allocation5 + $0x348] sm:$0xff]
    %v232 = vld [vmem:[#allocation5 + $0x350] sm:$0xff]
    %v233 = vld [vmem:[#allocation5 + $0x358] sm:$0xff]
    %v234 = vld [vmem:[#allocation5 + $0x360] sm:$0xff]
    %v235 = vld [vmem:[#allocation5 + $0x368] sm:$0xff]
    %v236 = vld [vmem:[#allocation5 + $0x370] sm:$0xff]
    %v237 = vld [vmem:[#allocation5 + $0x378] sm:$0xff]
    %v238 = vld [vmem:[#allocation5 + $0x380] sm:$0xff]
    %v239 = vld [vmem:[#allocation5 + $0x388] sm:$0xff]
    %v240 = vld [vmem:[#allocation5 + $0x390] sm:$0xff]
    %v241 = vld [vmem:[#allocation5 + $0x398] sm:$0xff]
    %v242 = vld [vmem:[#allocation5 + $0x3a0] sm:$0xff]
    %v243 = vld [vmem:[#allocation5 + $0x3a8] sm:$0xff]
    %v244 = vld [vmem:[#allocation5 + $0x3b0] sm:$0xff]
    %v245 = vld [vmem:[#allocation5 + $0x3b8] sm:$0xff]
    %v246 = vld [vmem:[#allocation5 + $0x3c0] sm:$0xff]
    %v247 = vld [vmem:[#allocation5 + $0x3c8] sm:$0xff]
    %v248 = vld [vmem:[#allocation5 + $0x3d0] sm:$0xff]
    %v249 = vld [vmem:[#allocation5 + $0x3d8] sm:$0xff]
    %v250 = vld [vmem:[#allocation5 + $0x3e0] sm:$0xff]
    %v251 = vld [vmem:[#allocation5 + $0x3e8] sm:$0xff]
    %v252 = vld [vmem:[#allocation5 + $0x3f0] sm:$0xff]
    %v253 = vld [vmem:[#allocation5 + $0x3f8] sm:$0xff]
    %v254 = vld [vmem:[#allocation5 + $0x400] sm:$0xff]
    %v255 = vld [vmem:[#allocation5 + $0x408] sm:$0xff]
    %v256 = vld [vmem:[#allocation5 + $0x410] sm:$0xff]
    %v257 = vld [vmem:[#allocation5 + $0x418] sm:$0xff]
    %v258 = vld [vmem:[#allocation5 + $0x420] sm:$0xff]
    %v259 = vld [vmem:[#allocation5 + $0x428] sm:$0xff]
    %v260 = vld [vmem:[#allocation5 + $0x430] sm:$0xff]
    %v261 = vld [vmem:[#allocation5 + $0x438] sm:$0xff]
    %v262 = vld [vmem:[#allocation5 + $0x440] sm:$0xff]
    %v263 = vld [vmem:[#allocation5 + $0x448] sm:$0xff]
    %v264 = vld [vmem:[#allocation5 + $0x450] sm:$0xff]
    %v265 = vld [vmem:[#allocation5 + $0x458] sm:$0xff]
    %v266 = vld [vmem:[#allocation5 + $0x460] sm:$0xff]
    %v267 = vld [vmem:[#allocation5 + $0x468] sm:$0xff]
    %v268 = vld [vmem:[#allocation5 + $0x470] sm:$0xff]
    %v269 = vld [vmem:[#allocation5 + $0x478] sm:$0xff]
    %v270 = vld [vmem:[#allocation5 + $0x480] sm:$0xff]
    %v271 = vld [vmem:[#allocation5 + $0x488] sm:$0xff]
    %v272 = vld [vmem:[#allocation5 + $0x490] sm:$0xff]
    %v273 = vld [vmem:[#allocation5 + $0x498] sm:$0xff]
    %v274 = vld [vmem:[#allocation5 + $0x4a0] sm:$0xff]
    %v275 = vld [vmem:[#allocation5 + $0x4a8] sm:$0xff]
    %v276 = vld [vmem:[#allocation5 + $0x4b0] sm:$0xff]
    %v277 = vld [vmem:[#allocation5 + $0x4b8] sm:$0xff]
    %v278 = vld [vmem:[#allocation5 + $0x4c0] sm:$0xff]
    %v279 = vld [vmem:[#allocation5 + $0x4c8] sm:$0xff]
    %v280 = vld [vmem:[#allocation5 + $0x4d0] sm:$0xff]
    %v281 = vld [vmem:[#allocation5 + $0x4d8] sm:$0xff]
    %v282 = vld [vmem:[#allocation5 + $0x4e0] sm:$0xff]
    %v283 = vld [vmem:[#allocation5 + $0x4e8] sm:$0xff]
    %v284 = vld [vmem:[#allocation5 + $0x4f0] sm:$0xff]
    %v285 = vld [vmem:[#allocation5 + $0x4f8] sm:$0xff]
    %v286 = vld [vmem:[#allocation5 + $0x500] sm:$0xff]
    %v287 = vld [vmem:[#allocation5 + $0x508] sm:$0xff]
    %v288 = vld [vmem:[#allocation5 + $0x510] sm:$0xff]
    %v289 = vld [vmem:[#allocation5 + $0x518] sm:$0xff]
    %v290 = vld [vmem:[#allocation5 + $0x520] sm:$0xff]
    %v291 = vld [vmem:[#allocation5 + $0x528] sm:$0xff]
    %v292 = vld [vmem:[#allocation5 + $0x530] sm:$0xff]
    %v293 = vld [vmem:[#allocation5 + $0x538] sm:$0xff]
    %v294 = vld [vmem:[#allocation5 + $0x540] sm:$0xff]
    %v295 = vld [vmem:[#allocation5 + $0x548] sm:$0xff]
    %v296 = vld [vmem:[#allocation5 + $0x550] sm:$0xff]
    %v297 = vld [vmem:[#allocation5 + $0x558] sm:$0xff]
    %v298 = vld [vmem:[#allocation5 + $0x560] sm:$0xff]
    %v299 = vld [vmem:[#allocation5 + $0x568] sm:$0xff]
    %v300 = vld [vmem:[#allocation5 + $0x570] sm:$0xff]
    %v301 = vld [vmem:[#allocation5 + $0x578] sm:$0xff]
    %v302 = vld [vmem:[#allocation5 + $0x580] sm:$0xff]
    %v303 = vld [vmem:[#allocation5 + $0x588] sm:$0xff]
    %v304 = vld [vmem:[#allocation5 + $0x590] sm:$0xff]
    %v305 = vld [vmem:[#allocation5 + $0x598] sm:$0xff]
    %v306 = vld [vmem:[#allocation5 + $0x5a0] sm:$0xff]
    %v307 = vld [vmem:[#allocation5 + $0x5a8] sm:$0xff]
    %v308 = vld [vmem:[#allocation5 + $0x5b0] sm:$0xff]
    %v309 = vld [vmem:[#allocation5 + $0x5b8] sm:$0xff]
    %v310 = vld [vmem:[#allocation5 + $0x5c0] sm:$0xff]
    %v311 = vld [vmem:[#allocation5 + $0x5c8] sm:$0xff]
    %v312 = vld [vmem:[#allocation5 + $0x5d0] sm:$0xff]
    %v313 = vld [vmem:[#allocation5 + $0x5d8] sm:$0xff]
    %v314 = vld [vmem:[#allocation5 + $0x5e0] sm:$0xff]
    %v315 = vld [vmem:[#allocation5 + $0x5e8] sm:$0xff]
    %v316 = vld [vmem:[#allocation5 + $0x5f0] sm:$0xff]
    %v317 = vld [vmem:[#allocation5 + $0x5f8] sm:$0xff]
    %v318 = vld [vmem:[#allocation5 + $0x600] sm:$0xff]
    %v319 = vld [vmem:[#allocation5 + $0x608] sm:$0xff]
    %v320 = vld [vmem:[#allocation5 + $0x610] sm:$0xff]
    %v321 = vld [vmem:[#allocation5 + $0x618] sm:$0xff]
    %v322 = vld [vmem:[#allocation5 + $0x620] sm:$0xff]
    %v323 = vld [vmem:[#allocation5 + $0x628] sm:$0xff]
    %v324 = vld [vmem:[#allocation5 + $0x630] sm:$0xff]
    %v325 = vld [vmem:[#allocation5 + $0x638] sm:$0xff]
    %v326 = vld [vmem:[#allocation5 + $0x640] sm:$0xff]
    %v327 = vld [vmem:[#allocation5 + $0x648] sm:$0xff]
    %v328 = vld [vmem:[#allocation5 + $0x650] sm:$0xff]
    %v329 = vld [vmem:[#allocation5 + $0x658] sm:$0xff]
    %v330 = vld [vmem:[#allocation5 + $0x660] sm:$0xff]
    %v331 = vld [vmem:[#allocation5 + $0x668] sm:$0xff]
    %v332 = vld [vmem:[#allocation5 + $0x670] sm:$0xff]
    %v333 = vld [vmem:[#allocation5 + $0x678] sm:$0xff]
    %v334 = vld [vmem:[#allocation5 + $0x680] sm:$0xff]
    %v335 = vld [vmem:[#allocation5 + $0x688] sm:$0xff]
    %v336 = vld [vmem:[#allocation5 + $0x690] sm:$0xff]
    %v337 = vld [vmem:[#allocation5 + $0x698] sm:$0xff]
    %v338 = vld [vmem:[#allocation5 + $0x6a0] sm:$0xff]
    %v339 = vld [vmem:[#allocation5 + $0x6a8] sm:$0xff]
    %v340 = vld [vmem:[#allocation5 + $0x6b0] sm:$0xff]
    %v341 = vld [vmem:[#allocation5 + $0x6b8] sm:$0xff]
    %v342 = vld [vmem:[#allocation5 + $0x6c0] sm:$0xff]
    %v343 = vld [vmem:[#allocation5 + $0x6c8] sm:$0xff]
    %v344 = vld [vmem:[#allocation5 + $0x6d0] sm:$0xff]
    %v345 = vld [vmem:[#allocation5 + $0x6d8] sm:$0xff]
    %v346 = vld [vmem:[#allocation5 + $0x6e0] sm:$0xff]
    %v347 = vld [vmem:[#allocation5 + $0x6e8] sm:$0xff]
    %v348 = vld [vmem:[#allocation5 + $0x6f0] sm:$0xff]
    %v349 = vld [vmem:[#allocation5 + $0x6f8] sm:$0xff]
    %v350 = vld [vmem:[#allocation7] sm:$0xf]
    %v352 = vlaneseq
    %v353 = vshrl.u32 %v352, 7
    %v354 = vsub.s32 0, %v353
    %v355 = vrot.slane %v350, %v354
    %v356 = vlaneseq
    %v357 = vshrl.u32 %v356, 7
    %v358 = vsub.s32 1, %v357
    %v359 = vrot.slane %v350, %v358
    %v360 = vlaneseq
    %v361 = vshrl.u32 %v360, 7
    %v362 = vsub.s32 2, %v361
    %v363 = vrot.slane %v350, %v362
    %v364 = vlaneseq
    %v365 = vshrl.u32 %v364, 7
    %v366 = vsub.s32 3, %v365
    %v367 = vrot.slane %v350, %v366
    %v596 = vunpack.c.l.b16 %v126
    %v597 = vunpack.c.h.b16 %v126
    %v598 = vunpack.c.l.b16 %v127
    %v599 = vunpack.c.h.b16 %v127
    %v600 = vunpack.c.l.b16 %v128
    %v601 = vunpack.c.h.b16 %v128
    %v602 = vunpack.c.l.b16 %v129
    %v603 = vunpack.c.h.b16 %v129
    %v604 = vunpack.c.l.b16 %v130
    %v605 = vunpack.c.h.b16 %v130
    %v606 = vunpack.c.l.b16 %v131
    %v607 = vunpack.c.h.b16 %v131
    %v608 = vunpack.c.l.b16 %v132
    %v609 = vunpack.c.h.b16 %v132
    %v610 = vunpack.c.l.b16 %v133
    %v611 = vunpack.c.h.b16 %v133
    %v612 = vunpack.c.l.b16 %v134
    %v613 = vunpack.c.h.b16 %v134
    %v614 = vunpack.c.l.b16 %v135
    %v615 = vunpack.c.h.b16 %v135
    %v616 = vunpack.c.l.b16 %v136
    %v617 = vunpack.c.h.b16 %v136
    %v618 = vunpack.c.l.b16 %v137
    %v619 = vunpack.c.h.b16 %v137
    %v620 = vunpack.c.l.b16 %v138
    %v621 = vunpack.c.h.b16 %v138
    %v622 = vunpack.c.l.b16 %v139
    %v623 = vunpack.c.h.b16 %v139
    %v624 = vunpack.c.l.b16 %v140
    %v625 = vunpack.c.h.b16 %v140
    %v626 = vunpack.c.l.b16 %v141
    %v627 = vunpack.c.h.b16 %v141
    %v628 = vunpack.c.l.b16 %v142
    %v629 = vunpack.c.h.b16 %v142
    %v630 = vunpack.c.l.b16 %v143
    %v631 = vunpack.c.h.b16 %v143
    %v632 = vunpack.c.l.b16 %v144
    %v633 = vunpack.c.h.b16 %v144
    %v634 = vunpack.c.l.b16 %v145
    %v635 = vunpack.c.h.b16 %v145
    %v636 = vunpack.c.l.b16 %v146
    %v637 = vunpack.c.h.b16 %v146
    %v638 = vunpack.c.l.b16 %v147
    %v639 = vunpack.c.h.b16 %v147
    %v640 = vunpack.c.l.b16 %v148
    %v641 = vunpack.c.h.b16 %v148
    %v642 = vunpack.c.l.b16 %v149
    %v643 = vunpack.c.h.b16 %v149
    %v644 = vunpack.c.l.b16 %v150
    %v645 = vunpack.c.h.b16 %v150
    %v646 = vunpack.c.l.b16 %v151
    %v647 = vunpack.c.h.b16 %v151
    %v648 = vunpack.c.l.b16 %v152
    %v649 = vunpack.c.h.b16 %v152
    %v650 = vunpack.c.l.b16 %v153
    %v651 = vunpack.c.h.b16 %v153
    %v652 = vunpack.c.l.b16 %v154
    %v653 = vunpack.c.h.b16 %v154
    %v654 = vunpack.c.l.b16 %v155
    %v655 = vunpack.c.h.b16 %v155
    %v656 = vunpack.c.l.b16 %v156
    %v657 = vunpack.c.h.b16 %v156
    %v658 = vunpack.c.l.b16 %v157
    %v659 = vunpack.c.h.b16 %v157
    %v660 = vunpack.c.l.b16 %v158
    %v661 = vunpack.c.h.b16 %v158
    %v662 = vunpack.c.l.b16 %v159
    %v663 = vunpack.c.h.b16 %v159
    %v664 = vunpack.c.l.b16 %v160
    %v665 = vunpack.c.h.b16 %v160
    %v666 = vunpack.c.l.b16 %v161
    %v667 = vunpack.c.h.b16 %v161
    %v668 = vunpack.c.l.b16 %v162
    %v669 = vunpack.c.h.b16 %v162
    %v670 = vunpack.c.l.b16 %v163
    %v671 = vunpack.c.h.b16 %v163
    %v672 = vunpack.c.l.b16 %v164
    %v673 = vunpack.c.h.b16 %v164
    %v674 = vunpack.c.l.b16 %v165
    %v675 = vunpack.c.h.b16 %v165
    %v676 = vunpack.c.l.b16 %v166
    %v677 = vunpack.c.h.b16 %v166
    %v678 = vunpack.c.l.b16 %v167
    %v679 = vunpack.c.h.b16 %v167
    %v680 = vunpack.c.l.b16 %v168
    %v681 = vunpack.c.h.b16 %v168
    %v682 = vunpack.c.l.b16 %v169
    %v683 = vunpack.c.h.b16 %v169
    %v684 = vunpack.c.l.b16 %v170
    %v685 = vunpack.c.h.b16 %v170
    %v686 = vunpack.c.l.b16 %v171
    %v687 = vunpack.c.h.b16 %v171
    %v688 = vunpack.c.l.b16 %v172
    %v689 = vunpack.c.h.b16 %v172
    %v690 = vunpack.c.l.b16 %v173
    %v691 = vunpack.c.h.b16 %v173
    %v692 = vunpack.c.l.b16 %v174
    %v693 = vunpack.c.h.b16 %v174
    %v694 = vunpack.c.l.b16 %v175
    %v695 = vunpack.c.h.b16 %v175
    %v696 = vunpack.c.l.b16 %v176
    %v697 = vunpack.c.h.b16 %v176
    %v698 = vunpack.c.l.b16 %v177
    %v699 = vunpack.c.h.b16 %v177
    %v700 = vunpack.c.l.b16 %v178
    %v701 = vunpack.c.h.b16 %v178
    %v702 = vunpack.c.l.b16 %v179
    %v703 = vunpack.c.h.b16 %v179
    %v704 = vunpack.c.l.b16 %v180
    %v705 = vunpack.c.h.b16 %v180
    %v706 = vunpack.c.l.b16 %v181
    %v707 = vunpack.c.h.b16 %v181
    %v708 = vunpack.c.l.b16 %v182
    %v709 = vunpack.c.h.b16 %v182
    %v710 = vunpack.c.l.b16 %v183
    %v711 = vunpack.c.h.b16 %v183
    %v712 = vunpack.c.l.b16 %v184
    %v713 = vunpack.c.h.b16 %v184
    %v714 = vunpack.c.l.b16 %v185
    %v715 = vunpack.c.h.b16 %v185
    %v716 = vunpack.c.l.b16 %v186
    %v717 = vunpack.c.h.b16 %v186
    %v718 = vunpack.c.l.b16 %v187
    %v719 = vunpack.c.h.b16 %v187
    %v720 = vunpack.c.l.b16 %v188
    %v721 = vunpack.c.h.b16 %v188
    %v722 = vunpack.c.l.b16 %v189
    %v723 = vunpack.c.h.b16 %v189
    %v724 = vunpack.c.l.b16 %v190
    %v725 = vunpack.c.h.b16 %v190
    %v726 = vunpack.c.l.b16 %v191
    %v727 = vunpack.c.h.b16 %v191
    %v728 = vunpack.c.l.b16 %v192
    %v729 = vunpack.c.h.b16 %v192
    %v730 = vunpack.c.l.b16 %v193
    %v731 = vunpack.c.h.b16 %v193
    %v732 = vunpack.c.l.b16 %v194
    %v733 = vunpack.c.h.b16 %v194
    %v734 = vunpack.c.l.b16 %v195
    %v735 = vunpack.c.h.b16 %v195
    %v736 = vunpack.c.l.b16 %v196
    %v737 = vunpack.c.h.b16 %v196
    %v738 = vunpack.c.l.b16 %v197
    %v739 = vunpack.c.h.b16 %v197
    %v740 = vunpack.c.l.b16 %v198
    %v741 = vunpack.c.h.b16 %v198
    %v742 = vunpack.c.l.b16 %v199
    %v743 = vunpack.c.h.b16 %v199
    %v744 = vunpack.c.l.b16 %v200
    %v745 = vunpack.c.h.b16 %v200
    %v746 = vunpack.c.l.b16 %v201
    %v747 = vunpack.c.h.b16 %v201
    %v748 = vunpack.c.l.b16 %v202
    %v749 = vunpack.c.h.b16 %v202
    %v750 = vunpack.c.l.b16 %v203
    %v751 = vunpack.c.h.b16 %v203
    %v752 = vunpack.c.l.b16 %v204
    %v753 = vunpack.c.h.b16 %v204
    %v754 = vunpack.c.l.b16 %v205
    %v755 = vunpack.c.h.b16 %v205
    %v756 = vunpack.c.l.b16 %v206
    %v757 = vunpack.c.h.b16 %v206
    %v758 = vunpack.c.l.b16 %v207
    %v759 = vunpack.c.h.b16 %v207
    %v760 = vunpack.c.l.b16 %v208
    %v761 = vunpack.c.h.b16 %v208
    %v762 = vunpack.c.l.b16 %v209
    %v763 = vunpack.c.h.b16 %v209
    %v764 = vunpack.c.l.b16 %v210
    %v765 = vunpack.c.h.b16 %v210
    %v766 = vunpack.c.l.b16 %v211
    %v767 = vunpack.c.h.b16 %v211
    %v768 = vunpack.c.l.b16 %v212
    %v769 = vunpack.c.h.b16 %v212
    %v770 = vunpack.c.l.b16 %v213
    %v771 = vunpack.c.h.b16 %v213
    %v772 = vunpack.c.l.b16 %v214
    %v773 = vunpack.c.h.b16 %v214
    %v774 = vunpack.c.l.b16 %v215
    %v775 = vunpack.c.h.b16 %v215
    %v776 = vunpack.c.l.b16 %v216
    %v777 = vunpack.c.h.b16 %v216
    %v778 = vunpack.c.l.b16 %v217
    %v779 = vunpack.c.h.b16 %v217
    %v780 = vunpack.c.l.b16 %v218
    %v781 = vunpack.c.h.b16 %v218
    %v782 = vunpack.c.l.b16 %v219
    %v783 = vunpack.c.h.b16 %v219
    %v784 = vunpack.c.l.b16 %v220
    %v785 = vunpack.c.h.b16 %v220
    %v786 = vunpack.c.l.b16 %v221
    %v787 = vunpack.c.h.b16 %v221
    %v788 = vunpack.c.l.b16 %v222
    %v789 = vunpack.c.h.b16 %v222
    %v790 = vunpack.c.l.b16 %v223
    %v791 = vunpack.c.h.b16 %v223
    %v792 = vunpack.c.l.b16 %v224
    %v793 = vunpack.c.h.b16 %v224
    %v794 = vunpack.c.l.b16 %v225
    %v795 = vunpack.c.h.b16 %v225
    %v796 = vunpack.c.l.b16 %v226
    %v797 = vunpack.c.h.b16 %v226
    %v798 = vunpack.c.l.b16 %v227
    %v799 = vunpack.c.h.b16 %v227
    %v800 = vunpack.c.l.b16 %v228
    %v801 = vunpack.c.h.b16 %v228
    %v802 = vunpack.c.l.b16 %v229
    %v803 = vunpack.c.h.b16 %v229
    %v804 = vunpack.c.l.b16 %v230
    %v805 = vunpack.c.h.b16 %v230
    %v806 = vunpack.c.l.b16 %v231
    %v807 = vunpack.c.h.b16 %v231
    %v808 = vunpack.c.l.b16 %v232
    %v809 = vunpack.c.h.b16 %v232
    %v810 = vunpack.c.l.b16 %v233
    %v811 = vunpack.c.h.b16 %v233
    %v812 = vunpack.c.l.b16 %v234
    %v813 = vunpack.c.h.b16 %v234
    %v814 = vunpack.c.l.b16 %v235
    %v815 = vunpack.c.h.b16 %v235
    %v816 = vunpack.c.l.b16 %v236
    %v817 = vunpack.c.h.b16 %v236
    %v818 = vunpack.c.l.b16 %v237
    %v819 = vunpack.c.h.b16 %v237
    %v820 = vunpack.c.l.b16 %v238
    %v821 = vunpack.c.h.b16 %v238
    %v822 = vunpack.c.l.b16 %v239
    %v823 = vunpack.c.h.b16 %v239
    %v824 = vunpack.c.l.b16 %v240
    %v825 = vunpack.c.h.b16 %v240
    %v826 = vunpack.c.l.b16 %v241
    %v827 = vunpack.c.h.b16 %v241
    %v828 = vunpack.c.l.b16 %v242
    %v829 = vunpack.c.h.b16 %v242
    %v830 = vunpack.c.l.b16 %v243
    %v831 = vunpack.c.h.b16 %v243
    %v832 = vunpack.c.l.b16 %v244
    %v833 = vunpack.c.h.b16 %v244
    %v834 = vunpack.c.l.b16 %v245
    %v835 = vunpack.c.h.b16 %v245
    %v836 = vunpack.c.l.b16 %v246
    %v837 = vunpack.c.h.b16 %v246
    %v838 = vunpack.c.l.b16 %v247
    %v839 = vunpack.c.h.b16 %v247
    %v840 = vunpack.c.l.b16 %v248
    %v841 = vunpack.c.h.b16 %v248
    %v842 = vunpack.c.l.b16 %v249
    %v843 = vunpack.c.h.b16 %v249
    %v844 = vunpack.c.l.b16 %v250
    %v845 = vunpack.c.h.b16 %v250
    %v846 = vunpack.c.l.b16 %v251
    %v847 = vunpack.c.h.b16 %v251
    %v848 = vunpack.c.l.b16 %v252
    %v849 = vunpack.c.h.b16 %v252
    %v850 = vunpack.c.l.b16 %v253
    %v851 = vunpack.c.h.b16 %v253
    %v852 = vunpack.c.l.b16 %v254
    %v853 = vunpack.c.h.b16 %v254
    %v854 = vunpack.c.l.b16 %v255
    %v855 = vunpack.c.h.b16 %v255
    %v856 = vunpack.c.l.b16 %v256
    %v857 = vunpack.c.h.b16 %v256
    %v858 = vunpack.c.l.b16 %v257
    %v859 = vunpack.c.h.b16 %v257
    %v860 = vunpack.c.l.b16 %v258
    %v861 = vunpack.c.h.b16 %v258
    %v862 = vunpack.c.l.b16 %v259
    %v863 = vunpack.c.h.b16 %v259
    %v864 = vunpack.c.l.b16 %v260
    %v865 = vunpack.c.h.b16 %v260
    %v866 = vunpack.c.l.b16 %v261
    %v867 = vunpack.c.h.b16 %v261
    %v868 = vunpack.c.l.b16 %v262
    %v869 = vunpack.c.h.b16 %v262
    %v870 = vunpack.c.l.b16 %v263
    %v871 = vunpack.c.h.b16 %v263
    %v872 = vunpack.c.l.b16 %v264
    %v873 = vunpack.c.h.b16 %v264
    %v874 = vunpack.c.l.b16 %v265
    %v875 = vunpack.c.h.b16 %v265
    %v876 = vunpack.c.l.b16 %v266
    %v877 = vunpack.c.h.b16 %v266
    %v878 = vunpack.c.l.b16 %v267
    %v879 = vunpack.c.h.b16 %v267
    %v880 = vunpack.c.l.b16 %v268
    %v881 = vunpack.c.h.b16 %v268
    %v882 = vunpack.c.l.b16 %v269
    %v883 = vunpack.c.h.b16 %v269
    %v884 = vunpack.c.l.b16 %v270
    %v885 = vunpack.c.h.b16 %v270
    %v886 = vunpack.c.l.b16 %v271
    %v887 = vunpack.c.h.b16 %v271
    %v888 = vunpack.c.l.b16 %v272
    %v889 = vunpack.c.h.b16 %v272
    %v890 = vunpack.c.l.b16 %v273
    %v891 = vunpack.c.h.b16 %v273
    %v892 = vunpack.c.l.b16 %v274
    %v893 = vunpack.c.h.b16 %v274
    %v894 = vunpack.c.l.b16 %v275
    %v895 = vunpack.c.h.b16 %v275
    %v896 = vunpack.c.l.b16 %v276
    %v897 = vunpack.c.h.b16 %v276
    %v898 = vunpack.c.l.b16 %v277
    %v899 = vunpack.c.h.b16 %v277
    %v900 = vunpack.c.l.b16 %v278
    %v901 = vunpack.c.h.b16 %v278
    %v902 = vunpack.c.l.b16 %v279
    %v903 = vunpack.c.h.b16 %v279
    %v904 = vunpack.c.l.b16 %v280
    %v905 = vunpack.c.h.b16 %v280
    %v906 = vunpack.c.l.b16 %v281
    %v907 = vunpack.c.h.b16 %v281
    %v908 = vunpack.c.l.b16 %v282
    %v909 = vunpack.c.h.b16 %v282
    %v910 = vunpack.c.l.b16 %v283
    %v911 = vunpack.c.h.b16 %v283
    %v912 = vunpack.c.l.b16 %v284
    %v913 = vunpack.c.h.b16 %v284
    %v914 = vunpack.c.l.b16 %v285
    %v915 = vunpack.c.h.b16 %v285
    %v916 = vunpack.c.l.b16 %v286
    %v917 = vunpack.c.h.b16 %v286
    %v918 = vunpack.c.l.b16 %v287
    %v919 = vunpack.c.h.b16 %v287
    %v920 = vunpack.c.l.b16 %v288
    %v921 = vunpack.c.h.b16 %v288
    %v922 = vunpack.c.l.b16 %v289
    %v923 = vunpack.c.h.b16 %v289
    %v924 = vunpack.c.l.b16 %v290
    %v925 = vunpack.c.h.b16 %v290
    %v926 = vunpack.c.l.b16 %v291
    %v927 = vunpack.c.h.b16 %v291
    %v928 = vunpack.c.l.b16 %v292
    %v929 = vunpack.c.h.b16 %v292
    %v930 = vunpack.c.l.b16 %v293
    %v931 = vunpack.c.h.b16 %v293
    %v932 = vunpack.c.l.b16 %v294
    %v933 = vunpack.c.h.b16 %v294
    %v934 = vunpack.c.l.b16 %v295
    %v935 = vunpack.c.h.b16 %v295
    %v936 = vunpack.c.l.b16 %v296
    %v937 = vunpack.c.h.b16 %v296
    %v938 = vunpack.c.l.b16 %v297
    %v939 = vunpack.c.h.b16 %v297
    %v940 = vunpack.c.l.b16 %v298
    %v941 = vunpack.c.h.b16 %v298
    %v942 = vunpack.c.l.b16 %v299
    %v943 = vunpack.c.h.b16 %v299
    %v944 = vunpack.c.l.b16 %v300
    %v945 = vunpack.c.h.b16 %v300
    %v946 = vunpack.c.l.b16 %v301
    %v947 = vunpack.c.h.b16 %v301
    %v948 = vunpack.c.l.b16 %v302
    %v949 = vunpack.c.h.b16 %v302
    %v950 = vunpack.c.l.b16 %v303
    %v951 = vunpack.c.h.b16 %v303
    %v952 = vunpack.c.l.b16 %v304
    %v953 = vunpack.c.h.b16 %v304
    %v954 = vunpack.c.l.b16 %v305
    %v955 = vunpack.c.h.b16 %v305
    %v956 = vunpack.c.l.b16 %v306
    %v957 = vunpack.c.h.b16 %v306
    %v958 = vunpack.c.l.b16 %v307
    %v959 = vunpack.c.h.b16 %v307
    %v960 = vunpack.c.l.b16 %v308
    %v961 = vunpack.c.h.b16 %v308
    %v962 = vunpack.c.l.b16 %v309
    %v963 = vunpack.c.h.b16 %v309
    %v964 = vunpack.c.l.b16 %v310
    %v965 = vunpack.c.h.b16 %v310
    %v966 = vunpack.c.l.b16 %v311
    %v967 = vunpack.c.h.b16 %v311
    %v968 = vunpack.c.l.b16 %v312
    %v969 = vunpack.c.h.b16 %v312
    %v970 = vunpack.c.l.b16 %v313
    %v971 = vunpack.c.h.b16 %v313
    %v972 = vunpack.c.l.b16 %v314
    %v973 = vunpack.c.h.b16 %v314
    %v974 = vunpack.c.l.b16 %v315
    %v975 = vunpack.c.h.b16 %v315
    %v976 = vunpack.c.l.b16 %v316
    %v977 = vunpack.c.h.b16 %v316
    %v978 = vunpack.c.l.b16 %v317
    %v979 = vunpack.c.h.b16 %v317
    %v980 = vunpack.c.l.b16 %v318
    %v981 = vunpack.c.h.b16 %v318
    %v982 = vunpack.c.l.b16 %v319
    %v983 = vunpack.c.h.b16 %v319
    %v984 = vunpack.c.l.b16 %v320
    %v985 = vunpack.c.h.b16 %v320
    %v986 = vunpack.c.l.b16 %v321
    %v987 = vunpack.c.h.b16 %v321
    %v988 = vunpack.c.l.b16 %v322
    %v989 = vunpack.c.h.b16 %v322
    %v990 = vunpack.c.l.b16 %v323
    %v991 = vunpack.c.h.b16 %v323
    %v992 = vunpack.c.l.b16 %v324
    %v993 = vunpack.c.h.b16 %v324
    %v994 = vunpack.c.l.b16 %v325
    %v995 = vunpack.c.h.b16 %v325
    %v996 = vunpack.c.l.b16 %v326
    %v997 = vunpack.c.h.b16 %v326
    %v998 = vunpack.c.l.b16 %v327
    %v999 = vunpack.c.h.b16 %v327
    %v1000 = vunpack.c.l.b16 %v328
    %v1001 = vunpack.c.h.b16 %v328
    %v1002 = vunpack.c.l.b16 %v329
    %v1003 = vunpack.c.h.b16 %v329
    %v1004 = vunpack.c.l.b16 %v330
    %v1005 = vunpack.c.h.b16 %v330
    %v1006 = vunpack.c.l.b16 %v331
    %v1007 = vunpack.c.h.b16 %v331
    %v1008 = vunpack.c.l.b16 %v332
    %v1009 = vunpack.c.h.b16 %v332
    %v1010 = vunpack.c.l.b16 %v333
    %v1011 = vunpack.c.h.b16 %v333
    %v1012 = vunpack.c.l.b16 %v334
    %v1013 = vunpack.c.h.b16 %v334
    %v1014 = vunpack.c.l.b16 %v335
    %v1015 = vunpack.c.h.b16 %v335
    %v1016 = vunpack.c.l.b16 %v336
    %v1017 = vunpack.c.h.b16 %v336
    %v1018 = vunpack.c.l.b16 %v337
    %v1019 = vunpack.c.h.b16 %v337
    %v1020 = vunpack.c.l.b16 %v338
    %v1021 = vunpack.c.h.b16 %v338
    %v1022 = vunpack.c.l.b16 %v339
    %v1023 = vunpack.c.h.b16 %v339
    %v1024 = vunpack.c.l.b16 %v340
    %v1025 = vunpack.c.h.b16 %v340
    %v1026 = vunpack.c.l.b16 %v341
    %v1027 = vunpack.c.h.b16 %v341
    %v1028 = vunpack.c.l.b16 %v342
    %v1029 = vunpack.c.h.b16 %v342
    %v1030 = vunpack.c.l.b16 %v343
    %v1031 = vunpack.c.h.b16 %v343
    %v1032 = vunpack.c.l.b16 %v344
    %v1033 = vunpack.c.h.b16 %v344
    %v1034 = vunpack.c.l.b16 %v345
    %v1035 = vunpack.c.h.b16 %v345
    %v1036 = vunpack.c.l.b16 %v346
    %v1037 = vunpack.c.h.b16 %v346
    %v1038 = vunpack.c.l.b16 %v347
    %v1039 = vunpack.c.h.b16 %v347
    %v1040 = vunpack.c.l.b16 %v348
    %v1041 = vunpack.c.h.b16 %v348
    %v1042 = vunpack.c.l.b16 %v349
    %v1043 = vunpack.c.h.b16 %v349
    %v1044 = vpack.c.b16 %v600, %v596
    %v1045 = vpack.c.b16 %v601, %v597
    %v1046 = vpack.c.b16 %v602, %v598
    %v1047 = vpack.c.b16 %v603, %v599
    %v1048 = vpack.c.b16 %v608, %v604
    %v1049 = vpack.c.b16 %v609, %v605
    %v1050 = vpack.c.b16 %v610, %v606
    %v1051 = vpack.c.b16 %v611, %v607
    %v1052 = vpack.c.b16 %v616, %v612
    %v1053 = vpack.c.b16 %v617, %v613
    %v1054 = vpack.c.b16 %v618, %v614
    %v1055 = vpack.c.b16 %v619, %v615
    %v1056 = vpack.c.b16 %v624, %v620
    %v1057 = vpack.c.b16 %v625, %v621
    %v1058 = vpack.c.b16 %v626, %v622
    %v1059 = vpack.c.b16 %v627, %v623
    %v1060 = vpack.c.b16 %v632, %v628
    %v1061 = vpack.c.b16 %v633, %v629
    %v1062 = vpack.c.b16 %v634, %v630
    %v1063 = vpack.c.b16 %v635, %v631
    %v1064 = vpack.c.b16 %v640, %v636
    %v1065 = vpack.c.b16 %v641, %v637
    %v1066 = vpack.c.b16 %v642, %v638
    %v1067 = vpack.c.b16 %v643, %v639
    %v1068 = vpack.c.b16 %v648, %v644
    %v1069 = vpack.c.b16 %v649, %v645
    %v1070 = vpack.c.b16 %v650, %v646
    %v1071 = vpack.c.b16 %v651, %v647
    %v1072 = vpack.c.b16 %v656, %v652
    %v1073 = vpack.c.b16 %v657, %v653
    %v1074 = vpack.c.b16 %v658, %v654
    %v1075 = vpack.c.b16 %v659, %v655
    %v1076 = vpack.c.b16 %v664, %v660
    %v1077 = vpack.c.b16 %v665, %v661
    %v1078 = vpack.c.b16 %v666, %v662
    %v1079 = vpack.c.b16 %v667, %v663
    %v1080 = vpack.c.b16 %v672, %v668
    %v1081 = vpack.c.b16 %v673, %v669
    %v1082 = vpack.c.b16 %v674, %v670
    %v1083 = vpack.c.b16 %v675, %v671
    %v1084 = vpack.c.b16 %v680, %v676
    %v1085 = vpack.c.b16 %v681, %v677
    %v1086 = vpack.c.b16 %v682, %v678
    %v1087 = vpack.c.b16 %v683, %v679
    %v1088 = vpack.c.b16 %v688, %v684
    %v1089 = vpack.c.b16 %v689, %v685
    %v1090 = vpack.c.b16 %v690, %v686
    %v1091 = vpack.c.b16 %v691, %v687
    %v1092 = vpack.c.b16 %v696, %v692
    %v1093 = vpack.c.b16 %v697, %v693
    %v1094 = vpack.c.b16 %v698, %v694
    %v1095 = vpack.c.b16 %v699, %v695
    %v1096 = vpack.c.b16 %v704, %v700
    %v1097 = vpack.c.b16 %v705, %v701
    %v1098 = vpack.c.b16 %v706, %v702
    %v1099 = vpack.c.b16 %v707, %v703
    %v1100 = vpack.c.b16 %v712, %v708
    %v1101 = vpack.c.b16 %v713, %v709
    %v1102 = vpack.c.b16 %v714, %v710
    %v1103 = vpack.c.b16 %v715, %v711
    %v1104 = vpack.c.b16 %v720, %v716
    %v1105 = vpack.c.b16 %v721, %v717
    %v1106 = vpack.c.b16 %v722, %v718
    %v1107 = vpack.c.b16 %v723, %v719
    %v1108 = vpack.c.b16 %v728, %v724
    %v1109 = vpack.c.b16 %v729, %v725
    %v1110 = vpack.c.b16 %v730, %v726
    %v1111 = vpack.c.b16 %v731, %v727
    %v1112 = vpack.c.b16 %v736, %v732
    %v1113 = vpack.c.b16 %v737, %v733
    %v1114 = vpack.c.b16 %v738, %v734
    %v1115 = vpack.c.b16 %v739, %v735
    %v1116 = vpack.c.b16 %v744, %v740
    %v1117 = vpack.c.b16 %v745, %v741
    %v1118 = vpack.c.b16 %v746, %v742
    %v1119 = vpack.c.b16 %v747, %v743
    %v1120 = vpack.c.b16 %v752, %v748
    %v1121 = vpack.c.b16 %v753, %v749
    %v1122 = vpack.c.b16 %v754, %v750
    %v1123 = vpack.c.b16 %v755, %v751
    %v1124 = vpack.c.b16 %v760, %v756
    %v1125 = vpack.c.b16 %v761, %v757
    %v1126 = vpack.c.b16 %v762, %v758
    %v1127 = vpack.c.b16 %v763, %v759
    %v1128 = vpack.c.b16 %v768, %v764
    %v1129 = vpack.c.b16 %v769, %v765
    %v1130 = vpack.c.b16 %v770, %v766
    %v1131 = vpack.c.b16 %v771, %v767
    %v1132 = vpack.c.b16 %v776, %v772
    %v1133 = vpack.c.b16 %v777, %v773
    %v1134 = vpack.c.b16 %v778, %v774
    %v1135 = vpack.c.b16 %v779, %v775
    %v1136 = vpack.c.b16 %v784, %v780
    %v1137 = vpack.c.b16 %v785, %v781
    %v1138 = vpack.c.b16 %v786, %v782
    %v1139 = vpack.c.b16 %v787, %v783
    %v1140 = vpack.c.b16 %v792, %v788
    %v1141 = vpack.c.b16 %v793, %v789
    %v1142 = vpack.c.b16 %v794, %v790
    %v1143 = vpack.c.b16 %v795, %v791
    %v1144 = vpack.c.b16 %v800, %v796
    %v1145 = vpack.c.b16 %v801, %v797
    %v1146 = vpack.c.b16 %v802, %v798
    %v1147 = vpack.c.b16 %v803, %v799
    %v1148 = vpack.c.b16 %v808, %v804
    %v1149 = vpack.c.b16 %v809, %v805
    %v1150 = vpack.c.b16 %v810, %v806
    %v1151 = vpack.c.b16 %v811, %v807
    %v1152 = vpack.c.b16 %v816, %v812
    %v1153 = vpack.c.b16 %v817, %v813
    %v1154 = vpack.c.b16 %v818, %v814
    %v1155 = vpack.c.b16 %v819, %v815
    %v1156 = vpack.c.b16 %v824, %v820
    %v1157 = vpack.c.b16 %v825, %v821
    %v1158 = vpack.c.b16 %v826, %v822
    %v1159 = vpack.c.b16 %v827, %v823
    %v1160 = vpack.c.b16 %v832, %v828
    %v1161 = vpack.c.b16 %v833, %v829
    %v1162 = vpack.c.b16 %v834, %v830
    %v1163 = vpack.c.b16 %v835, %v831
    %v1164 = vpack.c.b16 %v840, %v836
    %v1165 = vpack.c.b16 %v841, %v837
    %v1166 = vpack.c.b16 %v842, %v838
    %v1167 = vpack.c.b16 %v843, %v839
    %v1168 = vpack.c.b16 %v848, %v844
    %v1169 = vpack.c.b16 %v849, %v845
    %v1170 = vpack.c.b16 %v850, %v846
    %v1171 = vpack.c.b16 %v851, %v847
    %v1172 = vpack.c.b16 %v856, %v852
    %v1173 = vpack.c.b16 %v857, %v853
    %v1174 = vpack.c.b16 %v858, %v854
    %v1175 = vpack.c.b16 %v859, %v855
    %v1176 = vpack.c.b16 %v864, %v860
    %v1177 = vpack.c.b16 %v865, %v861
    %v1178 = vpack.c.b16 %v866, %v862
    %v1179 = vpack.c.b16 %v867, %v863
    %v1180 = vpack.c.b16 %v872, %v868
    %v1181 = vpack.c.b16 %v873, %v869
    %v1182 = vpack.c.b16 %v874, %v870
    %v1183 = vpack.c.b16 %v875, %v871
    %v1184 = vpack.c.b16 %v880, %v876
    %v1185 = vpack.c.b16 %v881, %v877
    %v1186 = vpack.c.b16 %v882, %v878
    %v1187 = vpack.c.b16 %v883, %v879
    %v1188 = vpack.c.b16 %v888, %v884
    %v1189 = vpack.c.b16 %v889, %v885
    %v1190 = vpack.c.b16 %v890, %v886
    %v1191 = vpack.c.b16 %v891, %v887
    %v1192 = vpack.c.b16 %v896, %v892
    %v1193 = vpack.c.b16 %v897, %v893
    %v1194 = vpack.c.b16 %v898, %v894
    %v1195 = vpack.c.b16 %v899, %v895
    %v1196 = vpack.c.b16 %v904, %v900
    %v1197 = vpack.c.b16 %v905, %v901
    %v1198 = vpack.c.b16 %v906, %v902
    %v1199 = vpack.c.b16 %v907, %v903
    %v1200 = vpack.c.b16 %v912, %v908
    %v1201 = vpack.c.b16 %v913, %v909
    %v1202 = vpack.c.b16 %v914, %v910
    %v1203 = vpack.c.b16 %v915, %v911
    %v1204 = vpack.c.b16 %v920, %v916
    %v1205 = vpack.c.b16 %v921, %v917
    %v1206 = vpack.c.b16 %v922, %v918
    %v1207 = vpack.c.b16 %v923, %v919
    %v1208 = vpack.c.b16 %v928, %v924
    %v1209 = vpack.c.b16 %v929, %v925
    %v1210 = vpack.c.b16 %v930, %v926
    %v1211 = vpack.c.b16 %v931, %v927
    %v1212 = vpack.c.b16 %v936, %v932
    %v1213 = vpack.c.b16 %v937, %v933
    %v1214 = vpack.c.b16 %v938, %v934
    %v1215 = vpack.c.b16 %v939, %v935
    %v1216 = vpack.c.b16 %v944, %v940
    %v1217 = vpack.c.b16 %v945, %v941
    %v1218 = vpack.c.b16 %v946, %v942
    %v1219 = vpack.c.b16 %v947, %v943
    %v1220 = vpack.c.b16 %v952, %v948
    %v1221 = vpack.c.b16 %v953, %v949
    %v1222 = vpack.c.b16 %v954, %v950
    %v1223 = vpack.c.b16 %v955, %v951
    %v1224 = vpack.c.b16 %v960, %v956
    %v1225 = vpack.c.b16 %v961, %v957
    %v1226 = vpack.c.b16 %v962, %v958
    %v1227 = vpack.c.b16 %v963, %v959
    %v1228 = vpack.c.b16 %v968, %v964
    %v1229 = vpack.c.b16 %v969, %v965
    %v1230 = vpack.c.b16 %v970, %v966
    %v1231 = vpack.c.b16 %v971, %v967
    %v1232 = vpack.c.b16 %v976, %v972
    %v1233 = vpack.c.b16 %v977, %v973
    %v1234 = vpack.c.b16 %v978, %v974
    %v1235 = vpack.c.b16 %v979, %v975
    %v1236 = vpack.c.b16 %v984, %v980
    %v1237 = vpack.c.b16 %v985, %v981
    %v1238 = vpack.c.b16 %v986, %v982
    %v1239 = vpack.c.b16 %v987, %v983
    %v1240 = vpack.c.b16 %v992, %v988
    %v1241 = vpack.c.b16 %v993, %v989
    %v1242 = vpack.c.b16 %v994, %v990
    %v1243 = vpack.c.b16 %v995, %v991
    %v1244 = vpack.c.b16 %v1000, %v996
    %v1245 = vpack.c.b16 %v1001, %v997
    %v1246 = vpack.c.b16 %v1002, %v998
    %v1247 = vpack.c.b16 %v1003, %v999
    %v1248 = vpack.c.b16 %v1008, %v1004
    %v1249 = vpack.c.b16 %v1009, %v1005
    %v1250 = vpack.c.b16 %v1010, %v1006
    %v1251 = vpack.c.b16 %v1011, %v1007
    %v1252 = vpack.c.b16 %v1016, %v1012
    %v1253 = vpack.c.b16 %v1017, %v1013
    %v1254 = vpack.c.b16 %v1018, %v1014
    %v1255 = vpack.c.b16 %v1019, %v1015
    %v1256 = vpack.c.b16 %v1024, %v1020
    %v1257 = vpack.c.b16 %v1025, %v1021
    %v1258 = vpack.c.b16 %v1026, %v1022
    %v1259 = vpack.c.b16 %v1027, %v1023
    %v1260 = vpack.c.b16 %v1032, %v1028
    %v1261 = vpack.c.b16 %v1033, %v1029
    %v1262 = vpack.c.b16 %v1034, %v1030
    %v1263 = vpack.c.b16 %v1035, %v1031
    %v1264 = vpack.c.b16 %v1040, %v1036
    %v1265 = vpack.c.b16 %v1041, %v1037
    %v1266 = vpack.c.b16 %v1042, %v1038
    %v1267 = vpack.c.b16 %v1043, %v1039
    %1492 = vmatprep.subr.bf16.mxu0 %v1073
    %1493 = vmatpush1.bf16.msra.mxu0 %v1072
    %1494 = vmatprep.subr.bf16.mxu0 %v1069
    %1495 = vmatpush1.bf16.msra.mxu0 %v1068
    %1496 = vmatprep.subr.bf16.mxu0 %v1065
    %1497 = vmatpush1.bf16.msra.mxu0 %v1064
    %1498 = vmatprep.subr.bf16.mxu0 %v1061
    %1499 = vmatpush1.bf16.msra.mxu0 %v1060
    %1500 = vmatprep.subr.bf16.mxu0 %v1057
    %1501 = vmatpush1.bf16.msra.mxu0 %v1056
    %1502 = vmatprep.subr.bf16.mxu0 %v1053
    %1503 = vmatpush1.bf16.msra.mxu0 %v1052
    %1504 = vmatprep.subr.bf16.mxu0 %v1049
    %1505 = vmatpush1.bf16.msra.mxu0 %v1048
    %1506 = vmatprep.subr.bf16.mxu0 %v1045
    %1507 = vmatpush1.bf16.msra.mxu0 %v1044
    %1508 = vmatprep.subr.bf16.mxu0 %v1105
    %1509 = vmatpush2.bf16.msra.mxu0 %v1104
    %1510 = vmatprep.subr.bf16.mxu0 %v1101
    %1511 = vmatpush2.bf16.msra.mxu0 %v1100
    %1512 = vmatprep.subr.bf16.mxu0 %v1097
    %1513 = vmatpush2.bf16.msra.mxu0 %v1096
    %1514 = vmatprep.subr.bf16.mxu0 %v1093
    %1515 = vmatpush2.bf16.msra.mxu0 %v1092
    %1516 = vmatprep.subr.bf16.mxu0 %v1089
    %1517 = vmatpush2.bf16.msra.mxu0 %v1088
    %1518 = vmatprep.subr.bf16.mxu0 %v1085
    %1519 = vmatpush2.bf16.msra.mxu0 %v1084
    %1520 = vmatprep.subr.bf16.mxu0 %v1081
    %1521 = vmatpush2.bf16.msra.mxu0 %v1080
    %1522 = vmatprep.subr.bf16.mxu0 %v1077
    %1523 = vmatpush2.bf16.msra.mxu0 %v1076
    %1524 = vmatprep.mubr.bf16.mxu0 %v120
    %1525 = vmatmul.mubr.bf16.gmra.mxu0 %v119
    %v1526 = vpop.f32.mrf.mxu0
    %v1527 = vadd.f32 %v355, %v1526
    %v1528 = vpop.f32.mrf.mxu0
    %v1529 = vadd.f32 %v359, %v1528
    %v1530 = vpop.f32.mrf.mxu0
    %v1531 = vpop.f32.mrf.mxu0
    %1532 = vdwg.mxu0
    %1533 = vmatprep.subr.bf16.mxu0 %v1137
    %1534 = vmatpush1.bf16.msra.mxu0 %v1136
    %1535 = vmatprep.subr.bf16.mxu0 %v1133
    %1536 = vmatpush1.bf16.msra.mxu0 %v1132
    %1537 = vmatprep.subr.bf16.mxu0 %v1129
    %1538 = vmatpush1.bf16.msra.mxu0 %v1128
    %1539 = vmatprep.subr.bf16.mxu0 %v1125
    %1540 = vmatpush1.bf16.msra.mxu0 %v1124
    %1541 = vmatprep.subr.bf16.mxu0 %v1121
    %1542 = vmatpush1.bf16.msra.mxu0 %v1120
    %1543 = vmatprep.subr.bf16.mxu0 %v1117
    %1544 = vmatpush1.bf16.msra.mxu0 %v1116
    %1545 = vmatprep.subr.bf16.mxu0 %v1113
    %1546 = vmatpush1.bf16.msra.mxu0 %v1112
    %1547 = vmatprep.subr.bf16.mxu0 %v1109
    %1548 = vmatpush1.bf16.msra.mxu0 %v1108
    %1549 = vmatprep.subr.bf16.mxu0 %v1169
    %1550 = vmatpush2.bf16.msra.mxu0 %v1168
    %1551 = vmatprep.subr.bf16.mxu0 %v1165
    %1552 = vmatpush2.bf16.msra.mxu0 %v1164
    %1553 = vmatprep.subr.bf16.mxu0 %v1161
    %1554 = vmatpush2.bf16.msra.mxu0 %v1160
    %1555 = vmatprep.subr.bf16.mxu0 %v1157
    %1556 = vmatpush2.bf16.msra.mxu0 %v1156
    %1557 = vmatprep.subr.bf16.mxu0 %v1153
    %1558 = vmatpush2.bf16.msra.mxu0 %v1152
    %1559 = vmatprep.subr.bf16.mxu0 %v1149
    %1560 = vmatpush2.bf16.msra.mxu0 %v1148
    %1561 = vmatprep.subr.bf16.mxu0 %v1145
    %1562 = vmatpush2.bf16.msra.mxu0 %v1144
    %1563 = vmatprep.subr.bf16.mxu0 %v1141
    %1564 = vmatpush2.bf16.msra.mxu0 %v1140
    %1565 = vmatprep.mubr.bf16.mxu0 %v122
    %1566 = vmatmul.mubr.bf16.gmra.mxu0 %v121
    %v1567 = vpop.f32.mrf.mxu0
    %v1568 = vadd.f32 %v1527, %v1567
    %v1569 = vpop.f32.mrf.mxu0
    %v1570 = vadd.f32 %v1529, %v1569
    %v1571 = vpop.f32.mrf.mxu0
    %v1572 = vpop.f32.mrf.mxu0
    %1573 = vdwg.mxu0
    %1574 = vmatprep.subr.bf16.mxu0 %v1201
    %1575 = vmatpush1.bf16.msra.mxu0 %v1200
    %1576 = vmatprep.subr.bf16.mxu0 %v1197
    %1577 = vmatpush1.bf16.msra.mxu0 %v1196
    %1578 = vmatprep.subr.bf16.mxu0 %v1193
    %1579 = vmatpush1.bf16.msra.mxu0 %v1192
    %1580 = vmatprep.subr.bf16.mxu0 %v1189
    %1581 = vmatpush1.bf16.msra.mxu0 %v1188
    %1582 = vmatprep.subr.bf16.mxu0 %v1185
    %1583 = vmatpush1.bf16.msra.mxu0 %v1184
    %1584 = vmatprep.subr.bf16.mxu0 %v1181
    %1585 = vmatpush1.bf16.msra.mxu0 %v1180
    %1586 = vmatprep.subr.bf16.mxu0 %v1177
    %1587 = vmatpush1.bf16.msra.mxu0 %v1176
    %1588 = vmatprep.subr.bf16.mxu0 %v1173
    %1589 = vmatpush1.bf16.msra.mxu0 %v1172
    %1590 = vmatprep.subr.bf16.mxu0 %v1233
    %1591 = vmatpush2.bf16.msra.mxu0 %v1232
    %1592 = vmatprep.subr.bf16.mxu0 %v1229
    %1593 = vmatpush2.bf16.msra.mxu0 %v1228
    %1594 = vmatprep.subr.bf16.mxu0 %v1225
    %1595 = vmatpush2.bf16.msra.mxu0 %v1224
    %1596 = vmatprep.subr.bf16.mxu0 %v1221
    %1597 = vmatpush2.bf16.msra.mxu0 %v1220
    %1598 = vmatprep.subr.bf16.mxu0 %v1217
    %1599 = vmatpush2.bf16.msra.mxu0 %v1216
    %1600 = vmatprep.subr.bf16.mxu0 %v1213
    %1601 = vmatpush2.bf16.msra.mxu0 %v1212
    %1602 = vmatprep.subr.bf16.mxu0 %v1209
    %1603 = vmatpush2.bf16.msra.mxu0 %v1208
    %1604 = vmatprep.subr.bf16.mxu0 %v1205
    %1605 = vmatpush2.bf16.msra.mxu0 %v1204
    %1606 = vmatprep.mubr.bf16.mxu0 %v124
    %1607 = vmatmul.mubr.bf16.gmra.mxu0 %v123
    %v1608 = vpop.f32.mrf.mxu0
    %v1609 = vadd.f32 %v1568, %v1608
    %v1610 = vpop.f32.mrf.mxu0
    %v1611 = vadd.f32 %v1570, %v1610
    %v1612 = vpop.f32.mrf.mxu0
    %v1613 = vpop.f32.mrf.mxu0
    %1614 = vdwg.mxu0
    %1615 = vmatprep.subr.bf16.mxu0 %v1265
    %1616 = vmatpush1.bf16.msra.mxu0 %v1264
    %1617 = vmatprep.subr.bf16.mxu0 %v1261
    %1618 = vmatpush1.bf16.msra.mxu0 %v1260
    %1619 = vmatprep.subr.bf16.mxu0 %v1257
    %1620 = vmatpush1.bf16.msra.mxu0 %v1256
    %1621 = vmatprep.subr.bf16.mxu0 %v1253
    %1622 = vmatpush1.bf16.msra.mxu0 %v1252
    %1623 = vmatprep.subr.bf16.mxu0 %v1249
    %1624 = vmatpush1.bf16.msra.mxu0 %v1248
    %1625 = vmatprep.subr.bf16.mxu0 %v1245
    %1626 = vmatpush1.bf16.msra.mxu0 %v1244
    %1627 = vmatprep.subr.bf16.mxu0 %v1241
    %1628 = vmatpush1.bf16.msra.mxu0 %v1240
    %1629 = vmatprep.subr.bf16.mxu0 %v1237
    %1630 = vmatpush1.bf16.msra.mxu0 %v1236
    %1631 = vmatprep.subr.bf16.mxu0 0
    %1632 = vmatpush2.bf16.msra.mxu0 0
    %1633 = vmatprep.subr.bf16.mxu0 0
    %1634 = vmatpush2.bf16.msra.mxu0 0
    %1635 = vmatprep.subr.bf16.mxu0 0
    %1636 = vmatpush2.bf16.msra.mxu0 0
    %1637 = vmatprep.subr.bf16.mxu0 0
    %1638 = vmatpush2.bf16.msra.mxu0 0
    %1639 = vmatprep.subr.bf16.mxu0 0
    %1640 = vmatpush2.bf16.msra.mxu0 0
    %1641 = vmatprep.subr.bf16.mxu0 0
    %1642 = vmatpush2.bf16.msra.mxu0 0
    %1643 = vmatprep.subr.bf16.mxu0 0
    %1644 = vmatpush2.bf16.msra.mxu0 0
    %1645 = vmatprep.subr.bf16.mxu0 0
    %1646 = vmatpush2.bf16.msra.mxu0 0
    %1647 = vmatprep.mubr.bf16.mxu0 0
    %1648 = vmatmul.mubr.bf16.gmra.mxu0 %v125
    %v1649 = vpop.f32.mrf.mxu0
    %v1650 = vadd.f32 %v1609, %v1649
    %v1651 = vpop.f32.mrf.mxu0
    %v1652 = vadd.f32 %v1611, %v1651
    %v1653 = vpop.f32.mrf.mxu0
    %v1654 = vpop.f32.mrf.mxu0
    %1655 = vdwg.mxu0
    %1656 = vmatprep.subr.bf16.mxu0 %v1075
    %1657 = vmatpush1.bf16.msra.mxu0 %v1074
    %1658 = vmatprep.subr.bf16.mxu0 %v1071
    %1659 = vmatpush1.bf16.msra.mxu0 %v1070
    %1660 = vmatprep.subr.bf16.mxu0 %v1067
    %1661 = vmatpush1.bf16.msra.mxu0 %v1066
    %1662 = vmatprep.subr.bf16.mxu0 %v1063
    %1663 = vmatpush1.bf16.msra.mxu0 %v1062
    %1664 = vmatprep.subr.bf16.mxu0 %v1059
    %1665 = vmatpush1.bf16.msra.mxu0 %v1058
    %1666 = vmatprep.subr.bf16.mxu0 %v1055
    %1667 = vmatpush1.bf16.msra.mxu0 %v1054
    %1668 = vmatprep.subr.bf16.mxu0 %v1051
    %1669 = vmatpush1.bf16.msra.mxu0 %v1050
    %1670 = vmatprep.subr.bf16.mxu0 %v1047
    %1671 = vmatpush1.bf16.msra.mxu0 %v1046
    %1672 = vmatprep.subr.bf16.mxu0 %v1107
    %1673 = vmatpush2.bf16.msra.mxu0 %v1106
    %1674 = vmatprep.subr.bf16.mxu0 %v1103
    %1675 = vmatpush2.bf16.msra.mxu0 %v1102
    %1676 = vmatprep.subr.bf16.mxu0 %v1099
    %1677 = vmatpush2.bf16.msra.mxu0 %v1098
    %1678 = vmatprep.subr.bf16.mxu0 %v1095
    %1679 = vmatpush2.bf16.msra.mxu0 %v1094
    %1680 = vmatprep.subr.bf16.mxu0 %v1091
    %1681 = vmatpush2.bf16.msra.mxu0 %v1090
    %1682 = vmatprep.subr.bf16.mxu0 %v1087
    %1683 = vmatpush2.bf16.msra.mxu0 %v1086
    %1684 = vmatprep.subr.bf16.mxu0 %v1083
    %1685 = vmatpush2.bf16.msra.mxu0 %v1082
    %1686 = vmatprep.subr.bf16.mxu0 %v1079
    %1687 = vmatpush2.bf16.msra.mxu0 %v1078
    %1688 = vmatprep.mubr.bf16.mxu0 %v120
    %1689 = vmatmul.mubr.bf16.gmra.mxu0 %v119
    %v1690 = vpop.f32.mrf.mxu0
    %v1691 = vadd.f32 %v363, %v1690
    %v1692 = vpop.f32.mrf.mxu0
    %v1693 = vadd.f32 %v367, %v1692
    %v1694 = vpop.f32.mrf.mxu0
    %v1695 = vpop.f32.mrf.mxu0
    %1696 = vdwg.mxu0
    %1697 = vmatprep.subr.bf16.mxu0 %v1139
    %1698 = vmatpush1.bf16.msra.mxu0 %v1138
    %1699 = vmatprep.subr.bf16.mxu0 %v1135
    %1700 = vmatpush1.bf16.msra.mxu0 %v1134
    %1701 = vmatprep.subr.bf16.mxu0 %v1131
    %1702 = vmatpush1.bf16.msra.mxu0 %v1130
    %1703 = vmatprep.subr.bf16.mxu0 %v1127
    %1704 = vmatpush1.bf16.msra.mxu0 %v1126
    %1705 = vmatprep.subr.bf16.mxu0 %v1123
    %1706 = vmatpush1.bf16.msra.mxu0 %v1122
    %1707 = vmatprep.subr.bf16.mxu0 %v1119
    %1708 = vmatpush1.bf16.msra.mxu0 %v1118
    %1709 = vmatprep.subr.bf16.mxu0 %v1115
    %1710 = vmatpush1.bf16.msra.mxu0 %v1114
    %1711 = vmatprep.subr.bf16.mxu0 %v1111
    %1712 = vmatpush1.bf16.msra.mxu0 %v1110
    %1713 = vmatprep.subr.bf16.mxu0 %v1171
    %1714 = vmatpush2.bf16.msra.mxu0 %v1170
    %1715 = vmatprep.subr.bf16.mxu0 %v1167
    %1716 = vmatpush2.bf16.msra.mxu0 %v1166
    %1717 = vmatprep.subr.bf16.mxu0 %v1163
    %1718 = vmatpush2.bf16.msra.mxu0 %v1162
    %1719 = vmatprep.subr.bf16.mxu0 %v1159
    %1720 = vmatpush2.bf16.msra.mxu0 %v1158
    %1721 = vmatprep.subr.bf16.mxu0 %v1155
    %1722 = vmatpush2.bf16.msra.mxu0 %v1154
    %1723 = vmatprep.subr.bf16.mxu0 %v1151
    %1724 = vmatpush2.bf16.msra.mxu0 %v1150
    %1725 = vmatprep.subr.bf16.mxu0 %v1147
    %1726 = vmatpush2.bf16.msra.mxu0 %v1146
    %1727 = vmatprep.subr.bf16.mxu0 %v1143
    %1728 = vmatpush2.bf16.msra.mxu0 %v1142
    %1729 = vmatprep.mubr.bf16.mxu0 %v122
    %1730 = vmatmul.mubr.bf16.gmra.mxu0 %v121
    %v1731 = vpop.f32.mrf.mxu0
    %v1732 = vadd.f32 %v1691, %v1731
    %v1733 = vpop.f32.mrf.mxu0
    %v1734 = vadd.f32 %v1693, %v1733
    %v1735 = vpop.f32.mrf.mxu0
    %v1736 = vpop.f32.mrf.mxu0
    %1737 = vdwg.mxu0
    %1738 = vmatprep.subr.bf16.mxu0 %v1203
    %1739 = vmatpush1.bf16.msra.mxu0 %v1202
    %1740 = vmatprep.subr.bf16.mxu0 %v1199
    %1741 = vmatpush1.bf16.msra.mxu0 %v1198
    %1742 = vmatprep.subr.bf16.mxu0 %v1195
    %1743 = vmatpush1.bf16.msra.mxu0 %v1194
    %1744 = vmatprep.subr.bf16.mxu0 %v1191
    %1745 = vmatpush1.bf16.msra.mxu0 %v1190
    %1746 = vmatprep.subr.bf16.mxu0 %v1187
    %1747 = vmatpush1.bf16.msra.mxu0 %v1186
    %1748 = vmatprep.subr.bf16.mxu0 %v1183
    %1749 = vmatpush1.bf16.msra.mxu0 %v1182
    %1750 = vmatprep.subr.bf16.mxu0 %v1179
    %1751 = vmatpush1.bf16.msra.mxu0 %v1178
    %1752 = vmatprep.subr.bf16.mxu0 %v1175
    %1753 = vmatpush1.bf16.msra.mxu0 %v1174
    %1754 = vmatprep.subr.bf16.mxu0 %v1235
    %1755 = vmatpush2.bf16.msra.mxu0 %v1234
    %1756 = vmatprep.subr.bf16.mxu0 %v1231
    %1757 = vmatpush2.bf16.msra.mxu0 %v1230
    %1758 = vmatprep.subr.bf16.mxu0 %v1227
    %1759 = vmatpush2.bf16.msra.mxu0 %v1226
    %1760 = vmatprep.subr.bf16.mxu0 %v1223
    %1761 = vmatpush2.bf16.msra.mxu0 %v1222
    %1762 = vmatprep.subr.bf16.mxu0 %v1219
    %1763 = vmatpush2.bf16.msra.mxu0 %v1218
    %1764 = vmatprep.subr.bf16.mxu0 %v1215
    %1765 = vmatpush2.bf16.msra.mxu0 %v1214
    %1766 = vmatprep.subr.bf16.mxu0 %v1211
    %1767 = vmatpush2.bf16.msra.mxu0 %v1210
    %1768 = vmatprep.subr.bf16.mxu0 %v1207
    %1769 = vmatpush2.bf16.msra.mxu0 %v1206
    %1770 = vmatprep.mubr.bf16.mxu0 %v124
    %1771 = vmatmul.mubr.bf16.gmra.mxu0 %v123
    %v1772 = vpop.f32.mrf.mxu0
    %v1773 = vadd.f32 %v1732, %v1772
    %v1774 = vpop.f32.mrf.mxu0
    %v1775 = vadd.f32 %v1734, %v1774
    %v1776 = vpop.f32.mrf.mxu0
    %v1777 = vpop.f32.mrf.mxu0
    %1778 = vdwg.mxu0
    %1779 = vmatprep.subr.bf16.mxu0 %v1267
    %1780 = vmatpush1.bf16.msra.mxu0 %v1266
    %1781 = vmatprep.subr.bf16.mxu0 %v1263
    %1782 = vmatpush1.bf16.msra.mxu0 %v1262
    %1783 = vmatprep.subr.bf16.mxu0 %v1259
    %1784 = vmatpush1.bf16.msra.mxu0 %v1258
    %1785 = vmatprep.subr.bf16.mxu0 %v1255
    %1786 = vmatpush1.bf16.msra.mxu0 %v1254
    %1787 = vmatprep.subr.bf16.mxu0 %v1251
    %1788 = vmatpush1.bf16.msra.mxu0 %v1250
    %1789 = vmatprep.subr.bf16.mxu0 %v1247
    %1790 = vmatpush1.bf16.msra.mxu0 %v1246
    %1791 = vmatprep.subr.bf16.mxu0 %v1243
    %1792 = vmatpush1.bf16.msra.mxu0 %v1242
    %1793 = vmatprep.subr.bf16.mxu0 %v1239
    %1794 = vmatpush1.bf16.msra.mxu0 %v1238
    %1795 = vmatprep.subr.bf16.mxu0 0
    %1796 = vmatpush2.bf16.msra.mxu0 0
    %1797 = vmatprep.subr.bf16.mxu0 0
    %1798 = vmatpush2.bf16.msra.mxu0 0
    %1799 = vmatprep.subr.bf16.mxu0 0
    %1800 = vmatpush2.bf16.msra.mxu0 0
    %1801 = vmatprep.subr.bf16.mxu0 0
    %1802 = vmatpush2.bf16.msra.mxu0 0
    %1803 = vmatprep.subr.bf16.mxu0 0
    %1804 = vmatpush2.bf16.msra.mxu0 0
    %1805 = vmatprep.subr.bf16.mxu0 0
    %1806 = vmatpush2.bf16.msra.mxu0 0
    %1807 = vmatprep.subr.bf16.mxu0 0
    %1808 = vmatpush2.bf16.msra.mxu0 0
    %1809 = vmatprep.subr.bf16.mxu0 0
    %1810 = vmatpush2.bf16.msra.mxu0 0
    %1811 = vmatprep.mubr.bf16.mxu0 0
    %1812 = vmatmul.mubr.bf16.gmra.mxu0 %v125
    %v1813 = vpop.f32.mrf.mxu0
    %v1814 = vadd.f32 %v1773, %v1813
    %v1815 = vpop.f32.mrf.mxu0
    %v1816 = vadd.f32 %v1775, %v1815
    %v1817 = vpop.f32.mrf.mxu0
    %v1818 = vpop.f32.mrf.mxu0
    %1819 = vdwg.mxu0
    %v1820 = vmax.f32 %v1650, 0.0
    %v1821 = vmax.f32 %v1652, 0.0
    %v1822 = vmax.f32 %v1814, 0.0
    %v1823 = vmax.f32 %v1816, 0.0
    %v1824 = vpack.c.bf16 %v1820, %v1820
    %v1825 = vpack.c.bf16 %v1821, %v1821
    %v1826 = vpack.c.bf16 %v1822, %v1822
    %v1827 = vpack.c.bf16 %v1823, %v1823
    %v1828 = vld [vmem:[#allocation8] sm:$0xff]
    %v1829 = vld [vmem:[#allocation8 + $0x8] sm:$0xf]
    %v1830 = vld [vmem:[#allocation8 + $0xc] sm:$0xff]
    %v1831 = vld [vmem:[#allocation8 + $0x14] sm:$0xf]
    %v1832 = vld [vmem:[#allocation8 + $0x18] sm:$0xff]
    %v1833 = vld [vmem:[#allocation8 + $0x20] sm:$0xf]
    %v1834 = vld [vmem:[#allocation8 + $0x24] sm:$0xff]
    %v1835 = vld [vmem:[#allocation8 + $0x2c] sm:$0xf]
    %v1836 = vld [vmem:[#allocation8 + $0x30] sm:$0xff]
    %v1837 = vld [vmem:[#allocation8 + $0x38] sm:$0xf]
    %v1838 = vld [vmem:[#allocation8 + $0x3c] sm:$0xff]
    %v1839 = vld [vmem:[#allocation8 + $0x44] sm:$0xf]
    %v1840 = vld [vmem:[#allocation8 + $0x48] sm:$0xff]
    %v1841 = vld [vmem:[#allocation8 + $0x50] sm:$0xf]
    %v1842 = vld [vmem:[#allocation8 + $0x54] sm:$0xff]
    %v1843 = vld [vmem:[#allocation8 + $0x5c] sm:$0xf]
    %v1844 = vld [vmem:[#allocation8 + $0x60] sm:$0xff]
    %v1845 = vld [vmem:[#allocation8 + $0x68] sm:$0xf]
    %v1846 = vld [vmem:[#allocation8 + $0x6c] sm:$0xff]
    %v1847 = vld [vmem:[#allocation8 + $0x74] sm:$0xf]
    %v1848 = vld [vmem:[#allocation8 + $0x78] sm:$0xff]
    %v1849 = vld [vmem:[#allocation8 + $0x80] sm:$0xf]
    %v1850 = vld [vmem:[#allocation8 + $0x84] sm:$0xff]
    %v1851 = vld [vmem:[#allocation8 + $0x8c] sm:$0xf]
    %v1852 = vld [vmem:[#allocation8 + $0x90] sm:$0xff]
    %v1853 = vld [vmem:[#allocation8 + $0x98] sm:$0xf]
    %v1854 = vld [vmem:[#allocation8 + $0x9c] sm:$0xff]
    %v1855 = vld [vmem:[#allocation8 + $0xa4] sm:$0xf]
    %v1856 = vld [vmem:[#allocation8 + $0xa8] sm:$0xff]
    %v1857 = vld [vmem:[#allocation8 + $0xb0] sm:$0xf]
    %v1858 = vld [vmem:[#allocation8 + $0xb4] sm:$0xff]
    %v1859 = vld [vmem:[#allocation8 + $0xbc] sm:$0xf]
    %v1860 = vld [vmem:[#allocation8 + $0xc0] sm:$0xff]
    %v1861 = vld [vmem:[#allocation8 + $0xc8] sm:$0xf]
    %v1862 = vld [vmem:[#allocation8 + $0xcc] sm:$0xff]
    %v1863 = vld [vmem:[#allocation8 + $0xd4] sm:$0xf]
    %v1864 = vld [vmem:[#allocation8 + $0xd8] sm:$0xff]
    %v1865 = vld [vmem:[#allocation8 + $0xe0] sm:$0xf]
    %v1866 = vld [vmem:[#allocation8 + $0xe4] sm:$0xff]
    %v1867 = vld [vmem:[#allocation8 + $0xec] sm:$0xf]
    %v1868 = vld [vmem:[#allocation8 + $0xf0] sm:$0xff]
    %v1869 = vld [vmem:[#allocation8 + $0xf8] sm:$0xf]
    %v1870 = vld [vmem:[#allocation8 + $0xfc] sm:$0xff]
    %v1871 = vld [vmem:[#allocation8 + $0x104] sm:$0xf]
    %v1872 = vld [vmem:[#allocation8 + $0x108] sm:$0xff]
    %v1873 = vld [vmem:[#allocation8 + $0x110] sm:$0xf]
    %v1874 = vld [vmem:[#allocation8 + $0x114] sm:$0xff]
    %v1875 = vld [vmem:[#allocation8 + $0x11c] sm:$0xf]
    %v1876 = vld [vmem:[#allocation8 + $0x120] sm:$0xff]
    %v1877 = vld [vmem:[#allocation8 + $0x128] sm:$0xf]
    %v1878 = vld [vmem:[#allocation8 + $0x12c] sm:$0xff]
    %v1879 = vld [vmem:[#allocation8 + $0x134] sm:$0xf]
    %v1880 = vld [vmem:[#allocation8 + $0x138] sm:$0xff]
    %v1881 = vld [vmem:[#allocation8 + $0x140] sm:$0xf]
    %v1882 = vld [vmem:[#allocation8 + $0x144] sm:$0xff]
    %v1883 = vld [vmem:[#allocation8 + $0x14c] sm:$0xf]
    %v1884 = vld [vmem:[#allocation8 + $0x150] sm:$0xff]
    %v1885 = vld [vmem:[#allocation8 + $0x158] sm:$0xf]
    %v1886 = vld [vmem:[#allocation8 + $0x15c] sm:$0xff]
    %v1887 = vld [vmem:[#allocation8 + $0x164] sm:$0xf]
    %v1888 = vld [vmem:[#allocation8 + $0x168] sm:$0xff]
    %v1889 = vld [vmem:[#allocation8 + $0x170] sm:$0xf]
    %v1890 = vld [vmem:[#allocation8 + $0x174] sm:$0xff]
    %v1891 = vld [vmem:[#allocation8 + $0x17c] sm:$0xf]
    %v1892 = vld [vmem:[#allocation8 + $0x180] sm:$0xff]
    %v1893 = vld [vmem:[#allocation8 + $0x188] sm:$0xf]
    %v1894 = vld [vmem:[#allocation8 + $0x18c] sm:$0xff]
    %v1895 = vld [vmem:[#allocation8 + $0x194] sm:$0xf]
    %v1896 = vld [vmem:[#allocation8 + $0x198] sm:$0xff]
    %v1897 = vld [vmem:[#allocation8 + $0x1a0] sm:$0xf]
    %v1898 = vld [vmem:[#allocation8 + $0x1a4] sm:$0xff]
    %v1899 = vld [vmem:[#allocation8 + $0x1ac] sm:$0xf]
    %v1900 = vld [vmem:[#allocation8 + $0x1b0] sm:$0xff]
    %v1901 = vld [vmem:[#allocation8 + $0x1b8] sm:$0xf]
    %v1902 = vld [vmem:[#allocation8 + $0x1bc] sm:$0xff]
    %v1903 = vld [vmem:[#allocation8 + $0x1c4] sm:$0xf]
    %v1904 = vld [vmem:[#allocation8 + $0x1c8] sm:$0xff]
    %v1905 = vld [vmem:[#allocation8 + $0x1d0] sm:$0xf]
    %v1906 = vld [vmem:[#allocation8 + $0x1d4] sm:$0xff]
    %v1907 = vld [vmem:[#allocation8 + $0x1dc] sm:$0xf]
    %v1908 = vld [vmem:[#allocation8 + $0x1e0] sm:$0xff]
    %v1909 = vld [vmem:[#allocation8 + $0x1e8] sm:$0xf]
    %v1910 = vld [vmem:[#allocation8 + $0x1ec] sm:$0xff]
    %v1911 = vld [vmem:[#allocation8 + $0x1f4] sm:$0xf]
    %v1912 = vld [vmem:[#allocation8 + $0x1f8] sm:$0xff]
    %v1913 = vld [vmem:[#allocation8 + $0x200] sm:$0xf]
    %v1914 = vld [vmem:[#allocation8 + $0x204] sm:$0xff]
    %v1915 = vld [vmem:[#allocation8 + $0x20c] sm:$0xf]
    %v1916 = vld [vmem:[#allocation8 + $0x210] sm:$0xff]
    %v1917 = vld [vmem:[#allocation8 + $0x218] sm:$0xf]
    %v1918 = vld [vmem:[#allocation8 + $0x21c] sm:$0xff]
    %v1919 = vld [vmem:[#allocation8 + $0x224] sm:$0xf]
    %v1920 = vld [vmem:[#allocation8 + $0x228] sm:$0xff]
    %v1921 = vld [vmem:[#allocation8 + $0x230] sm:$0xf]
    %v1922 = vld [vmem:[#allocation8 + $0x234] sm:$0xff]
    %v1923 = vld [vmem:[#allocation8 + $0x23c] sm:$0xf]
    %v1924 = vld [vmem:[#allocation8 + $0x240] sm:$0xff]
    %v1925 = vld [vmem:[#allocation8 + $0x248] sm:$0xf]
    %v1926 = vld [vmem:[#allocation8 + $0x24c] sm:$0xff]
    %v1927 = vld [vmem:[#allocation8 + $0x254] sm:$0xf]
    %v1928 = vld [vmem:[#allocation8 + $0x258] sm:$0xff]
    %v1929 = vld [vmem:[#allocation8 + $0x260] sm:$0xf]
    %v1930 = vld [vmem:[#allocation8 + $0x264] sm:$0xff]
    %v1931 = vld [vmem:[#allocation8 + $0x26c] sm:$0xf]
    %v1932 = vld [vmem:[#allocation8 + $0x270] sm:$0xff]
    %v1933 = vld [vmem:[#allocation8 + $0x278] sm:$0xf]
    %v1934 = vld [vmem:[#allocation8 + $0x27c] sm:$0xff]
    %v1935 = vld [vmem:[#allocation8 + $0x284] sm:$0xf]
    %v1936 = vld [vmem:[#allocation8 + $0x288] sm:$0xff]
    %v1937 = vld [vmem:[#allocation8 + $0x290] sm:$0xf]
    %v1938 = vld [vmem:[#allocation8 + $0x294] sm:$0xff]
    %v1939 = vld [vmem:[#allocation8 + $0x29c] sm:$0xf]
    %v1940 = vld [vmem:[#allocation8 + $0x2a0] sm:$0xff]
    %v1941 = vld [vmem:[#allocation8 + $0x2a8] sm:$0xf]
    %v1942 = vld [vmem:[#allocation8 + $0x2ac] sm:$0xff]
    %v1943 = vld [vmem:[#allocation8 + $0x2b4] sm:$0xf]
    %v1944 = vld [vmem:[#allocation8 + $0x2b8] sm:$0xff]
    %v1945 = vld [vmem:[#allocation8 + $0x2c0] sm:$0xf]
    %v1946 = vld [vmem:[#allocation8 + $0x2c4] sm:$0xff]
    %v1947 = vld [vmem:[#allocation8 + $0x2cc] sm:$0xf]
    %v1948 = vld [vmem:[#allocation8 + $0x2d0] sm:$0xff]
    %v1949 = vld [vmem:[#allocation8 + $0x2d8] sm:$0xf]
    %v1950 = vld [vmem:[#allocation8 + $0x2dc] sm:$0xff]
    %v1951 = vld [vmem:[#allocation8 + $0x2e4] sm:$0xf]
    %v1952 = vld [vmem:[#allocation8 + $0x2e8] sm:$0xff]
    %v1953 = vld [vmem:[#allocation8 + $0x2f0] sm:$0xf]
    %v1954 = vld [vmem:[#allocation8 + $0x2f4] sm:$0xff]
    %v1955 = vld [vmem:[#allocation8 + $0x2fc] sm:$0xf]
    %v1956 = vld [vmem:[%s4] sm:$0x7]
    %v1958 = vlaneseq
    %v1959 = vshrl.u32 %v1958, 7
    %v1960 = vsub.s32 0, %v1959
    %v1961 = vrot.slane %v1956, %v1960
    %v1962 = vlaneseq
    %v1963 = vshrl.u32 %v1962, 7
    %v1964 = vsub.s32 1, %v1963
    %v1965 = vrot.slane %v1956, %v1964
    %v1966 = vlaneseq
    %v1967 = vshrl.u32 %v1966, 7
    %v1968 = vsub.s32 2, %v1967
    %v1969 = vrot.slane %v1956, %v1968
    %v2101 = vunpack.c.l.b16 %v1828
    %v2102 = vunpack.c.h.b16 %v1828
    %v2103 = vunpack.c.l.b16 %v1829
    %v2104 = vunpack.c.l.b16 %v1830
    %v2105 = vunpack.c.h.b16 %v1830
    %v2106 = vunpack.c.l.b16 %v1831
    %v2107 = vunpack.c.l.b16 %v1832
    %v2108 = vunpack.c.h.b16 %v1832
    %v2109 = vunpack.c.l.b16 %v1833
    %v2110 = vunpack.c.l.b16 %v1834
    %v2111 = vunpack.c.h.b16 %v1834
    %v2112 = vunpack.c.l.b16 %v1835
    %v2113 = vunpack.c.l.b16 %v1836
    %v2114 = vunpack.c.h.b16 %v1836
    %v2115 = vunpack.c.l.b16 %v1837
    %v2116 = vunpack.c.l.b16 %v1838
    %v2117 = vunpack.c.h.b16 %v1838
    %v2118 = vunpack.c.l.b16 %v1839
    %v2119 = vunpack.c.l.b16 %v1840
    %v2120 = vunpack.c.h.b16 %v1840
    %v2121 = vunpack.c.l.b16 %v1841
    %v2122 = vunpack.c.l.b16 %v1842
    %v2123 = vunpack.c.h.b16 %v1842
    %v2124 = vunpack.c.l.b16 %v1843
    %v2125 = vunpack.c.l.b16 %v1844
    %v2126 = vunpack.c.h.b16 %v1844
    %v2127 = vunpack.c.l.b16 %v1845
    %v2128 = vunpack.c.l.b16 %v1846
    %v2129 = vunpack.c.h.b16 %v1846
    %v2130 = vunpack.c.l.b16 %v1847
    %v2131 = vunpack.c.l.b16 %v1848
    %v2132 = vunpack.c.h.b16 %v1848
    %v2133 = vunpack.c.l.b16 %v1849
    %v2134 = vunpack.c.l.b16 %v1850
    %v2135 = vunpack.c.h.b16 %v1850
    %v2136 = vunpack.c.l.b16 %v1851
    %v2137 = vunpack.c.l.b16 %v1852
    %v2138 = vunpack.c.h.b16 %v1852
    %v2139 = vunpack.c.l.b16 %v1853
    %v2140 = vunpack.c.l.b16 %v1854
    %v2141 = vunpack.c.h.b16 %v1854
    %v2142 = vunpack.c.l.b16 %v1855
    %v2143 = vunpack.c.l.b16 %v1856
    %v2144 = vunpack.c.h.b16 %v1856
    %v2145 = vunpack.c.l.b16 %v1857
    %v2146 = vunpack.c.l.b16 %v1858
    %v2147 = vunpack.c.h.b16 %v1858
    %v2148 = vunpack.c.l.b16 %v1859
    %v2149 = vunpack.c.l.b16 %v1860
    %v2150 = vunpack.c.h.b16 %v1860
    %v2151 = vunpack.c.l.b16 %v1861
    %v2152 = vunpack.c.l.b16 %v1862
    %v2153 = vunpack.c.h.b16 %v1862
    %v2154 = vunpack.c.l.b16 %v1863
    %v2155 = vunpack.c.l.b16 %v1864
    %v2156 = vunpack.c.h.b16 %v1864
    %v2157 = vunpack.c.l.b16 %v1865
    %v2158 = vunpack.c.l.b16 %v1866
    %v2159 = vunpack.c.h.b16 %v1866
    %v2160 = vunpack.c.l.b16 %v1867
    %v2161 = vunpack.c.l.b16 %v1868
    %v2162 = vunpack.c.h.b16 %v1868
    %v2163 = vunpack.c.l.b16 %v1869
    %v2164 = vunpack.c.l.b16 %v1870
    %v2165 = vunpack.c.h.b16 %v1870
    %v2166 = vunpack.c.l.b16 %v1871
    %v2167 = vunpack.c.l.b16 %v1872
    %v2168 = vunpack.c.h.b16 %v1872
    %v2169 = vunpack.c.l.b16 %v1873
    %v2170 = vunpack.c.l.b16 %v1874
    %v2171 = vunpack.c.h.b16 %v1874
    %v2172 = vunpack.c.l.b16 %v1875
    %v2173 = vunpack.c.l.b16 %v1876
    %v2174 = vunpack.c.h.b16 %v1876
    %v2175 = vunpack.c.l.b16 %v1877
    %v2176 = vunpack.c.l.b16 %v1878
    %v2177 = vunpack.c.h.b16 %v1878
    %v2178 = vunpack.c.l.b16 %v1879
    %v2179 = vunpack.c.l.b16 %v1880
    %v2180 = vunpack.c.h.b16 %v1880
    %v2181 = vunpack.c.l.b16 %v1881
    %v2182 = vunpack.c.l.b16 %v1882
    %v2183 = vunpack.c.h.b16 %v1882
    %v2184 = vunpack.c.l.b16 %v1883
    %v2185 = vunpack.c.l.b16 %v1884
    %v2186 = vunpack.c.h.b16 %v1884
    %v2187 = vunpack.c.l.b16 %v1885
    %v2188 = vunpack.c.l.b16 %v1886
    %v2189 = vunpack.c.h.b16 %v1886
    %v2190 = vunpack.c.l.b16 %v1887
    %v2191 = vunpack.c.l.b16 %v1888
    %v2192 = vunpack.c.h.b16 %v1888
    %v2193 = vunpack.c.l.b16 %v1889
    %v2194 = vunpack.c.l.b16 %v1890
    %v2195 = vunpack.c.h.b16 %v1890
    %v2196 = vunpack.c.l.b16 %v1891
    %v2197 = vunpack.c.l.b16 %v1892
    %v2198 = vunpack.c.h.b16 %v1892
    %v2199 = vunpack.c.l.b16 %v1893
    %v2200 = vunpack.c.l.b16 %v1894
    %v2201 = vunpack.c.h.b16 %v1894
    %v2202 = vunpack.c.l.b16 %v1895
    %v2203 = vunpack.c.l.b16 %v1896
    %v2204 = vunpack.c.h.b16 %v1896
    %v2205 = vunpack.c.l.b16 %v1897
    %v2206 = vunpack.c.l.b16 %v1898
    %v2207 = vunpack.c.h.b16 %v1898
    %v2208 = vunpack.c.l.b16 %v1899
    %v2209 = vunpack.c.l.b16 %v1900
    %v2210 = vunpack.c.h.b16 %v1900
    %v2211 = vunpack.c.l.b16 %v1901
    %v2212 = vunpack.c.l.b16 %v1902
    %v2213 = vunpack.c.h.b16 %v1902
    %v2214 = vunpack.c.l.b16 %v1903
    %v2215 = vunpack.c.l.b16 %v1904
    %v2216 = vunpack.c.h.b16 %v1904
    %v2217 = vunpack.c.l.b16 %v1905
    %v2218 = vunpack.c.l.b16 %v1906
    %v2219 = vunpack.c.h.b16 %v1906
    %v2220 = vunpack.c.l.b16 %v1907
    %v2221 = vunpack.c.l.b16 %v1908
    %v2222 = vunpack.c.h.b16 %v1908
    %v2223 = vunpack.c.l.b16 %v1909
    %v2224 = vunpack.c.l.b16 %v1910
    %v2225 = vunpack.c.h.b16 %v1910
    %v2226 = vunpack.c.l.b16 %v1911
    %v2227 = vunpack.c.l.b16 %v1912
    %v2228 = vunpack.c.h.b16 %v1912
    %v2229 = vunpack.c.l.b16 %v1913
    %v2230 = vunpack.c.l.b16 %v1914
    %v2231 = vunpack.c.h.b16 %v1914
    %v2232 = vunpack.c.l.b16 %v1915
    %v2233 = vunpack.c.l.b16 %v1916
    %v2234 = vunpack.c.h.b16 %v1916
    %v2235 = vunpack.c.l.b16 %v1917
    %v2236 = vunpack.c.l.b16 %v1918
    %v2237 = vunpack.c.h.b16 %v1918
    %v2238 = vunpack.c.l.b16 %v1919
    %v2239 = vunpack.c.l.b16 %v1920
    %v2240 = vunpack.c.h.b16 %v1920
    %v2241 = vunpack.c.l.b16 %v1921
    %v2242 = vunpack.c.l.b16 %v1922
    %v2243 = vunpack.c.h.b16 %v1922
    %v2244 = vunpack.c.l.b16 %v1923
    %v2245 = vunpack.c.l.b16 %v1924
    %v2246 = vunpack.c.h.b16 %v1924
    %v2247 = vunpack.c.l.b16 %v1925
    %v2248 = vunpack.c.l.b16 %v1926
    %v2249 = vunpack.c.h.b16 %v1926
    %v2250 = vunpack.c.l.b16 %v1927
    %v2251 = vunpack.c.l.b16 %v1928
    %v2252 = vunpack.c.h.b16 %v1928
    %v2253 = vunpack.c.l.b16 %v1929
    %v2254 = vunpack.c.l.b16 %v1930
    %v2255 = vunpack.c.h.b16 %v1930
    %v2256 = vunpack.c.l.b16 %v1931
    %v2257 = vunpack.c.l.b16 %v1932
    %v2258 = vunpack.c.h.b16 %v1932
    %v2259 = vunpack.c.l.b16 %v1933
    %v2260 = vunpack.c.l.b16 %v1934
    %v2261 = vunpack.c.h.b16 %v1934
    %v2262 = vunpack.c.l.b16 %v1935
    %v2263 = vunpack.c.l.b16 %v1936
    %v2264 = vunpack.c.h.b16 %v1936
    %v2265 = vunpack.c.l.b16 %v1937
    %v2266 = vunpack.c.l.b16 %v1938
    %v2267 = vunpack.c.h.b16 %v1938
    %v2268 = vunpack.c.l.b16 %v1939
    %v2269 = vunpack.c.l.b16 %v1940
    %v2270 = vunpack.c.h.b16 %v1940
    %v2271 = vunpack.c.l.b16 %v1941
    %v2272 = vunpack.c.l.b16 %v1942
    %v2273 = vunpack.c.h.b16 %v1942
    %v2274 = vunpack.c.l.b16 %v1943
    %v2275 = vunpack.c.l.b16 %v1944
    %v2276 = vunpack.c.h.b16 %v1944
    %v2277 = vunpack.c.l.b16 %v1945
    %v2278 = vunpack.c.l.b16 %v1946
    %v2279 = vunpack.c.h.b16 %v1946
    %v2280 = vunpack.c.l.b16 %v1947
    %v2281 = vunpack.c.l.b16 %v1948
    %v2282 = vunpack.c.h.b16 %v1948
    %v2283 = vunpack.c.l.b16 %v1949
    %v2284 = vunpack.c.l.b16 %v1950
    %v2285 = vunpack.c.h.b16 %v1950
    %v2286 = vunpack.c.l.b16 %v1951
    %v2287 = vunpack.c.l.b16 %v1952
    %v2288 = vunpack.c.h.b16 %v1952
    %v2289 = vunpack.c.l.b16 %v1953
    %v2290 = vunpack.c.l.b16 %v1954
    %v2291 = vunpack.c.h.b16 %v1954
    %v2292 = vunpack.c.l.b16 %v1955
    %v2293 = vpack.c.b16 %v2104, %v2101
    %v2294 = vpack.c.b16 %v2105, %v2102
    %v2295 = vpack.c.b16 %v2106, %v2103
    %v2296 = vpack.c.b16 %v2110, %v2107
    %v2297 = vpack.c.b16 %v2111, %v2108
    %v2298 = vpack.c.b16 %v2112, %v2109
    %v2299 = vpack.c.b16 %v2116, %v2113
    %v2300 = vpack.c.b16 %v2117, %v2114
    %v2301 = vpack.c.b16 %v2118, %v2115
    %v2302 = vpack.c.b16 %v2122, %v2119
    %v2303 = vpack.c.b16 %v2123, %v2120
    %v2304 = vpack.c.b16 %v2124, %v2121
    %v2305 = vpack.c.b16 %v2128, %v2125
    %v2306 = vpack.c.b16 %v2129, %v2126
    %v2307 = vpack.c.b16 %v2130, %v2127
    %v2308 = vpack.c.b16 %v2134, %v2131
    %v2309 = vpack.c.b16 %v2135, %v2132
    %v2310 = vpack.c.b16 %v2136, %v2133
    %v2311 = vpack.c.b16 %v2140, %v2137
    %v2312 = vpack.c.b16 %v2141, %v2138
    %v2313 = vpack.c.b16 %v2142, %v2139
    %v2314 = vpack.c.b16 %v2146, %v2143
    %v2315 = vpack.c.b16 %v2147, %v2144
    %v2316 = vpack.c.b16 %v2148, %v2145
    %v2317 = vpack.c.b16 %v2152, %v2149
    %v2318 = vpack.c.b16 %v2153, %v2150
    %v2319 = vpack.c.b16 %v2154, %v2151
    %v2320 = vpack.c.b16 %v2158, %v2155
    %v2321 = vpack.c.b16 %v2159, %v2156
    %v2322 = vpack.c.b16 %v2160, %v2157
    %v2323 = vpack.c.b16 %v2164, %v2161
    %v2324 = vpack.c.b16 %v2165, %v2162
    %v2325 = vpack.c.b16 %v2166, %v2163
    %v2326 = vpack.c.b16 %v2170, %v2167
    %v2327 = vpack.c.b16 %v2171, %v2168
    %v2328 = vpack.c.b16 %v2172, %v2169
    %v2329 = vpack.c.b16 %v2176, %v2173
    %v2330 = vpack.c.b16 %v2177, %v2174
    %v2331 = vpack.c.b16 %v2178, %v2175
    %v2332 = vpack.c.b16 %v2182, %v2179
    %v2333 = vpack.c.b16 %v2183, %v2180
    %v2334 = vpack.c.b16 %v2184, %v2181
    %v2335 = vpack.c.b16 %v2188, %v2185
    %v2336 = vpack.c.b16 %v2189, %v2186
    %v2337 = vpack.c.b16 %v2190, %v2187
    %v2338 = vpack.c.b16 %v2194, %v2191
    %v2339 = vpack.c.b16 %v2195, %v2192
    %v2340 = vpack.c.b16 %v2196, %v2193
    %v2341 = vpack.c.b16 %v2200, %v2197
    %v2342 = vpack.c.b16 %v2201, %v2198
    %v2343 = vpack.c.b16 %v2202, %v2199
    %v2344 = vpack.c.b16 %v2206, %v2203
    %v2345 = vpack.c.b16 %v2207, %v2204
    %v2346 = vpack.c.b16 %v2208, %v2205
    %v2347 = vpack.c.b16 %v2212, %v2209
    %v2348 = vpack.c.b16 %v2213, %v2210
    %v2349 = vpack.c.b16 %v2214, %v2211
    %v2350 = vpack.c.b16 %v2218, %v2215
    %v2351 = vpack.c.b16 %v2219, %v2216
    %v2352 = vpack.c.b16 %v2220, %v2217
    %v2353 = vpack.c.b16 %v2224, %v2221
    %v2354 = vpack.c.b16 %v2225, %v2222
    %v2355 = vpack.c.b16 %v2226, %v2223
    %v2356 = vpack.c.b16 %v2230, %v2227
    %v2357 = vpack.c.b16 %v2231, %v2228
    %v2358 = vpack.c.b16 %v2232, %v2229
    %v2359 = vpack.c.b16 %v2236, %v2233
    %v2360 = vpack.c.b16 %v2237, %v2234
    %v2361 = vpack.c.b16 %v2238, %v2235
    %v2362 = vpack.c.b16 %v2242, %v2239
    %v2363 = vpack.c.b16 %v2243, %v2240
    %v2364 = vpack.c.b16 %v2244, %v2241
    %v2365 = vpack.c.b16 %v2248, %v2245
    %v2366 = vpack.c.b16 %v2249, %v2246
    %v2367 = vpack.c.b16 %v2250, %v2247
    %v2368 = vpack.c.b16 %v2254, %v2251
    %v2369 = vpack.c.b16 %v2255, %v2252
    %v2370 = vpack.c.b16 %v2256, %v2253
    %v2371 = vpack.c.b16 %v2260, %v2257
    %v2372 = vpack.c.b16 %v2261, %v2258
    %v2373 = vpack.c.b16 %v2262, %v2259
    %v2374 = vpack.c.b16 %v2266, %v2263
    %v2375 = vpack.c.b16 %v2267, %v2264
    %v2376 = vpack.c.b16 %v2268, %v2265
    %v2377 = vpack.c.b16 %v2272, %v2269
    %v2378 = vpack.c.b16 %v2273, %v2270
    %v2379 = vpack.c.b16 %v2274, %v2271
    %v2380 = vpack.c.b16 %v2278, %v2275
    %v2381 = vpack.c.b16 %v2279, %v2276
    %v2382 = vpack.c.b16 %v2280, %v2277
    %v2383 = vpack.c.b16 %v2284, %v2281
    %v2384 = vpack.c.b16 %v2285, %v2282
    %v2385 = vpack.c.b16 %v2286, %v2283
    %v2386 = vpack.c.b16 %v2290, %v2287
    %v2387 = vpack.c.b16 %v2291, %v2288
    %v2388 = vpack.c.b16 %v2292, %v2289
    %2485 = vmatprep.subr.bf16.mxu0 %v2315
    %2486 = vmatpush1.bf16.msra.mxu0 %v2314
    %2487 = vmatprep.subr.bf16.mxu0 %v2312
    %2488 = vmatpush1.bf16.msra.mxu0 %v2311
    %2489 = vmatprep.subr.bf16.mxu0 %v2309
    %2490 = vmatpush1.bf16.msra.mxu0 %v2308
    %2491 = vmatprep.subr.bf16.mxu0 %v2306
    %2492 = vmatpush1.bf16.msra.mxu0 %v2305
    %2493 = vmatprep.subr.bf16.mxu0 %v2303
    %2494 = vmatpush1.bf16.msra.mxu0 %v2302
    %2495 = vmatprep.subr.bf16.mxu0 %v2300
    %2496 = vmatpush1.bf16.msra.mxu0 %v2299
    %2497 = vmatprep.subr.bf16.mxu0 %v2297
    %2498 = vmatpush1.bf16.msra.mxu0 %v2296
    %2499 = vmatprep.subr.bf16.mxu0 %v2294
    %2500 = vmatpush1.bf16.msra.mxu0 %v2293
    %2501 = vmatprep.subr.bf16.mxu0 %v2339
    %2502 = vmatpush2.bf16.msra.mxu0 %v2338
    %2503 = vmatprep.subr.bf16.mxu0 %v2336
    %2504 = vmatpush2.bf16.msra.mxu0 %v2335
    %2505 = vmatprep.subr.bf16.mxu0 %v2333
    %2506 = vmatpush2.bf16.msra.mxu0 %v2332
    %2507 = vmatprep.subr.bf16.mxu0 %v2330
    %2508 = vmatpush2.bf16.msra.mxu0 %v2329
    %2509 = vmatprep.subr.bf16.mxu0 %v2327
    %2510 = vmatpush2.bf16.msra.mxu0 %v2326
    %2511 = vmatprep.subr.bf16.mxu0 %v2324
    %2512 = vmatpush2.bf16.msra.mxu0 %v2323
    %2513 = vmatprep.subr.bf16.mxu0 %v2321
    %2514 = vmatpush2.bf16.msra.mxu0 %v2320
    %2515 = vmatprep.subr.bf16.mxu0 %v2318
    %2516 = vmatpush2.bf16.msra.mxu0 %v2317
    %2517 = vmatprep.mubr.bf16.mxu0 %v1825
    %2518 = vmatmul.mubr.bf16.gmra.mxu0 %v1824
    %v2519 = vpop.f32.mrf.mxu0
    %v2520 = vadd.f32 %v1961, %v2519
    %v2521 = vpop.f32.mrf.mxu0
    %v2522 = vadd.f32 %v1965, %v2521
    %v2523 = vpop.f32.mrf.mxu0
    %v2524 = vpop.f32.mrf.mxu0
    %2525 = vdwg.mxu0
    %2526 = vmatprep.subr.bf16.mxu0 %v2363
    %2527 = vmatpush1.bf16.msra.mxu0 %v2362
    %2528 = vmatprep.subr.bf16.mxu0 %v2360
    %2529 = vmatpush1.bf16.msra.mxu0 %v2359
    %2530 = vmatprep.subr.bf16.mxu0 %v2357
    %2531 = vmatpush1.bf16.msra.mxu0 %v2356
    %2532 = vmatprep.subr.bf16.mxu0 %v2354
    %2533 = vmatpush1.bf16.msra.mxu0 %v2353
    %2534 = vmatprep.subr.bf16.mxu0 %v2351
    %2535 = vmatpush1.bf16.msra.mxu0 %v2350
    %2536 = vmatprep.subr.bf16.mxu0 %v2348
    %2537 = vmatpush1.bf16.msra.mxu0 %v2347
    %2538 = vmatprep.subr.bf16.mxu0 %v2345
    %2539 = vmatpush1.bf16.msra.mxu0 %v2344
    %2540 = vmatprep.subr.bf16.mxu0 %v2342
    %2541 = vmatpush1.bf16.msra.mxu0 %v2341
    %2542 = vmatprep.subr.bf16.mxu0 %v2387
    %2543 = vmatpush2.bf16.msra.mxu0 %v2386
    %2544 = vmatprep.subr.bf16.mxu0 %v2384
    %2545 = vmatpush2.bf16.msra.mxu0 %v2383
    %2546 = vmatprep.subr.bf16.mxu0 %v2381
    %2547 = vmatpush2.bf16.msra.mxu0 %v2380
    %2548 = vmatprep.subr.bf16.mxu0 %v2378
    %2549 = vmatpush2.bf16.msra.mxu0 %v2377
    %2550 = vmatprep.subr.bf16.mxu0 %v2375
    %2551 = vmatpush2.bf16.msra.mxu0 %v2374
    %2552 = vmatprep.subr.bf16.mxu0 %v2372
    %2553 = vmatpush2.bf16.msra.mxu0 %v2371
    %2554 = vmatprep.subr.bf16.mxu0 %v2369
    %2555 = vmatpush2.bf16.msra.mxu0 %v2368
    %2556 = vmatprep.subr.bf16.mxu0 %v2366
    %2557 = vmatpush2.bf16.msra.mxu0 %v2365
    %2558 = vmatprep.mubr.bf16.mxu0 %v1827
    %2559 = vmatmul.mubr.bf16.gmra.mxu0 %v1826
    %v2560 = vpop.f32.mrf.mxu0
    %v2561 = vadd.f32 %v2520, %v2560
    %v2562 = vpop.f32.mrf.mxu0
    %v2563 = vadd.f32 %v2522, %v2562
    %v2564 = vpop.f32.mrf.mxu0
    %v2565 = vpop.f32.mrf.mxu0
    %2566 = vdwg.mxu0
    %2567 = vmatprep.subr.bf16.mxu0 0
    %2568 = vmatpush1.bf16.msra.mxu0 %v2316
    %2569 = vmatprep.subr.bf16.mxu0 0
    %2570 = vmatpush1.bf16.msra.mxu0 %v2313
    %2571 = vmatprep.subr.bf16.mxu0 0
    %2572 = vmatpush1.bf16.msra.mxu0 %v2310
    %2573 = vmatprep.subr.bf16.mxu0 0
    %2574 = vmatpush1.bf16.msra.mxu0 %v2307
    %2575 = vmatprep.subr.bf16.mxu0 0
    %2576 = vmatpush1.bf16.msra.mxu0 %v2304
    %2577 = vmatprep.subr.bf16.mxu0 0
    %2578 = vmatpush1.bf16.msra.mxu0 %v2301
    %2579 = vmatprep.subr.bf16.mxu0 0
    %2580 = vmatpush1.bf16.msra.mxu0 %v2298
    %2581 = vmatprep.subr.bf16.mxu0 0
    %2582 = vmatpush1.bf16.msra.mxu0 %v2295
    %2583 = vmatprep.subr.bf16.mxu0 0
    %2584 = vmatpush2.bf16.msra.mxu0 %v2340
    %2585 = vmatprep.subr.bf16.mxu0 0
    %2586 = vmatpush2.bf16.msra.mxu0 %v2337
    %2587 = vmatprep.subr.bf16.mxu0 0
    %2588 = vmatpush2.bf16.msra.mxu0 %v2334
    %2589 = vmatprep.subr.bf16.mxu0 0
    %2590 = vmatpush2.bf16.msra.mxu0 %v2331
    %2591 = vmatprep.subr.bf16.mxu0 0
    %2592 = vmatpush2.bf16.msra.mxu0 %v2328
    %2593 = vmatprep.subr.bf16.mxu0 0
    %2594 = vmatpush2.bf16.msra.mxu0 %v2325
    %2595 = vmatprep.subr.bf16.mxu0 0
    %2596 = vmatpush2.bf16.msra.mxu0 %v2322
    %2597 = vmatprep.subr.bf16.mxu0 0
    %2598 = vmatpush2.bf16.msra.mxu0 %v2319
    %2599 = vmatprep.mubr.bf16.mxu0 %v1825
    %2600 = vmatmul.mubr.bf16.gmra.mxu0 %v1824
    %v2601 = vpop.f32.mrf.mxu0
    %v2602 = vadd.f32 %v1969, %v2601
    %v2603 = vpop.f32.mrf.mxu0
    %v2604 = vpop.f32.mrf.mxu0
    %v2605 = vpop.f32.mrf.mxu0
    %2606 = vdwg.mxu0
    %2607 = vmatprep.subr.bf16.mxu0 0
    %2608 = vmatpush1.bf16.msra.mxu0 %v2364
    %2609 = vmatprep.subr.bf16.mxu0 0
    %2610 = vmatpush1.bf16.msra.mxu0 %v2361
    %2611 = vmatprep.subr.bf16.mxu0 0
    %2612 = vmatpush1.bf16.msra.mxu0 %v2358
    %2613 = vmatprep.subr.bf16.mxu0 0
    %2614 = vmatpush1.bf16.msra.mxu0 %v2355
    %2615 = vmatprep.subr.bf16.mxu0 0
    %2616 = vmatpush1.bf16.msra.mxu0 %v2352
    %2617 = vmatprep.subr.bf16.mxu0 0
    %2618 = vmatpush1.bf16.msra.mxu0 %v2349
    %2619 = vmatprep.subr.bf16.mxu0 0
    %2620 = vmatpush1.bf16.msra.mxu0 %v2346
    %2621 = vmatprep.subr.bf16.mxu0 0
    %2622 = vmatpush1.bf16.msra.mxu0 %v2343
    %2623 = vmatprep.subr.bf16.mxu0 0
    %2624 = vmatpush2.bf16.msra.mxu0 %v2388
    %2625 = vmatprep.subr.bf16.mxu0 0
    %2626 = vmatpush2.bf16.msra.mxu0 %v2385
    %2627 = vmatprep.subr.bf16.mxu0 0
    %2628 = vmatpush2.bf16.msra.mxu0 %v2382
    %2629 = vmatprep.subr.bf16.mxu0 0
    %2630 = vmatpush2.bf16.msra.mxu0 %v2379
    %2631 = vmatprep.subr.bf16.mxu0 0
    %2632 = vmatpush2.bf16.msra.mxu0 %v2376
    %2633 = vmatprep.subr.bf16.mxu0 0
    %2634 = vmatpush2.bf16.msra.mxu0 %v2373
    %2635 = vmatprep.subr.bf16.mxu0 0
    %2636 = vmatpush2.bf16.msra.mxu0 %v2370
    %2637 = vmatprep.subr.bf16.mxu0 0
    %2638 = vmatpush2.bf16.msra.mxu0 %v2367
    %2639 = vmatprep.mubr.bf16.mxu0 %v1827
    %2640 = vmatmul.mubr.bf16.gmra.mxu0 %v1826
    %v2641 = vpop.f32.mrf.mxu0
    %v2642 = vadd.f32 %v2602, %v2641
    %v2643 = vpop.f32.mrf.mxu0
    %v2644 = vpop.f32.mrf.mxu0
    %v2645 = vpop.f32.mrf.mxu0
    %2646 = vdwg.mxu0
    %v2647 = vmax.f32 %v2561, 0.0
    %v2648 = vmax.f32 %v2563, 0.0
    %v2649 = vmax.f32 %v2642, 0.0
    %v2650 = vpack.c.bf16 %v2647, %v2647
    %v2651 = vpack.c.bf16 %v2648, %v2648
    %v2652 = vpack.c.bf16 %v2649, %v2649
    %v2653 = vld [vmem:[#allocation10] sm:$0xf]
    %v2654 = vld [vmem:[#allocation10 + $0x4] sm:$0xf]
    %v2655 = vld [vmem:[#allocation10 + $0x8] sm:$0xf]
    %v2656 = vld [vmem:[#allocation10 + $0xc] sm:$0xf]
    %v2657 = vld [vmem:[#allocation10 + $0x10] sm:$0xf]
    %v2658 = vld [vmem:[#allocation10 + $0x14] sm:$0xf]
    %v2659 = vld [vmem:[#allocation10 + $0x18] sm:$0xf]
    %v2660 = vld [vmem:[#allocation10 + $0x1c] sm:$0xf]
    %v2661 = vld [vmem:[#allocation10 + $0x20] sm:$0xf]
    %v2662 = vld [vmem:[#allocation10 + $0x24] sm:$0xf]
    %v2663 = vld [vmem:[#allocation10 + $0x28] sm:$0xf]
    %v2664 = vld [vmem:[#allocation10 + $0x2c] sm:$0xf]
    %v2665 = vld [vmem:[#allocation10 + $0x30] sm:$0xf]
    %v2666 = vld [vmem:[#allocation10 + $0x34] sm:$0xf]
    %v2667 = vld [vmem:[#allocation10 + $0x38] sm:$0xf]
    %v2668 = vld [vmem:[#allocation10 + $0x3c] sm:$0xf]
    %v2669 = vld [vmem:[#allocation10 + $0x40] sm:$0xf]
    %v2670 = vld [vmem:[#allocation10 + $0x44] sm:$0xf]
    %v2671 = vld [vmem:[#allocation10 + $0x48] sm:$0xf]
    %v2672 = vld [vmem:[#allocation10 + $0x4c] sm:$0xf]
    %v2673 = vld [vmem:[#allocation10 + $0x50] sm:$0xf]
    %v2674 = vld [vmem:[#allocation10 + $0x54] sm:$0xf]
    %v2675 = vld [vmem:[#allocation10 + $0x58] sm:$0xf]
    %v2676 = vld [vmem:[#allocation10 + $0x5c] sm:$0xf]
    %v2677 = vld [vmem:[#allocation10 + $0x60] sm:$0xf]
    %v2678 = vld [vmem:[#allocation10 + $0x64] sm:$0xf]
    %v2679 = vld [vmem:[#allocation10 + $0x68] sm:$0xf]
    %v2680 = vld [vmem:[#allocation10 + $0x6c] sm:$0xf]
    %v2681 = vld [vmem:[#allocation10 + $0x70] sm:$0xf]
    %v2682 = vld [vmem:[#allocation10 + $0x74] sm:$0xf]
    %v2683 = vld [vmem:[#allocation10 + $0x78] sm:$0xf]
    %v2684 = vld [vmem:[#allocation10 + $0x7c] sm:$0xf]
    %v2685 = vld [vmem:[#allocation10 + $0x80] sm:$0xf]
    %v2686 = vld [vmem:[#allocation10 + $0x84] sm:$0xf]
    %v2687 = vld [vmem:[#allocation10 + $0x88] sm:$0xf]
    %v2688 = vld [vmem:[#allocation10 + $0x8c] sm:$0xf]
    %v2689 = vld [vmem:[#allocation10 + $0x90] sm:$0xf]
    %v2690 = vld [vmem:[#allocation10 + $0x94] sm:$0xf]
    %v2691 = vld [vmem:[#allocation10 + $0x98] sm:$0xf]
    %v2692 = vld [vmem:[#allocation10 + $0x9c] sm:$0xf]
    %v2693 = vld [vmem:[#allocation10 + $0xa0] sm:$0xf]
    %v2694 = vld [vmem:[#allocation10 + $0xa4] sm:$0xf]
    %v2695 = vld [vmem:[#allocation10 + $0xa8] sm:$0xf]
    %v2696 = vld [vmem:[#allocation10 + $0xac] sm:$0xf]
    %v2697 = vld [vmem:[#allocation10 + $0xb0] sm:$0xf]
    %v2698 = vld [vmem:[#allocation10 + $0xb4] sm:$0xf]
    %v2699 = vld [vmem:[#allocation10 + $0xb8] sm:$0xf]
    %v2700 = vld [vmem:[#allocation10 + $0xbc] sm:$0xf]
    %v2701 = vld [vmem:[%s6] sm:$0x1]
    %v2703 = vlaneseq
    %v2704 = vshrl.u32 %v2703, 7
    %v2705 = vsub.s32 0, %v2704
    %v2706 = vrot.slane %v2701, %v2705
    %v2756 = vunpack.c.l.b16 %v2653
    %v2757 = vunpack.c.l.b16 %v2654
    %v2758 = vunpack.c.l.b16 %v2655
    %v2759 = vunpack.c.l.b16 %v2656
    %v2760 = vunpack.c.l.b16 %v2657
    %v2761 = vunpack.c.l.b16 %v2658
    %v2762 = vunpack.c.l.b16 %v2659
    %v2763 = vunpack.c.l.b16 %v2660
    %v2764 = vunpack.c.l.b16 %v2661
    %v2765 = vunpack.c.l.b16 %v2662
    %v2766 = vunpack.c.l.b16 %v2663
    %v2767 = vunpack.c.l.b16 %v2664
    %v2768 = vunpack.c.l.b16 %v2665
    %v2769 = vunpack.c.l.b16 %v2666
    %v2770 = vunpack.c.l.b16 %v2667
    %v2771 = vunpack.c.l.b16 %v2668
    %v2772 = vunpack.c.l.b16 %v2669
    %v2773 = vunpack.c.l.b16 %v2670
    %v2774 = vunpack.c.l.b16 %v2671
    %v2775 = vunpack.c.l.b16 %v2672
    %v2776 = vunpack.c.l.b16 %v2673
    %v2777 = vunpack.c.l.b16 %v2674
    %v2778 = vunpack.c.l.b16 %v2675
    %v2779 = vunpack.c.l.b16 %v2676
    %v2780 = vunpack.c.l.b16 %v2677
    %v2781 = vunpack.c.l.b16 %v2678
    %v2782 = vunpack.c.l.b16 %v2679
    %v2783 = vunpack.c.l.b16 %v2680
    %v2784 = vunpack.c.l.b16 %v2681
    %v2785 = vunpack.c.l.b16 %v2682
    %v2786 = vunpack.c.l.b16 %v2683
    %v2787 = vunpack.c.l.b16 %v2684
    %v2788 = vunpack.c.l.b16 %v2685
    %v2789 = vunpack.c.l.b16 %v2686
    %v2790 = vunpack.c.l.b16 %v2687
    %v2791 = vunpack.c.l.b16 %v2688
    %v2792 = vunpack.c.l.b16 %v2689
    %v2793 = vunpack.c.l.b16 %v2690
    %v2794 = vunpack.c.l.b16 %v2691
    %v2795 = vunpack.c.l.b16 %v2692
    %v2796 = vunpack.c.l.b16 %v2693
    %v2797 = vunpack.c.l.b16 %v2694
    %v2798 = vunpack.c.l.b16 %v2695
    %v2799 = vunpack.c.l.b16 %v2696
    %v2800 = vunpack.c.l.b16 %v2697
    %v2801 = vunpack.c.l.b16 %v2698
    %v2802 = vunpack.c.l.b16 %v2699
    %v2803 = vunpack.c.l.b16 %v2700
    %v2804 = vpack.c.b16 %v2757, %v2756
    %v2805 = vpack.c.b16 %v2759, %v2758
    %v2806 = vpack.c.b16 %v2761, %v2760
    %v2807 = vpack.c.b16 %v2763, %v2762
    %v2808 = vpack.c.b16 %v2765, %v2764
    %v2809 = vpack.c.b16 %v2767, %v2766
    %v2810 = vpack.c.b16 %v2769, %v2768
    %v2811 = vpack.c.b16 %v2771, %v2770
    %v2812 = vpack.c.b16 %v2773, %v2772
    %v2813 = vpack.c.b16 %v2775, %v2774
    %v2814 = vpack.c.b16 %v2777, %v2776
    %v2815 = vpack.c.b16 %v2779, %v2778
    %v2816 = vpack.c.b16 %v2781, %v2780
    %v2817 = vpack.c.b16 %v2783, %v2782
    %v2818 = vpack.c.b16 %v2785, %v2784
    %v2819 = vpack.c.b16 %v2787, %v2786
    %v2820 = vpack.c.b16 %v2789, %v2788
    %v2821 = vpack.c.b16 %v2791, %v2790
    %v2822 = vpack.c.b16 %v2793, %v2792
    %v2823 = vpack.c.b16 %v2795, %v2794
    %v2824 = vpack.c.b16 %v2797, %v2796
    %v2825 = vpack.c.b16 %v2799, %v2798
    %v2826 = vpack.c.b16 %v2801, %v2800
    %v2827 = vpack.c.b16 %v2803, %v2802
    %2852 = vmatprep.subr.bf16.mxu0 0
    %2853 = vmatpush1.bf16.msra.mxu0 %v2811
    %2854 = vmatprep.subr.bf16.mxu0 0
    %2855 = vmatpush1.bf16.msra.mxu0 %v2810
    %2856 = vmatprep.subr.bf16.mxu0 0
    %2857 = vmatpush1.bf16.msra.mxu0 %v2809
    %2858 = vmatprep.subr.bf16.mxu0 0
    %2859 = vmatpush1.bf16.msra.mxu0 %v2808
    %2860 = vmatprep.subr.bf16.mxu0 0
    %2861 = vmatpush1.bf16.msra.mxu0 %v2807
    %2862 = vmatprep.subr.bf16.mxu0 0
    %2863 = vmatpush1.bf16.msra.mxu0 %v2806
    %2864 = vmatprep.subr.bf16.mxu0 0
    %2865 = vmatpush1.bf16.msra.mxu0 %v2805
    %2866 = vmatprep.subr.bf16.mxu0 0
    %2867 = vmatpush1.bf16.msra.mxu0 %v2804
    %2868 = vmatprep.subr.bf16.mxu0 0
    %2869 = vmatpush2.bf16.msra.mxu0 %v2819
    %2870 = vmatprep.subr.bf16.mxu0 0
    %2871 = vmatpush2.bf16.msra.mxu0 %v2818
    %2872 = vmatprep.subr.bf16.mxu0 0
    %2873 = vmatpush2.bf16.msra.mxu0 %v2817
    %2874 = vmatprep.subr.bf16.mxu0 0
    %2875 = vmatpush2.bf16.msra.mxu0 %v2816
    %2876 = vmatprep.subr.bf16.mxu0 0
    %2877 = vmatpush2.bf16.msra.mxu0 %v2815
    %2878 = vmatprep.subr.bf16.mxu0 0
    %2879 = vmatpush2.bf16.msra.mxu0 %v2814
    %2880 = vmatprep.subr.bf16.mxu0 0
    %2881 = vmatpush2.bf16.msra.mxu0 %v2813
    %2882 = vmatprep.subr.bf16.mxu0 0
    %2883 = vmatpush2.bf16.msra.mxu0 %v2812
    %2884 = vmatprep.mubr.bf16.mxu0 %v2651
    %2885 = vmatmul.mubr.bf16.gmra.mxu0 %v2650
    %v2886 = vpop.f32.mrf.mxu0
    %v2887 = vadd.f32 %v2706, %v2886
    %v2888 = vpop.f32.mrf.mxu0
    %v2889 = vpop.f32.mrf.mxu0
    %v2890 = vpop.f32.mrf.mxu0
    %2891 = vdwg.mxu0
    %2892 = vmatprep.subr.bf16.mxu0 0
    %2893 = vmatpush1.bf16.msra.mxu0 %v2827
    %2894 = vmatprep.subr.bf16.mxu0 0
    %2895 = vmatpush1.bf16.msra.mxu0 %v2826
    %2896 = vmatprep.subr.bf16.mxu0 0
    %2897 = vmatpush1.bf16.msra.mxu0 %v2825
    %2898 = vmatprep.subr.bf16.mxu0 0
    %2899 = vmatpush1.bf16.msra.mxu0 %v2824
    %2900 = vmatprep.subr.bf16.mxu0 0
    %2901 = vmatpush1.bf16.msra.mxu0 %v2823
    %2902 = vmatprep.subr.bf16.mxu0 0
    %2903 = vmatpush1.bf16.msra.mxu0 %v2822
    %2904 = vmatprep.subr.bf16.mxu0 0
    %2905 = vmatpush1.bf16.msra.mxu0 %v2821
    %2906 = vmatprep.subr.bf16.mxu0 0
    %2907 = vmatpush1.bf16.msra.mxu0 %v2820
    %2908 = vmatprep.subr.bf16.mxu0 0
    %2909 = vmatpush2.bf16.msra.mxu0 0
    %2910 = vmatprep.subr.bf16.mxu0 0
    %2911 = vmatpush2.bf16.msra.mxu0 0
    %2912 = vmatprep.subr.bf16.mxu0 0
    %2913 = vmatpush2.bf16.msra.mxu0 0
    %2914 = vmatprep.subr.bf16.mxu0 0
    %2915 = vmatpush2.bf16.msra.mxu0 0
    %2916 = vmatprep.subr.bf16.mxu0 0
    %2917 = vmatpush2.bf16.msra.mxu0 0
    %2918 = vmatprep.subr.bf16.mxu0 0
    %2919 = vmatpush2.bf16.msra.mxu0 0
    %2920 = vmatprep.subr.bf16.mxu0 0
    %2921 = vmatpush2.bf16.msra.mxu0 0
    %2922 = vmatprep.subr.bf16.mxu0 0
    %2923 = vmatpush2.bf16.msra.mxu0 0
    %2924 = vmatprep.mubr.bf16.mxu0 0
    %2925 = vmatmul.mubr.bf16.gmra.mxu0 %v2652
    %v2926 = vpop.f32.mrf.mxu0
    %v2927 = vadd.f32 %v2887, %v2926
    %v2928 = vpop.f32.mrf.mxu0
    %v2929 = vpop.f32.mrf.mxu0
    %v2930 = vpop.f32.mrf.mxu0
    %2931 = vdwg.mxu0
    %v2932 = vmax.f32 %v2927, 0.0
    %v2933 = vpack.c.bf16 %v2932, %v2932
    %v2934 = vld [vmem:[#allocation11] sm:$0xf]
    %v2935 = vld [vmem:[#allocation11 + $0x4] sm:$0xf]
    %v2936 = vld [vmem:[#allocation11 + $0x8] sm:$0xf]
    %v2937 = vld [vmem:[#allocation11 + $0xc] sm:$0xf]
    %v2938 = vld [vmem:[#allocation11 + $0x10] sm:$0xf]
    %v2939 = vld [vmem:[#allocation11 + $0x14] sm:$0xf]
    %v2940 = vld [vmem:[#allocation11 + $0x18] sm:$0xf]
    %v2941 = vld [vmem:[#allocation11 + $0x1c] sm:$0xf]
    %v2942 = vld [vmem:[#allocation11 + $0x20] sm:$0xf]
    %v2943 = vld [vmem:[#allocation11 + $0x24] sm:$0xf]
    %v2944 = vld [vmem:[#allocation11 + $0x28] sm:$0xf]
    %v2945 = vld [vmem:[#allocation11 + $0x2c] sm:$0xf]
    %v2946 = vld [vmem:[#allocation11 + $0x30] sm:$0xf]
    %v2947 = vld [vmem:[#allocation11 + $0x34] sm:$0xf]
    %v2948 = vld [vmem:[#allocation11 + $0x38] sm:$0xf]
    %v2949 = vld [vmem:[#allocation11 + $0x3c] sm:$0xf]
    %v2950 = vld [vmem:[%s8] sm:$0x1]
    %v2952 = vlaneseq
    %v2953 = vshrl.u32 %v2952, 7
    %v2954 = vsub.s32 0, %v2953
    %v2955 = vrot.slane %v2950, %v2954
    %v2973 = vunpack.c.l.b16 %v2934
    %v2974 = vunpack.c.l.b16 %v2935
    %v2975 = vunpack.c.l.b16 %v2936
    %v2976 = vunpack.c.l.b16 %v2937
    %v2977 = vunpack.c.l.b16 %v2938
    %v2978 = vunpack.c.l.b16 %v2939
    %v2979 = vunpack.c.l.b16 %v2940
    %v2980 = vunpack.c.l.b16 %v2941
    %v2981 = vunpack.c.l.b16 %v2942
    %v2982 = vunpack.c.l.b16 %v2943
    %v2983 = vunpack.c.l.b16 %v2944
    %v2984 = vunpack.c.l.b16 %v2945
    %v2985 = vunpack.c.l.b16 %v2946
    %v2986 = vunpack.c.l.b16 %v2947
    %v2987 = vunpack.c.l.b16 %v2948
    %v2988 = vunpack.c.l.b16 %v2949
    %v2989 = vpack.c.b16 %v2974, %v2973
    %v2990 = vpack.c.b16 %v2976, %v2975
    %v2991 = vpack.c.b16 %v2978, %v2977
    %v2992 = vpack.c.b16 %v2980, %v2979
    %v2993 = vpack.c.b16 %v2982, %v2981
    %v2994 = vpack.c.b16 %v2984, %v2983
    %v2995 = vpack.c.b16 %v2986, %v2985
    %v2996 = vpack.c.b16 %v2988, %v2987
    %3005 = vmatprep.subr.bf16.mxu0 0
    %3006 = vmatpush1.bf16.msra.mxu0 %v2996
    %3007 = vmatprep.subr.bf16.mxu0 0
    %3008 = vmatpush1.bf16.msra.mxu0 %v2995
    %3009 = vmatprep.subr.bf16.mxu0 0
    %3010 = vmatpush1.bf16.msra.mxu0 %v2994
    %3011 = vmatprep.subr.bf16.mxu0 0
    %3012 = vmatpush1.bf16.msra.mxu0 %v2993
    %3013 = vmatprep.subr.bf16.mxu0 0
    %3014 = vmatpush1.bf16.msra.mxu0 %v2992
    %3015 = vmatprep.subr.bf16.mxu0 0
    %3016 = vmatpush1.bf16.msra.mxu0 %v2991
    %3017 = vmatprep.subr.bf16.mxu0 0
    %3018 = vmatpush1.bf16.msra.mxu0 %v2990
    %3019 = vmatprep.subr.bf16.mxu0 0
    %3020 = vmatpush1.bf16.msra.mxu0 %v2989
    %3021 = vmatprep.subr.bf16.mxu0 0
    %3022 = vmatpush2.bf16.msra.mxu0 0
    %3023 = vmatprep.subr.bf16.mxu0 0
    %3024 = vmatpush2.bf16.msra.mxu0 0
    %3025 = vmatprep.subr.bf16.mxu0 0
    %3026 = vmatpush2.bf16.msra.mxu0 0
    %3027 = vmatprep.subr.bf16.mxu0 0
    %3028 = vmatpush2.bf16.msra.mxu0 0
    %3029 = vmatprep.subr.bf16.mxu0 0
    %3030 = vmatpush2.bf16.msra.mxu0 0
    %3031 = vmatprep.subr.bf16.mxu0 0
    %3032 = vmatpush2.bf16.msra.mxu0 0
    %3033 = vmatprep.subr.bf16.mxu0 0
    %3034 = vmatpush2.bf16.msra.mxu0 0
    %3035 = vmatprep.subr.bf16.mxu0 0
    %3036 = vmatpush2.bf16.msra.mxu0 0
    %3037 = vmatprep.mubr.bf16.mxu0 0
    %3038 = vmatmul.mubr.bf16.gmra.mxu0 %v2933
    %v3039 = vpop.f32.mrf.mxu0
    %v3040 = vadd.f32 %v2955, %v3039
    %v3041 = vpop.f32.mrf.mxu0
    %v3042 = vpop.f32.mrf.mxu0
    %v3043 = vpop.f32.mrf.mxu0
    %3044 = vdwg.mxu0
    %3045 = vst [vmem:[#allocation13] sm:$0xff] %v3040
    // Predicated region
    $region62: #{tpu_custom_call.1} parent=1 // pred_check
      _
    $region63: #{tpu_custom_call.1} parent=1 // pred_check_branch
      %3047 = sbr.rel (0) target = $region65
    $region64: #{tpu_custom_call.1} parent=1 // pred_region
      %s3049 = ssub.s32 128, 128
      %3050 = vsyncadd [#allocation4], %s3049
      %s3052 = sshll.u32 [#allocation13], 4
      %s3053 = int_to_ptr.vmem [resolvable:$true] %s3052
      %3055 = dma.vmem_to_hbm [thread:$0]  %s3053, 128, %s9, [#allocation4]
    $region65: #{tpu_custom_call.1} parent=1 // pred_fallthru
      _
    // Predicated region
    $region66: #{tpu_custom_call.1} parent=1 // pred_check
      _
    $region67: #{tpu_custom_call.1} parent=1 // pred_check_branch
      %3057 = sbr.rel (0) target = $region69
    $region68: #{tpu_custom_call.1} parent=1 // pred_region
      %3058 = dma.done [#allocation4], 128
    $region69: #{tpu_custom_call.1} parent=1 // pred_fallthru
      _
    %3059 = vsyncpa [#allocation3], 1
    %3060 = vsyncpa [#allocation6], 1
    %3061 = vsyncpa [#allocation9], 1
    %3062 = vsyncpa [#allocation12], 1
    %3063 = vsyncpa [#allocation4], 1

</llo_original>
